<compile_context>
chip_gen: v7x
topology: tpu7x:2x2x1
jax: 0.10.0
libtpu: 0.0.40
codegen_flags: <defaults>
</compile_context>

<pallas_src>
from functools import partial

import jax
import jax.numpy as jnp
from jax.experimental import pallas as pl
from jax.experimental.pallas import tpu as pltpu


def _make_block_kernel(H, W, R, Cp):
    """Fused bottleneck-block kernel for a tile of R = imgs*H*W flat rows."""
    HW = H * W

    def _mod(a, m):
        # cheap modulo for power-of-two m (review suggestion)
        return a & (m - 1) if (m & (m - 1)) == 0 else a % m

    def kernel(x_ref, w1_ref, b1_ref, w2_ref, b2_ref, w3_ref, b3_ref, o_ref):
        x = x_ref[...]                                            # [R, Cp] f32 (lane-dense)

        # ---- conv1 (1x1; BN scale pre-folded into w1) + shift + relu ----
        h1 = jnp.dot(x.astype(jnp.bfloat16), w1_ref[...],
                     preferred_element_type=jnp.float32)
        h1 = jnp.maximum(h1 + b1_ref[...], 0.0)                   # [R, Cp] f32

        # ---- conv2 (3x3, stride=1, pad=1) as ONE im2col matmul ----
        # Per-row position within its image (R,1); masks broadcast along lanes.
        p = jax.lax.broadcasted_iota(jnp.int32, (R, 1), 0)
        p = _mod(p, HW)                  # flat spatial position inside the image
        c = _mod(p, W)                   # column inside the row

        taps = []
        for dy in range(3):
            for dx in range(3):
                off = (dy - 1) * W + (dx - 1)
                if off == 0:
                    v = h1
                else:
                    # v[i] = h1[i + off]; wrap-around rows are masked below.
                    v = pltpu.roll(h1, shift=(-off) % R, axis=0)
                ok = None
                if dy == 0:
                    ok = p >= W                   # source row (y-1) in range
                elif dy == 2:
                    ok = p < HW - W               # source row (y+1) in range
                if dx == 0:
                    m = c >= 1                    # source col (x-1) in range
                    ok = m if ok is None else ok & m
                elif dx == 2:
                    m = c <= W - 2                # source col (x+1) in range
                    ok = m if ok is None else ok & m
                if ok is not None:
                    v = jnp.where(ok, v, 0.0)     # zero padding of the 3x3 conv
                taps.append(v.astype(jnp.bfloat16))
        # Tap-major (dy, dx, cin) layout matches w2_p built wrapper-side.
        patches = jnp.concatenate(taps, axis=-1)                  # [R, 9*Cp] bf16

        h2 = jnp.dot(patches, w2_ref[...], preferred_element_type=jnp.float32)
        h2 = jnp.maximum(h2 + b2_ref[...], 0.0)                   # [R, Cp]

        # ---- conv3 (1x1) + shift, residual add, relu ----
        h3 = jnp.dot(h2.astype(jnp.bfloat16), w3_ref[...],
                     preferred_element_type=jnp.float32)
        o_ref[...] = jnp.maximum(h3 + b3_ref[...] + x, 0.0)

    return kernel


@partial(jax.jit, static_argnames=("c_out",))
def block_forward_nhwc(x_nhwc, w1_p, b1_p, w2_p, b2_p, w3_p, b3_p, *, c_out):
    """x_nhwc: [N,H,W,Cin] f32.  w*_p: bf16 padded; b*_p: f32 (1,Cp).  -> [N,H,W,c_out]."""
    N, H, W, Cin = x_nhwc.shape
    Cp = w1_p.shape[1]
    HW = H * W
    M = N * HW

    # Lane-dense flat activations: pad channels up to Cp (multiple of 128).
    x_flat = x_nhwc.reshape(M, Cin)
    if Cp > Cin:
        x_flat = jnp.pad(x_flat, ((0, 0), (0, Cp - Cin)))

    # Rows per grid step: whole images only (no halo needed).  Target ~512 rows
    # per step but keep >= 2 grid steps when possible (v7x has 2 TensorCores).
    imgs = min(max(1, 512 // HW), max(1, N // 2))
    while N % imgs:
        imgs -= 1
    R = imgs * HW
    assert R % 8 == 0, "rows per tile must be a multiple of 8 (sublane tiling)"
    grid = (M // R,)

    kernel = _make_block_kernel(H, W, R, Cp)

    flops = 2 * M * (Cp * Cp + 9 * Cp * Cp + Cp * Cp)
    # Weights counted once: constant index_maps keep them resident across steps.
    bytes_accessed = (M * Cp * 4 * 2
                      + (w1_p.size + w2_p.size + w3_p.size) * 2
                      + (b1_p.size + b2_p.size + b3_p.size) * 4)

    out = pl.pallas_call(
        kernel,
        out_shape=jax.ShapeDtypeStruct((M, Cp), jnp.float32),
        grid=grid,
        in_specs=[
            pl.BlockSpec((R, Cp), lambda i: (i, 0)),            # x tile (lane-dense)
            pl.BlockSpec((Cp, Cp), lambda i: (0, 0)),           # w1 (resident, bf16)
            pl.BlockSpec((1, Cp), lambda i: (0, 0)),            # shift1
            pl.BlockSpec((9 * Cp, Cp), lambda i: (0, 0)),       # w2 im2col (resident)
            pl.BlockSpec((1, Cp), lambda i: (0, 0)),            # shift2
            pl.BlockSpec((Cp, Cp), lambda i: (0, 0)),           # w3 (resident)
            pl.BlockSpec((1, Cp), lambda i: (0, 0)),            # shift3
        ],
        out_specs=pl.BlockSpec((R, Cp), lambda i: (i, 0)),
        compiler_params=pltpu.CompilerParams(
            dimension_semantics=("parallel",),
            vmem_limit_bytes=32 * 1024 * 1024),                 # < 48 MiB budget for v7x
        cost_estimate=pl.CostEstimate(
            flops=flops, transcendentals=0, bytes_accessed=bytes_accessed),
    )(x_flat, w1_p, b1_p, w2_p, b2_p, w3_p, b3_p)

    return out[:, :c_out].reshape(N, H, W, c_out)


def _fold_bn(gamma, beta, mean, var, conv_bias, eps=1e-5):
    """Fold eval-mode BatchNorm + conv bias into per-channel scale / shift (1-D)."""
    scale = gamma / jnp.sqrt(var + eps)
    shift = beta + scale * (conv_bias - mean)
    return scale, shift


def prepare_block_params(w1, b1c, bn1, w2_hwio, b2c, bn2, w3, b3c, bn3, eps=1e-5):
    """Fold BN scale into weights (f32), cast bf16, pad to lane-dense kernel layout."""
    Cin, Cmid = w1.shape
    Cout = w3.shape[1]
    Cp = 128 * ((max(Cin, Cmid, Cout) + 127) // 128)

    s1, t1 = _fold_bn(*bn1, b1c, eps)
    s2, t2 = _fold_bn(*bn2, b2c, eps)
    s3, t3 = _fold_bn(*bn3, b3c, eps)

    # Fold BN scale into the conv weights in f32, then round to bf16 (MXU dtype).
    w1f = (w1 * s1[None, :]).astype(jnp.bfloat16)                       # [Cin, Cmid]
    w2f = (w2_hwio * s2[None, None, None, :]).astype(jnp.bfloat16)      # [3,3,Cmid,Cmid]
    w3f = (w3 * s3[None, :]).astype(jnp.bfloat16)                       # [Cmid, Cout]

    def pad2(a, r, c):
        return jnp.pad(a, ((0, r - a.shape[0]), (0, c - a.shape[1])))

    w1_p = pad2(w1f, Cp, Cp)
    w3_p = pad2(w3f, Cp, Cp)
    # im2col weight: tap-major (dy, dx) blocks of [Cp, Cp], matching the kernel.
    w2_p = jnp.concatenate(
        [pad2(w2f[dy, dx], Cp, Cp) for dy in range(3) for dx in range(3)], axis=0)

    b1_p = pad2(t1.astype(jnp.float32)[None, :], 1, Cp)
    b2_p = pad2(t2.astype(jnp.float32)[None, :], 1, Cp)
    b3_p = pad2(t3.astype(jnp.float32)[None, :], 1, Cp)

    kernel_params = (w1_p, b1_p, w2_p, b2_p, w3_p, b3_p)
    ref_params = (w1f, t1, w2f, t2, w3f, t3)
    return kernel_params, ref_params


def _reference_nhwc(x, w1f, t1, w2f_hwio, t2, w3f, t3):
    """Pure-JAX reference (NHWC, f32, scale already folded into weights)."""
    dn = ("NHWC", "HWIO", "NHWC")
    Cin, Cmid = w1f.shape
    Cout = w3f.shape[1]
    h = jax.lax.conv_general_dilated(
        x, w1f.reshape(1, 1, Cin, Cmid), (1, 1), "VALID", dimension_numbers=dn)
    h = jnp.maximum(h + t1, 0.0)
    h = jax.lax.conv_general_dilated(
        h, w2f_hwio, (1, 1), ((1, 1), (1, 1)), dimension_numbers=dn)
    h = jnp.maximum(h + t2, 0.0)
    h = jax.lax.conv_general_dilated(
        h, w3f.reshape(1, 1, Cmid, Cout), (1, 1), "VALID", dimension_numbers=dn)
    h = h + t3
    return jnp.maximum(h + x, 0.0)


if __name__ == "__main__":
    # Bottleneck config: num_layers=50 -> expansion=4.
    N, H, W = 2, 16, 16
    out_channels = 8                       # Cmid
    expansion = 4
    Cmid = out_channels
    Cout = out_channels * expansion        # 32
    Cin = Cout                             # residual add valid (no downsample)

    key = jax.random.PRNGKey(0)
    keys = jax.random.split(key, 10)

    # Input (PyTorch-style NCHW), transposed to the kernel's NHWC layout.
    x_nchw = jax.random.normal(keys[0], (N, Cin, H, W), jnp.float32)
    x = jnp.transpose(x_nchw, (0, 2, 3, 1))

    # conv weights (1x1 stored as [Cin, Cout]; 3x3 stored as HWIO) + conv biases.
    w1 = jax.random.normal(keys[1], (Cin, Cmid), jnp.float32) * 0.1
    b1c = jax.random.normal(keys[2], (Cmid,), jnp.float32) * 0.1
    w2_hwio = jax.random.normal(keys[3], (3, 3, Cmid, Cmid), jnp.float32) * 0.1
    b2c = jax.random.normal(keys[4], (Cmid,), jnp.float32) * 0.1
    w3 = jax.random.normal(keys[5], (Cmid, Cout), jnp.float32) * 0.1
    b3c = jax.random.normal(keys[6], (Cout,), jnp.float32) * 0.1

    # BatchNorm parameters (eval mode).
    def bn_params(k, c):
        ks = jax.random.split(k, 4)
        gamma = 1.0 + 0.1 * jax.random.normal(ks[0], (c,), jnp.float32)
        beta = 0.1 * jax.random.normal(ks[1], (c,), jnp.float32)
        mean = 0.1 * jax.random.normal(ks[2], (c,), jnp.float32)
        var = 1.0 + 0.1 * jax.random.uniform(ks[3], (c,), jnp.float32)
        return gamma, beta, mean, var

    bn1 = bn_params(keys[7], Cmid)
    bn2 = bn_params(keys[8], Cmid)
    bn3 = bn_params(keys[9], Cout)

    kparams, refparams = prepare_block_params(
        w1, b1c, bn1, w2_hwio, b2c, bn2, w3, b3c, bn3)

    out = block_forward_nhwc(x, *kparams, c_out=Cout)
    out = jax.block_until_ready(out)

    # Reference uses the same bf16-rounded, scale-folded weights (cast back to
    # f32), so the only remaining diff is the kernel's bf16 activation rounding.
    w1f, t1, w2f, t2, w3f, t3 = refparams
    ref = _reference_nhwc(
        x,
        w1f.astype(jnp.float32), t1,
        w2f.astype(jnp.float32), t2,
        w3f.astype(jnp.float32), t3)

    assert out.shape == (N, H, W, Cout)
    max_err = float(jnp.max(jnp.abs(out - ref)))
    assert jnp.allclose(out, ref, atol=2e-2, rtol=2e-2), (
        f"mismatch vs reference: max abs err = {max_err:.4e}")

    print("KERNEL_OK")
</pallas_src>

<mosaic_0001>
module attributes {stable_mosaic.version = 11 : i64} {
  func.func @kernel(%arg0: i32, %arg1: memref<256x128xf32, #tpu.memory_space<vmem>>, %arg2: memref<128x128xbf16, #tpu.memory_space<vmem>>, %arg3: memref<1x128xf32, #tpu.memory_space<vmem>>, %arg4: memref<1152x128xbf16, #tpu.memory_space<vmem>>, %arg5: memref<1x128xf32, #tpu.memory_space<vmem>>, %arg6: memref<128x128xbf16, #tpu.memory_space<vmem>>, %arg7: memref<1x128xf32, #tpu.memory_space<vmem>>, %arg8: memref<256x128xf32, #tpu.memory_space<vmem>>) attributes {dimension_semantics = [#tpu.dimension_semantics<parallel>], iteration_bounds = array<i64: 2>, scalar_prefetch = 0 : i64, scratch_operands = 0 : i64, tpu.core_type = #tpu.core_type<tc>, window_params = [{transform_indices = @transform_0, window_bounds = array<i64: 256, 128>}, {pipeline_mode = #tpu.pipeline_mode<synchronous>, transform_indices = @transform_1, window_bounds = array<i64: 128, 128>}, {pipeline_mode = #tpu.pipeline_mode<synchronous>, transform_indices = @transform_2, window_bounds = array<i64: 1, 128>}, {pipeline_mode = #tpu.pipeline_mode<synchronous>, transform_indices = @transform_3, window_bounds = array<i64: 1152, 128>}, {pipeline_mode = #tpu.pipeline_mode<synchronous>, transform_indices = @transform_4, window_bounds = array<i64: 1, 128>}, {pipeline_mode = #tpu.pipeline_mode<synchronous>, transform_indices = @transform_5, window_bounds = array<i64: 128, 128>}, {pipeline_mode = #tpu.pipeline_mode<synchronous>, transform_indices = @transform_6, window_bounds = array<i64: 1, 128>}, {transform_indices = @transform_7, window_bounds = array<i64: 256, 128>}]} {
    %c0 = arith.constant 0 : index
    %c0_0 = arith.constant 0 : index
    %0 = vector.load %arg1[%c0, %c0_0] : memref<256x128xf32, #tpu.memory_space<vmem>>, vector<256x128xf32>
    %1 = arith.truncf %0 : vector<256x128xf32> to vector<256x128xbf16>
    %c0_1 = arith.constant 0 : index
    %c0_2 = arith.constant 0 : index
    %2 = vector.load %arg2[%c0_1, %c0_2] : memref<128x128xbf16, #tpu.memory_space<vmem>>, vector<128x128xbf16>
    %cst = arith.constant dense<0.000000e+00> : vector<256x128xf32>
    %3 = tpu.matmul %1, %2, %cst {dimension_numbers = #tpu.dot_dimension_numbers<[1], [0], [0], [1], [0, 0, 1, 1], [], []>} : vector<256x128xbf16>, vector<128x128xbf16>, vector<256x128xf32> -> vector<256x128xf32>
    %c0_3 = arith.constant 0 : index
    %c0_4 = arith.constant 0 : index
    %4 = vector.load %arg3[%c0_3, %c0_4] : memref<1x128xf32, #tpu.memory_space<vmem>>, vector<1x128xf32>
    %5 = vector.broadcast %4 : vector<1x128xf32> to vector<256x128xf32>
    %6 = arith.addf %3, %5 : vector<256x128xf32>
    %cst_5 = arith.constant 0.000000e+00 : f32
    %7 = vector.broadcast %cst_5 : f32 to vector<256x128xf32>
    %8 = arith.maximumf %6, %7 : vector<256x128xf32>
    %9 = tpu.iota {dimensions = array<i32: 0>} : vector<256x1xi32>
    %c255_i32 = arith.constant 255 : i32
    %10 = vector.broadcast %c255_i32 : i32 to vector<256x1xi32>
    %11 = arith.andi %9, %10 : vector<256x1xi32>
    %c15_i32 = arith.constant 15 : i32
    %12 = vector.broadcast %c15_i32 : i32 to vector<256x1xi32>
    %13 = arith.andi %11, %12 : vector<256x1xi32>
    %c17_i32 = arith.constant 17 : i32
    %14 = tpu.dynamic_rotate %8 by %c17_i32 dim 0 : vector<256x128xf32>, i32 -> vector<256x128xf32>
    %c16_i32 = arith.constant 16 : i32
    %15 = vector.broadcast %c16_i32 : i32 to vector<256x1xi32>
    %16 = arith.cmpi sge, %11, %15 : vector<256x1xi32>
    %c1_i32 = arith.constant 1 : i32
    %17 = vector.broadcast %c1_i32 : i32 to vector<256x1xi32>
    %18 = arith.cmpi sge, %13, %17 : vector<256x1xi32>
    %19 = arith.andi %16, %18 : vector<256x1xi1>
    %cst_6 = arith.constant 0.000000e+00 : f32
    %20 = vector.shape_cast %19 : vector<256x1xi1> to vector<256x1xi1>
    %21 = vector.broadcast %20 : vector<256x1xi1> to vector<256x128xi1>
    %22 = vector.broadcast %cst_6 : f32 to vector<256x128xf32>
    %23 = arith.select %21, %14, %22 : vector<256x128xi1>, vector<256x128xf32>
    %24 = arith.truncf %23 : vector<256x128xf32> to vector<256x128xbf16>
    %c16_i32_7 = arith.constant 16 : i32
    %25 = tpu.dynamic_rotate %8 by %c16_i32_7 dim 0 : vector<256x128xf32>, i32 -> vector<256x128xf32>
    %c16_i32_8 = arith.constant 16 : i32
    %26 = vector.broadcast %c16_i32_8 : i32 to vector<256x1xi32>
    %27 = arith.cmpi sge, %11, %26 : vector<256x1xi32>
    %cst_9 = arith.constant 0.000000e+00 : f32
    %28 = vector.shape_cast %27 : vector<256x1xi1> to vector<256x1xi1>
    %29 = vector.broadcast %28 : vector<256x1xi1> to vector<256x128xi1>
    %30 = vector.broadcast %cst_9 : f32 to vector<256x128xf32>
    %31 = arith.select %29, %25, %30 : vector<256x128xi1>, vector<256x128xf32>
    %32 = arith.truncf %31 : vector<256x128xf32> to vector<256x128xbf16>
    %c15_i32_10 = arith.constant 15 : i32
    %33 = tpu.dynamic_rotate %8 by %c15_i32_10 dim 0 : vector<256x128xf32>, i32 -> vector<256x128xf32>
    %c16_i32_11 = arith.constant 16 : i32
    %34 = vector.broadcast %c16_i32_11 : i32 to vector<256x1xi32>
    %35 = arith.cmpi sge, %11, %34 : vector<256x1xi32>
    %c14_i32 = arith.constant 14 : i32
    %36 = vector.broadcast %c14_i32 : i32 to vector<256x1xi32>
    %37 = arith.cmpi sle, %13, %36 : vector<256x1xi32>
    %38 = arith.andi %35, %37 : vector<256x1xi1>
    %cst_12 = arith.constant 0.000000e+00 : f32
    %39 = vector.shape_cast %38 : vector<256x1xi1> to vector<256x1xi1>
    %40 = vector.broadcast %39 : vector<256x1xi1> to vector<256x128xi1>
    %41 = vector.broadcast %cst_12 : f32 to vector<256x128xf32>
    %42 = arith.select %40, %33, %41 : vector<256x128xi1>, vector<256x128xf32>
    %43 = arith.truncf %42 : vector<256x128xf32> to vector<256x128xbf16>
    %c1_i32_13 = arith.constant 1 : i32
    %44 = tpu.dynamic_rotate %8 by %c1_i32_13 dim 0 : vector<256x128xf32>, i32 -> vector<256x128xf32>
    %c1_i32_14 = arith.constant 1 : i32
    %45 = vector.broadcast %c1_i32_14 : i32 to vector<256x1xi32>
    %46 = arith.cmpi sge, %13, %45 : vector<256x1xi32>
    %cst_15 = arith.constant 0.000000e+00 : f32
    %47 = vector.shape_cast %46 : vector<256x1xi1> to vector<256x1xi1>
    %48 = vector.broadcast %47 : vector<256x1xi1> to vector<256x128xi1>
    %49 = vector.broadcast %cst_15 : f32 to vector<256x128xf32>
    %50 = arith.select %48, %44, %49 : vector<256x128xi1>, vector<256x128xf32>
    %51 = arith.truncf %50 : vector<256x128xf32> to vector<256x128xbf16>
    %52 = arith.truncf %8 : vector<256x128xf32> to vector<256x128xbf16>
    %c255_i32_16 = arith.constant 255 : i32
    %53 = tpu.dynamic_rotate %8 by %c255_i32_16 dim 0 : vector<256x128xf32>, i32 -> vector<256x128xf32>
    %c14_i32_17 = arith.constant 14 : i32
    %54 = vector.broadcast %c14_i32_17 : i32 to vector<256x1xi32>
    %55 = arith.cmpi sle, %13, %54 : vector<256x1xi32>
    %cst_18 = arith.constant 0.000000e+00 : f32
    %56 = vector.shape_cast %55 : vector<256x1xi1> to vector<256x1xi1>
    %57 = vector.broadcast %56 : vector<256x1xi1> to vector<256x128xi1>
    %58 = vector.broadcast %cst_18 : f32 to vector<256x128xf32>
    %59 = arith.select %57, %53, %58 : vector<256x128xi1>, vector<256x128xf32>
    %60 = arith.truncf %59 : vector<256x128xf32> to vector<256x128xbf16>
    %c241_i32 = arith.constant 241 : i32
    %61 = tpu.dynamic_rotate %8 by %c241_i32 dim 0 : vector<256x128xf32>, i32 -> vector<256x128xf32>
    %c240_i32 = arith.constant 240 : i32
    %62 = vector.broadcast %c240_i32 : i32 to vector<256x1xi32>
    %63 = arith.cmpi slt, %11, %62 : vector<256x1xi32>
    %c1_i32_19 = arith.constant 1 : i32
    %64 = vector.broadcast %c1_i32_19 : i32 to vector<256x1xi32>
    %65 = arith.cmpi sge, %13, %64 : vector<256x1xi32>
    %66 = arith.andi %63, %65 : vector<256x1xi1>
    %cst_20 = arith.constant 0.000000e+00 : f32
    %67 = vector.shape_cast %66 : vector<256x1xi1> to vector<256x1xi1>
    %68 = vector.broadcast %67 : vector<256x1xi1> to vector<256x128xi1>
    %69 = vector.broadcast %cst_20 : f32 to vector<256x128xf32>
    %70 = arith.select %68, %61, %69 : vector<256x128xi1>, vector<256x128xf32>
    %71 = arith.truncf %70 : vector<256x128xf32> to vector<256x128xbf16>
    %c240_i32_21 = arith.constant 240 : i32
    %72 = tpu.dynamic_rotate %8 by %c240_i32_21 dim 0 : vector<256x128xf32>, i32 -> vector<256x128xf32>
    %c240_i32_22 = arith.constant 240 : i32
    %73 = vector.broadcast %c240_i32_22 : i32 to vector<256x1xi32>
    %74 = arith.cmpi slt, %11, %73 : vector<256x1xi32>
    %cst_23 = arith.constant 0.000000e+00 : f32
    %75 = vector.shape_cast %74 : vector<256x1xi1> to vector<256x1xi1>
    %76 = vector.broadcast %75 : vector<256x1xi1> to vector<256x128xi1>
    %77 = vector.broadcast %cst_23 : f32 to vector<256x128xf32>
    %78 = arith.select %76, %72, %77 : vector<256x128xi1>, vector<256x128xf32>
    %79 = arith.truncf %78 : vector<256x128xf32> to vector<256x128xbf16>
    %c239_i32 = arith.constant 239 : i32
    %80 = tpu.dynamic_rotate %8 by %c239_i32 dim 0 : vector<256x128xf32>, i32 -> vector<256x128xf32>
    %c240_i32_24 = arith.constant 240 : i32
    %81 = vector.broadcast %c240_i32_24 : i32 to vector<256x1xi32>
    %82 = arith.cmpi slt, %11, %81 : vector<256x1xi32>
    %c14_i32_25 = arith.constant 14 : i32
    %83 = vector.broadcast %c14_i32_25 : i32 to vector<256x1xi32>
    %84 = arith.cmpi sle, %13, %83 : vector<256x1xi32>
    %85 = arith.andi %82, %84 : vector<256x1xi1>
    %cst_26 = arith.constant 0.000000e+00 : f32
    %86 = vector.shape_cast %85 : vector<256x1xi1> to vector<256x1xi1>
    %87 = vector.broadcast %86 : vector<256x1xi1> to vector<256x128xi1>
    %88 = vector.broadcast %cst_26 : f32 to vector<256x128xf32>
    %89 = arith.select %87, %80, %88 : vector<256x128xi1>, vector<256x128xf32>
    %90 = arith.truncf %89 : vector<256x128xf32> to vector<256x128xbf16>
    %91 = tpu.concatenate %24, %32, %43, %51, %52, %60, %71, %79, %90 in 1 : vector<256x128xbf16>, vector<256x128xbf16>, vector<256x128xbf16>, vector<256x128xbf16>, vector<256x128xbf16>, vector<256x128xbf16>, vector<256x128xbf16>, vector<256x128xbf16>, vector<256x128xbf16> -> vector<256x1152xbf16>
    %c0_27 = arith.constant 0 : index
    %c0_28 = arith.constant 0 : index
    %92 = vector.load %arg4[%c0_27, %c0_28] : memref<1152x128xbf16, #tpu.memory_space<vmem>>, vector<1152x128xbf16>
    %cst_29 = arith.constant dense<0.000000e+00> : vector<256x128xf32>
    %93 = tpu.matmul %91, %92, %cst_29 {dimension_numbers = #tpu.dot_dimension_numbers<[1], [0], [0], [1], [0, 0, 1, 1], [], []>} : vector<256x1152xbf16>, vector<1152x128xbf16>, vector<256x128xf32> -> vector<256x128xf32>
    %c0_30 = arith.constant 0 : index
    %c0_31 = arith.constant 0 : index
    %94 = vector.load %arg5[%c0_30, %c0_31] : memref<1x128xf32, #tpu.memory_space<vmem>>, vector<1x128xf32>
    %95 = vector.broadcast %94 : vector<1x128xf32> to vector<256x128xf32>
    %96 = arith.addf %93, %95 : vector<256x128xf32>
    %cst_32 = arith.constant 0.000000e+00 : f32
    %97 = vector.broadcast %cst_32 : f32 to vector<256x128xf32>
    %98 = arith.maximumf %96, %97 : vector<256x128xf32>
    %99 = arith.truncf %98 : vector<256x128xf32> to vector<256x128xbf16>
    %c0_33 = arith.constant 0 : index
    %c0_34 = arith.constant 0 : index
    %100 = vector.load %arg6[%c0_33, %c0_34] : memref<128x128xbf16, #tpu.memory_space<vmem>>, vector<128x128xbf16>
    %cst_35 = arith.constant dense<0.000000e+00> : vector<256x128xf32>
    %101 = tpu.matmul %99, %100, %cst_35 {dimension_numbers = #tpu.dot_dimension_numbers<[1], [0], [0], [1], [0, 0, 1, 1], [], []>} : vector<256x128xbf16>, vector<128x128xbf16>, vector<256x128xf32> -> vector<256x128xf32>
    %c0_36 = arith.constant 0 : index
    %c0_37 = arith.constant 0 : index
    %102 = vector.load %arg7[%c0_36, %c0_37] : memref<1x128xf32, #tpu.memory_space<vmem>>, vector<1x128xf32>
    %103 = vector.broadcast %102 : vector<1x128xf32> to vector<256x128xf32>
    %104 = arith.addf %101, %103 : vector<256x128xf32>
    %105 = arith.addf %104, %0 : vector<256x128xf32>
    %cst_38 = arith.constant 0.000000e+00 : f32
    %106 = vector.broadcast %cst_38 : f32 to vector<256x128xf32>
    %107 = arith.maximumf %105, %106 : vector<256x128xf32>
    %c0_39 = arith.constant 0 : index
    %c0_40 = arith.constant 0 : index
    %108 = vector.load %arg8[%c0_39, %c0_40] : memref<256x128xf32, #tpu.memory_space<vmem>>, vector<256x128xf32>
    tpu.vector_store %arg8[%c0_39, %c0_40], %107 {strides = array<i32>} : memref<256x128xf32, #tpu.memory_space<vmem>>, vector<256x128xf32>,
    return
  }
  func.func @transform_0(%arg0: i32) -> (i32, i32) {
    %c0_i32 = arith.constant 0 : i32
    %c0_i32_0 = arith.constant 0 : i32
    return %arg0, %c0_i32 : i32, i32
  }
  func.func @transform_1(%arg0: i32) -> (i32, i32) {
    %c0_i32 = arith.constant 0 : i32
    %c0_i32_0 = arith.constant 0 : i32
    %c0_i32_1 = arith.constant 0 : i32
    return %c0_i32, %c0_i32_0 : i32, i32
  }
  func.func @transform_2(%arg0: i32) -> (i32, i32) {
    %c0_i32 = arith.constant 0 : i32
    %c0_i32_0 = arith.constant 0 : i32
    %c0_i32_1 = arith.constant 0 : i32
    return %c0_i32, %c0_i32_0 : i32, i32
  }
  func.func @transform_3(%arg0: i32) -> (i32, i32) {
    %c0_i32 = arith.constant 0 : i32
    %c0_i32_0 = arith.constant 0 : i32
    %c0_i32_1 = arith.constant 0 : i32
    return %c0_i32, %c0_i32_0 : i32, i32
  }
  func.func @transform_4(%arg0: i32) -> (i32, i32) {
    %c0_i32 = arith.constant 0 : i32
    %c0_i32_0 = arith.constant 0 : i32
    %c0_i32_1 = arith.constant 0 : i32
    return %c0_i32, %c0_i32_0 : i32, i32
  }
  func.func @transform_5(%arg0: i32) -> (i32, i32) {
    %c0_i32 = arith.constant 0 : i32
    %c0_i32_0 = arith.constant 0 : i32
    %c0_i32_1 = arith.constant 0 : i32
    return %c0_i32, %c0_i32_0 : i32, i32
  }
  func.func @transform_6(%arg0: i32) -> (i32, i32) {
    %c0_i32 = arith.constant 0 : i32
    %c0_i32_0 = arith.constant 0 : i32
    %c0_i32_1 = arith.constant 0 : i32
    return %c0_i32, %c0_i32_0 : i32, i32
  }
  func.func @transform_7(%arg0: i32) -> (i32, i32) {
    %c0_i32 = arith.constant 0 : i32
    %c0_i32_0 = arith.constant 0 : i32
    return %arg0, %c0_i32 : i32, i32
  }
}

</mosaic_0001>

<llo_original>
// kernel: block_forward_nhwc.1
$region0: #{block_forward_nhwc.1}
  #allocation0 [shape = 'u32[]', space=smem, size = 0x4, offset = 0x4, fixed_abs, tag = 'smem constant byte address 0x4 - core index']
  #allocation1 [shape = 'u32[144,128]{1,0:T(1,128)}', space=vmem, size = 0x12000, scoped, tag = 'internal scratch']
  %s0 = inlined_call_operand.vmem [shape: f32[512,128], index: 0, kind: input, shape index: {}]
  %s1 = inlined_call_operand.vmem [shape: bf16[128,128], index: 1, kind: input, shape index: {}]
  %s2 = inlined_call_operand.vmem [shape: f32[1,128], index: 2, kind: input, shape index: {}]
  %s3 = inlined_call_operand.vmem [shape: bf16[1152,128], index: 3, kind: input, shape index: {}]
  %s4 = inlined_call_operand.vmem [shape: f32[1,128], index: 4, kind: input, shape index: {}]
  %s5 = inlined_call_operand.vmem [shape: bf16[128,128], index: 5, kind: input, shape index: {}]
  %s6 = inlined_call_operand.vmem [shape: f32[1,128], index: 6, kind: input, shape index: {}]
  %s7 = inlined_call_operand.hbm [shape: f32[512,128], index: 7, kind: output, shape index: {}]
  %s8 = sld [smem:[#allocation0]]
  $region61: #{block_forward_nhwc.1} parent=0
    _
  %s10 = ssub.s32 1, %s8
  %s11 = scalar_select 0, %s10, %s8
  $region1: #{block_forward_nhwc.1} parent=0
    #allocation2 [shape = 'u8[262144]{0}', space=vmem, size = 0x40000, scoped, tag = 'output window, operand 0']
    #allocation3 [shape = 's32[2]{0}', space=sflag, size = 0x8, scoped, tag = 'scoped memory for block_forward_nhwc.1']
    %12 = vsyncpa [#allocation3], 0
    %s13 = scalar_lea.sflag [#allocation3], 1
    %14 = vsyncpa %s13, 0
    loop: start=0, step=1, limit=4
    $region2: #{block_forward_nhwc.1} parent=1 // loop_pre_header
      _
    $region3: #{block_forward_nhwc.1} parent=1 // loop_header
      %s16 = sphi 0, %s20
      %p17 = scmp.ge.s32.totalorder %s16, 4
      %s26 = sphi 0, %s28
      %s29 = sphi 0, %s26
      %s30 = sphi 0, %s29
      %s46 = sphi 0, %s30
      %s50 = sphi 0, %s50
      %s52 = sphi 0, %s50
      %s53 = sphi 0, %s52
      %s67 = sphi 0, %s53
      %s71 = sphi 0, %s71
      %s73 = sphi 0, %s71
      %s74 = sphi 0, %s73
      %s88 = sphi 0, %s74
      %s92 = sphi 0, %s92
      %s94 = sphi 0, %s92
      %s95 = sphi 0, %s94
      %s109 = sphi 0, %s95
      %s113 = sphi 0, %s113
      %s115 = sphi 0, %s113
      %s116 = sphi 0, %s115
      %s130 = sphi 0, %s116
      %s134 = sphi 0, %s134
      %s136 = sphi 0, %s134
      %s137 = sphi 0, %s136
      %s151 = sphi 0, %s137
      %s155 = sphi 0, %s155
      %s157 = sphi 0, %s155
      %s158 = sphi 0, %s157
      %s172 = sphi 0, %s158
      %s178 = sphi 0, %s180
      %s181 = sphi 0, %s178
      %s182 = sphi 0, %s181
      %s198 = sphi 0, %s182
    $region4: #{block_forward_nhwc.1} parent=1 // loop_header_branch
      %19 = sbr.rel (%p17) target = $region8
    $region5: #{block_forward_nhwc.1} parent=1 // loop_body
      %s21 = ssub.s32 %s16, 1
      %s22 = ssub.s32 %s16, 2
      %s23 = sadd.s32 %s16, 1
      %s24 = ssub.s32 %s16, %s23
      %p25 = scmp.eq.s32.totalorder %s24, 0
      %s27 = sadd.s32 %s26, 1
      %s28 = scalar_select %p25, %s26, %s27
      %p31 = pneg %p25
      %p32 = scmp.eq.s32.totalorder %s16, 1
      %p33 = por %p31, %p32
      %p34 = scmp.ne.s32.totalorder %s26, %s29
      %p35 = scmp.eq.s32.totalorder %s16, 0
      %p36 = por %p34, %p35
      %p37 = scmp.ne.s32.totalorder %s26, %s29
      %p38 = scmp.eq.s32.totalorder %s21, 1
      %p39 = por %p37, %p38
      %p40 = scmp.ne.s32.totalorder %s29, %s30
      %p41 = scmp.eq.s32.totalorder %s21, 0
      %p42 = por %p40, %p41
      %p43 = scmp.ne.s32.totalorder %s29, %s30
      %p44 = scmp.eq.s32.totalorder %s22, 1
      %p45 = por %p43, %p44
      %p47 = scmp.ne.s32.totalorder %s30, %s46
      %p48 = scmp.eq.s32.totalorder %s22, 0
      %p49 = por %p47, %p48
      %s51 = sadd.s32 %s50, 1
      %p54 = scmp.eq.s32.totalorder %s16, 1
      %p55 = scmp.ne.s32.totalorder %s50, %s52
      %p56 = scmp.eq.s32.totalorder %s16, 0
      %p57 = por %p55, %p56
      %p58 = scmp.ne.s32.totalorder %s50, %s52
      %p59 = scmp.eq.s32.totalorder %s21, 1
      %p60 = por %p58, %p59
      %p61 = scmp.ne.s32.totalorder %s52, %s53
      %p62 = scmp.eq.s32.totalorder %s21, 0
      %p63 = por %p61, %p62
      %p64 = scmp.ne.s32.totalorder %s52, %s53
      %p65 = scmp.eq.s32.totalorder %s22, 1
      %p66 = por %p64, %p65
      %p68 = scmp.ne.s32.totalorder %s53, %s67
      %p69 = scmp.eq.s32.totalorder %s22, 0
      %p70 = por %p68, %p69
      %s72 = sadd.s32 %s71, 1
      %p75 = scmp.eq.s32.totalorder %s16, 1
      %p76 = scmp.ne.s32.totalorder %s71, %s73
      %p77 = scmp.eq.s32.totalorder %s16, 0
      %p78 = por %p76, %p77
      %p79 = scmp.ne.s32.totalorder %s71, %s73
      %p80 = scmp.eq.s32.totalorder %s21, 1
      %p81 = por %p79, %p80
      %p82 = scmp.ne.s32.totalorder %s73, %s74
      %p83 = scmp.eq.s32.totalorder %s21, 0
      %p84 = por %p82, %p83
      %p85 = scmp.ne.s32.totalorder %s73, %s74
      %p86 = scmp.eq.s32.totalorder %s22, 1
      %p87 = por %p85, %p86
      %p89 = scmp.ne.s32.totalorder %s74, %s88
      %p90 = scmp.eq.s32.totalorder %s22, 0
      %p91 = por %p89, %p90
      %s93 = sadd.s32 %s92, 1
      %p96 = scmp.eq.s32.totalorder %s16, 1
      %p97 = scmp.ne.s32.totalorder %s92, %s94
      %p98 = scmp.eq.s32.totalorder %s16, 0
      %p99 = por %p97, %p98
      %p100 = scmp.ne.s32.totalorder %s92, %s94
      %p101 = scmp.eq.s32.totalorder %s21, 1
      %p102 = por %p100, %p101
      %p103 = scmp.ne.s32.totalorder %s94, %s95
      %p104 = scmp.eq.s32.totalorder %s21, 0
      %p105 = por %p103, %p104
      %p106 = scmp.ne.s32.totalorder %s94, %s95
      %p107 = scmp.eq.s32.totalorder %s22, 1
      %p108 = por %p106, %p107
      %p110 = scmp.ne.s32.totalorder %s95, %s109
      %p111 = scmp.eq.s32.totalorder %s22, 0
      %p112 = por %p110, %p111
      %s114 = sadd.s32 %s113, 1
      %p117 = scmp.eq.s32.totalorder %s16, 1
      %p118 = scmp.ne.s32.totalorder %s113, %s115
      %p119 = scmp.eq.s32.totalorder %s16, 0
      %p120 = por %p118, %p119
      %p121 = scmp.ne.s32.totalorder %s113, %s115
      %p122 = scmp.eq.s32.totalorder %s21, 1
      %p123 = por %p121, %p122
      %p124 = scmp.ne.s32.totalorder %s115, %s116
      %p125 = scmp.eq.s32.totalorder %s21, 0
      %p126 = por %p124, %p125
      %p127 = scmp.ne.s32.totalorder %s115, %s116
      %p128 = scmp.eq.s32.totalorder %s22, 1
      %p129 = por %p127, %p128
      %p131 = scmp.ne.s32.totalorder %s116, %s130
      %p132 = scmp.eq.s32.totalorder %s22, 0
      %p133 = por %p131, %p132
      %s135 = sadd.s32 %s134, 1
      %p138 = scmp.eq.s32.totalorder %s16, 1
      %p139 = scmp.ne.s32.totalorder %s134, %s136
      %p140 = scmp.eq.s32.totalorder %s16, 0
      %p141 = por %p139, %p140
      %p142 = scmp.ne.s32.totalorder %s134, %s136
      %p143 = scmp.eq.s32.totalorder %s21, 1
      %p144 = por %p142, %p143
      %p145 = scmp.ne.s32.totalorder %s136, %s137
      %p146 = scmp.eq.s32.totalorder %s21, 0
      %p147 = por %p145, %p146
      %p148 = scmp.ne.s32.totalorder %s136, %s137
      %p149 = scmp.eq.s32.totalorder %s22, 1
      %p150 = por %p148, %p149
      %p152 = scmp.ne.s32.totalorder %s137, %s151
      %p153 = scmp.eq.s32.totalorder %s22, 0
      %p154 = por %p152, %p153
      %s156 = sadd.s32 %s155, 1
      %p159 = scmp.eq.s32.totalorder %s16, 1
      %p160 = scmp.ne.s32.totalorder %s155, %s157
      %p161 = scmp.eq.s32.totalorder %s16, 0
      %p162 = por %p160, %p161
      %p163 = scmp.ne.s32.totalorder %s155, %s157
      %p164 = scmp.eq.s32.totalorder %s21, 1
      %p165 = por %p163, %p164
      %p166 = scmp.ne.s32.totalorder %s157, %s158
      %p167 = scmp.eq.s32.totalorder %s21, 0
      %p168 = por %p166, %p167
      %p169 = scmp.ne.s32.totalorder %s157, %s158
      %p170 = scmp.eq.s32.totalorder %s22, 1
      %p171 = por %p169, %p170
      %p173 = scmp.ne.s32.totalorder %s158, %s172
      %p174 = scmp.eq.s32.totalorder %s22, 0
      %p175 = por %p173, %p174
      %s176 = ssub.s32 %s16, %s23
      %p177 = scmp.eq.s32.totalorder %s176, 0
      %s179 = sadd.s32 %s178, 1
      %s180 = scalar_select %p177, %s178, %s179
      %p183 = pneg %p177
      %p184 = scmp.eq.s32.totalorder %s16, 1
      %p185 = por %p183, %p184
      %p186 = scmp.ne.s32.totalorder %s178, %s181
      %p187 = scmp.eq.s32.totalorder %s16, 0
      %p188 = por %p186, %p187
      %p189 = scmp.ne.s32.totalorder %s178, %s181
      %p190 = scmp.eq.s32.totalorder %s21, 1
      %p191 = por %p189, %p190
      %p192 = scmp.ne.s32.totalorder %s181, %s182
      %p193 = scmp.eq.s32.totalorder %s21, 0
      %p194 = por %p192, %p193
      %p195 = scmp.ne.s32.totalorder %s181, %s182
      %p196 = scmp.eq.s32.totalorder %s22, 1
      %p197 = por %p195, %p196
      %p199 = scmp.ne.s32.totalorder %s182, %s198
      %p200 = scmp.eq.s32.totalorder %s22, 0
      %p201 = por %p199, %p200
      %p202 = scmp.le.s32.totalorder 1, %s16
      %p203 = scmp.lt.s32.totalorder %s16, 3
      %p204 = pnand %p202, %p203
      %p205 = pneg %p204
      // Predicated region
      $region9: #{block_forward_nhwc.1} parent=5 // pred_check
        _
      $region10: #{block_forward_nhwc.1} parent=5 // pred_check_branch
        %207 = sbr.rel (%p204) target = $region12
      $region11: #{block_forward_nhwc.1} parent=5 // pred_region
        %s208 = ssub.s32 %s16, 1
        // Predicated region
        $region13: #{block_forward_nhwc.1} parent=11 // pred_check
          %p209 = pneg %p63
        $region14: #{block_forward_nhwc.1} parent=11 // pred_check_branch
          %211 = sbr.rel (%p209) target = $region16
        $region15: #{block_forward_nhwc.1} parent=11 // pred_region
          _
        $region16: #{block_forward_nhwc.1} parent=11 // pred_fallthru
          _
        // Predicated region
        $region17: #{block_forward_nhwc.1} parent=11 // pred_check
          %p212 = pneg %p84
        $region18: #{block_forward_nhwc.1} parent=11 // pred_check_branch
          %214 = sbr.rel (%p212) target = $region20
        $region19: #{block_forward_nhwc.1} parent=11 // pred_region
          _
        $region20: #{block_forward_nhwc.1} parent=11 // pred_fallthru
          _
        // Predicated region
        $region21: #{block_forward_nhwc.1} parent=11 // pred_check
          %p215 = pneg %p105
        $region22: #{block_forward_nhwc.1} parent=11 // pred_check_branch
          %217 = sbr.rel (%p215) target = $region24
        $region23: #{block_forward_nhwc.1} parent=11 // pred_region
          _
        $region24: #{block_forward_nhwc.1} parent=11 // pred_fallthru
          _
        // Predicated region
        $region25: #{block_forward_nhwc.1} parent=11 // pred_check
          %p218 = pneg %p126
        $region26: #{block_forward_nhwc.1} parent=11 // pred_check_branch
          %220 = sbr.rel (%p218) target = $region28
        $region27: #{block_forward_nhwc.1} parent=11 // pred_region
          _
        $region28: #{block_forward_nhwc.1} parent=11 // pred_fallthru
          _
        // Predicated region
        $region29: #{block_forward_nhwc.1} parent=11 // pred_check
          %p221 = pneg %p147
        $region30: #{block_forward_nhwc.1} parent=11 // pred_check_branch
          %223 = sbr.rel (%p221) target = $region32
        $region31: #{block_forward_nhwc.1} parent=11 // pred_region
          _
        $region32: #{block_forward_nhwc.1} parent=11 // pred_fallthru
          _
        // Predicated region
        $region33: #{block_forward_nhwc.1} parent=11 // pred_check
          %p224 = pneg %p168
        $region34: #{block_forward_nhwc.1} parent=11 // pred_check_branch
          %226 = sbr.rel (%p224) target = $region36
        $region35: #{block_forward_nhwc.1} parent=11 // pred_region
          _
        $region36: #{block_forward_nhwc.1} parent=11 // pred_fallthru
          _
      $region12: #{block_forward_nhwc.1} parent=5 // pred_fallthru
        _
      %p227 = scmp.lt.s32.totalorder %s16, 2
      // Predicated region
      $region37: #{block_forward_nhwc.1} parent=5 // pred_check
        %p228 = pneg %p227
      $region38: #{block_forward_nhwc.1} parent=5 // pred_check_branch
        %230 = sbr.rel (%p228) target = $region40
      $region39: #{block_forward_nhwc.1} parent=5 // pred_region
        // Predicated region
        $region41: #{block_forward_nhwc.1} parent=39 // pred_check
          %p231 = pneg %p36
        $region42: #{block_forward_nhwc.1} parent=39 // pred_check_branch
          %233 = sbr.rel (%p231) target = $region44
        $region43: #{block_forward_nhwc.1} parent=39 // pred_region
          %s234 = smul.u32 32, %s16
          %p235 = scmp.lt.s32.totalorder %s234, 63
          %s236 = scalar_select %p235, %s234, 63
          %s237 = smul.addr %s236, 8
          %s238 = scalar_lea.vmem %s0, %s237
          %s239 = smul.u32 32, %s16
        $region44: #{block_forward_nhwc.1} parent=39 // pred_fallthru
          _
      $region40: #{block_forward_nhwc.1} parent=5 // pred_fallthru
        _
      %p240 = scmp.le.s32.totalorder 1, %s16
      %p241 = scmp.lt.s32.totalorder %s16, 3
      %p242 = pnand %p240, %p241
      %p243 = pneg %p242
      // Predicated region
      $region45: #{block_forward_nhwc.1} parent=5 // pred_check
        _
      $region46: #{block_forward_nhwc.1} parent=5 // pred_check_branch
        %245 = sbr.rel (%p242) target = $region48
      $region47: #{block_forward_nhwc.1} parent=5 // pred_region
        %s246 = ssub.s32 %s16, 1
        %s247 = smul.u32 32, %s21
        %p248 = scmp.lt.s32.totalorder %s247, 63
        %s249 = scalar_select %p248, %s247, 63
        %s250 = smul.addr %s249, 8
        %s251 = scalar_lea.vmem %s0, %s250
        %p252 = pneg %p42
        %p253 = pneg %p39
        %p254 = pneg %p63
        %p255 = pneg %p60
        %p256 = pneg %p84
        %p257 = pneg %p81
        %p258 = pneg %p105
        %p259 = pneg %p102
        %p260 = pneg %p126
        %p261 = pneg %p123
        %p262 = pneg %p147
        %p263 = pneg %p144
        %p264 = pneg %p168
        %p265 = pneg %p165
        %p266 = pneg %p194
        %p267 = pneg %p191
        %s268 = sand.u32 %s181, 1
        %s269 = scalar_lea.sflag [#allocation3], %s268
        %s270 = sand.u32 %s181, 1
        %s271 = smul.addr %s270, 256
        %s272 = scalar_lea.vmem [#allocation2], %s271
        %s273 = smul.u32 32, %s21
        %p274 = scmp.lt.s32.totalorder %s273, 63
        %s275 = scalar_select %p274, %s273, 63
        %s276 = smul.addr %s275, 8
        %s277 = scalar_lea.vmem %s0, %s276
        %s278 = smul.u32 32, %s21
        %s279 = smul.u32 32, %s21
        %v281 = vld [vmem:[%s277] sm:$0xff]
        %v282 = vld [vmem:[%s277 + $0x8] sm:$0xff]
        %v283 = vld [vmem:[%s277 + $0x10] sm:$0xff]
        %v284 = vld [vmem:[%s277 + $0x18] sm:$0xff]
        %v285 = vld [vmem:[%s277 + $0x20] sm:$0xff]
        %v286 = vld [vmem:[%s277 + $0x28] sm:$0xff]
        %v287 = vld [vmem:[%s277 + $0x30] sm:$0xff]
        %v288 = vld [vmem:[%s277 + $0x38] sm:$0xff]
        %v289 = vld [vmem:[%s277 + $0x40] sm:$0xff]
        %v290 = vld [vmem:[%s277 + $0x48] sm:$0xff]
        %v291 = vld [vmem:[%s277 + $0x50] sm:$0xff]
        %v292 = vld [vmem:[%s277 + $0x58] sm:$0xff]
        %v293 = vld [vmem:[%s277 + $0x60] sm:$0xff]
        %v294 = vld [vmem:[%s277 + $0x68] sm:$0xff]
        %v295 = vld [vmem:[%s277 + $0x70] sm:$0xff]
        %v296 = vld [vmem:[%s277 + $0x78] sm:$0xff]
        %v297 = vld [vmem:[%s277 + $0x80] sm:$0xff]
        %v298 = vld [vmem:[%s277 + $0x88] sm:$0xff]
        %v299 = vld [vmem:[%s277 + $0x90] sm:$0xff]
        %v300 = vld [vmem:[%s277 + $0x98] sm:$0xff]
        %v301 = vld [vmem:[%s277 + $0xa0] sm:$0xff]
        %v302 = vld [vmem:[%s277 + $0xa8] sm:$0xff]
        %v303 = vld [vmem:[%s277 + $0xb0] sm:$0xff]
        %v304 = vld [vmem:[%s277 + $0xb8] sm:$0xff]
        %v305 = vld [vmem:[%s277 + $0xc0] sm:$0xff]
        %v306 = vld [vmem:[%s277 + $0xc8] sm:$0xff]
        %v307 = vld [vmem:[%s277 + $0xd0] sm:$0xff]
        %v308 = vld [vmem:[%s277 + $0xd8] sm:$0xff]
        %v309 = vld [vmem:[%s277 + $0xe0] sm:$0xff]
        %v310 = vld [vmem:[%s277 + $0xe8] sm:$0xff]
        %v311 = vld [vmem:[%s277 + $0xf0] sm:$0xff]
        %v312 = vld [vmem:[%s277 + $0xf8] sm:$0xff]
        %v313 = vpack.c.bf16 %v282, %v281
        %v314 = vpack.c.bf16 %v284, %v283
        %v315 = vpack.c.bf16 %v286, %v285
        %v316 = vpack.c.bf16 %v288, %v287
        %v317 = vpack.c.bf16 %v290, %v289
        %v318 = vpack.c.bf16 %v292, %v291
        %v319 = vpack.c.bf16 %v294, %v293
        %v320 = vpack.c.bf16 %v296, %v295
        %v321 = vpack.c.bf16 %v298, %v297
        %v322 = vpack.c.bf16 %v300, %v299
        %v323 = vpack.c.bf16 %v302, %v301
        %v324 = vpack.c.bf16 %v304, %v303
        %v325 = vpack.c.bf16 %v306, %v305
        %v326 = vpack.c.bf16 %v308, %v307
        %v327 = vpack.c.bf16 %v310, %v309
        %v328 = vpack.c.bf16 %v312, %v311
        %v329 = vld [vmem:[%s1] sm:$0xf]
        %v330 = vld [vmem:[%s1 + $0x4] sm:$0xf]
        %v331 = vld [vmem:[%s1 + $0x8] sm:$0xf]
        %v332 = vld [vmem:[%s1 + $0xc] sm:$0xf]
        %v333 = vld [vmem:[%s1 + $0x10] sm:$0xf]
        %v334 = vld [vmem:[%s1 + $0x14] sm:$0xf]
        %v335 = vld [vmem:[%s1 + $0x18] sm:$0xf]
        %v336 = vld [vmem:[%s1 + $0x1c] sm:$0xf]
        %v337 = vld [vmem:[%s1 + $0x20] sm:$0xf]
        %v338 = vld [vmem:[%s1 + $0x24] sm:$0xf]
        %v339 = vld [vmem:[%s1 + $0x28] sm:$0xf]
        %v340 = vld [vmem:[%s1 + $0x2c] sm:$0xf]
        %v341 = vld [vmem:[%s1 + $0x30] sm:$0xf]
        %v342 = vld [vmem:[%s1 + $0x34] sm:$0xf]
        %v343 = vld [vmem:[%s1 + $0x38] sm:$0xf]
        %v344 = vld [vmem:[%s1 + $0x3c] sm:$0xf]
        %v345 = vld [vmem:[%s2] sm:$0x1]
        %v347 = vlaneseq
        %v348 = vshrl.u32 %v347, 7
        %v349 = vsub.s32 0, %v348
        %v350 = vrot.slane %v345, %v349
        %v368 = vunpack.c.l.b16 %v329
        %v369 = vunpack.c.l.b16 %v330
        %v370 = vunpack.c.l.b16 %v331
        %v371 = vunpack.c.l.b16 %v332
        %v372 = vunpack.c.l.b16 %v333
        %v373 = vunpack.c.l.b16 %v334
        %v374 = vunpack.c.l.b16 %v335
        %v375 = vunpack.c.l.b16 %v336
        %v376 = vunpack.c.l.b16 %v337
        %v377 = vunpack.c.l.b16 %v338
        %v378 = vunpack.c.l.b16 %v339
        %v379 = vunpack.c.l.b16 %v340
        %v380 = vunpack.c.l.b16 %v341
        %v381 = vunpack.c.l.b16 %v342
        %v382 = vunpack.c.l.b16 %v343
        %v383 = vunpack.c.l.b16 %v344
        %v384 = vpack.c.b16 %v369, %v368
        %v385 = vpack.c.b16 %v371, %v370
        %v386 = vpack.c.b16 %v373, %v372
        %v387 = vpack.c.b16 %v375, %v374
        %v388 = vpack.c.b16 %v377, %v376
        %v389 = vpack.c.b16 %v379, %v378
        %v390 = vpack.c.b16 %v381, %v380
        %v391 = vpack.c.b16 %v383, %v382
        %400 = vmatprep.subr.bf16.mxu0 0
        %401 = vmatpush1.bf16.msra.mxu0 %v384
        %402 = vmatprep.subr.bf16.mxu0 0
        %403 = vmatpush1.bf16.msra.mxu0 %v385
        %404 = vmatprep.subr.bf16.mxu0 0
        %405 = vmatpush1.bf16.msra.mxu0 %v386
        %406 = vmatprep.subr.bf16.mxu0 0
        %407 = vmatpush1.bf16.msra.mxu0 %v387
        %408 = vmatprep.subr.bf16.mxu0 0
        %409 = vmatpush1.bf16.msra.mxu0 %v388
        %410 = vmatprep.subr.bf16.mxu0 0
        %411 = vmatpush1.bf16.msra.mxu0 %v389
        %412 = vmatprep.subr.bf16.mxu0 0
        %413 = vmatpush1.bf16.msra.mxu0 %v390
        %414 = vmatprep.subr.bf16.mxu0 0
        %415 = vmatpush1.bf16.msra.mxu0 %v391
        %416 = vmatprep.subr.bf16.mxu0 0
        %417 = vmatpush1.bf16.msra.mxu0 0
        %418 = vmatprep.subr.bf16.mxu0 0
        %419 = vmatpush1.bf16.msra.mxu0 0
        %420 = vmatprep.subr.bf16.mxu0 0
        %421 = vmatpush1.bf16.msra.mxu0 0
        %422 = vmatprep.subr.bf16.mxu0 0
        %423 = vmatpush1.bf16.msra.mxu0 0
        %424 = vmatprep.subr.bf16.mxu0 0
        %425 = vmatpush1.bf16.msra.mxu0 0
        %426 = vmatprep.subr.bf16.mxu0 0
        %427 = vmatpush1.bf16.msra.mxu0 0
        %428 = vmatprep.subr.bf16.mxu0 0
        %429 = vmatpush1.bf16.msra.mxu0 0
        %430 = vmatprep.subr.bf16.mxu0 0
        %431 = vmatpush1.bf16.msra.mxu0 0
        %432 = vmatprep.mubr.bf16.mxu0 0
        %433 = vmatmul.mubr.bf16.gmra.mrb[0].mxu0 %v313
        %v434 = vpop.f32.mrb[0].mxu0
        %v435 = vadd.f32 %v350, %v434
        %v436 = vpop.f32.mrb[0].mxu0
        %v437 = vpop.f32.mrb[0].mxu0
        %v438 = vadd.f32 %v350, %v437
        %v439 = vpop.f32.mrb[0].mxu0
        %440 = vmatprep.mubr.bf16.mxu0 0
        %441 = vmatmul.mubr.bf16.gmra.mrb[0].mxu0 %v314
        %v442 = vpop.f32.mrb[0].mxu0
        %v443 = vadd.f32 %v350, %v442
        %v444 = vpop.f32.mrb[0].mxu0
        %v445 = vpop.f32.mrb[0].mxu0
        %v446 = vadd.f32 %v350, %v445
        %v447 = vpop.f32.mrb[0].mxu0
        %448 = vmatprep.mubr.bf16.mxu0 0
        %449 = vmatmul.mubr.bf16.gmra.mrb[0].mxu0 %v315
        %v450 = vpop.f32.mrb[0].mxu0
        %v451 = vadd.f32 %v350, %v450
        %v452 = vpop.f32.mrb[0].mxu0
        %v453 = vpop.f32.mrb[0].mxu0
        %v454 = vadd.f32 %v350, %v453
        %v455 = vpop.f32.mrb[0].mxu0
        %456 = vmatprep.mubr.bf16.mxu0 0
        %457 = vmatmul.mubr.bf16.gmra.mrb[0].mxu0 %v316
        %v458 = vpop.f32.mrb[0].mxu0
        %v459 = vadd.f32 %v350, %v458
        %v460 = vpop.f32.mrb[0].mxu0
        %v461 = vpop.f32.mrb[0].mxu0
        %v462 = vadd.f32 %v350, %v461
        %v463 = vpop.f32.mrb[0].mxu0
        %464 = vmatprep.mubr.bf16.mxu0 0
        %465 = vmatmul.mubr.bf16.gmra.mrb[0].mxu0 %v317
        %v466 = vpop.f32.mrb[0].mxu0
        %v467 = vadd.f32 %v350, %v466
        %v468 = vpop.f32.mrb[0].mxu0
        %v469 = vpop.f32.mrb[0].mxu0
        %v470 = vadd.f32 %v350, %v469
        %v471 = vpop.f32.mrb[0].mxu0
        %472 = vmatprep.mubr.bf16.mxu0 0
        %473 = vmatmul.mubr.bf16.gmra.mrb[0].mxu0 %v318
        %v474 = vpop.f32.mrb[0].mxu0
        %v475 = vadd.f32 %v350, %v474
        %v476 = vpop.f32.mrb[0].mxu0
        %v477 = vpop.f32.mrb[0].mxu0
        %v478 = vadd.f32 %v350, %v477
        %v479 = vpop.f32.mrb[0].mxu0
        %480 = vmatprep.mubr.bf16.mxu0 0
        %481 = vmatmul.mubr.bf16.gmra.mrb[0].mxu0 %v319
        %v482 = vpop.f32.mrb[0].mxu0
        %v483 = vadd.f32 %v350, %v482
        %v484 = vpop.f32.mrb[0].mxu0
        %v485 = vpop.f32.mrb[0].mxu0
        %v486 = vadd.f32 %v350, %v485
        %v487 = vpop.f32.mrb[0].mxu0
        %488 = vmatprep.mubr.bf16.mxu0 0
        %489 = vmatmul.mubr.bf16.gmra.mrb[0].mxu0 %v320
        %v490 = vpop.f32.mrb[0].mxu0
        %v491 = vadd.f32 %v350, %v490
        %v492 = vpop.f32.mrb[0].mxu0
        %v493 = vpop.f32.mrb[0].mxu0
        %v494 = vadd.f32 %v350, %v493
        %v495 = vpop.f32.mrb[0].mxu0
        %496 = vmatprep.mubr.bf16.mxu0 0
        %497 = vmatmul.mubr.bf16.gmra.mrb[0].mxu0 %v321
        %v498 = vpop.f32.mrb[0].mxu0
        %v499 = vadd.f32 %v350, %v498
        %v500 = vpop.f32.mrb[0].mxu0
        %v501 = vpop.f32.mrb[0].mxu0
        %v502 = vadd.f32 %v350, %v501
        %v503 = vpop.f32.mrb[0].mxu0
        %504 = vmatprep.mubr.bf16.mxu0 0
        %505 = vmatmul.mubr.bf16.gmra.mrb[0].mxu0 %v322
        %v506 = vpop.f32.mrb[0].mxu0
        %v507 = vadd.f32 %v350, %v506
        %v508 = vpop.f32.mrb[0].mxu0
        %v509 = vpop.f32.mrb[0].mxu0
        %v510 = vadd.f32 %v350, %v509
        %v511 = vpop.f32.mrb[0].mxu0
        %512 = vmatprep.mubr.bf16.mxu0 0
        %513 = vmatmul.mubr.bf16.gmra.mrb[0].mxu0 %v323
        %v514 = vpop.f32.mrb[0].mxu0
        %v515 = vadd.f32 %v350, %v514
        %v516 = vpop.f32.mrb[0].mxu0
        %v517 = vpop.f32.mrb[0].mxu0
        %v518 = vadd.f32 %v350, %v517
        %v519 = vpop.f32.mrb[0].mxu0
        %520 = vmatprep.mubr.bf16.mxu0 0
        %521 = vmatmul.mubr.bf16.gmra.mrb[0].mxu0 %v324
        %v522 = vpop.f32.mrb[0].mxu0
        %v523 = vadd.f32 %v350, %v522
        %v524 = vpop.f32.mrb[0].mxu0
        %v525 = vpop.f32.mrb[0].mxu0
        %v526 = vadd.f32 %v350, %v525
        %v527 = vpop.f32.mrb[0].mxu0
        %528 = vmatprep.mubr.bf16.mxu0 0
        %529 = vmatmul.mubr.bf16.gmra.mrb[0].mxu0 %v325
        %v530 = vpop.f32.mrb[0].mxu0
        %v531 = vadd.f32 %v350, %v530
        %v532 = vpop.f32.mrb[0].mxu0
        %v533 = vpop.f32.mrb[0].mxu0
        %v534 = vadd.f32 %v350, %v533
        %v535 = vpop.f32.mrb[0].mxu0
        %536 = vmatprep.mubr.bf16.mxu0 0
        %537 = vmatmul.mubr.bf16.gmra.mrb[0].mxu0 %v326
        %v538 = vpop.f32.mrb[0].mxu0
        %v539 = vadd.f32 %v350, %v538
        %v540 = vpop.f32.mrb[0].mxu0
        %v541 = vpop.f32.mrb[0].mxu0
        %v542 = vadd.f32 %v350, %v541
        %v543 = vpop.f32.mrb[0].mxu0
        %544 = vmatprep.mubr.bf16.mxu0 0
        %545 = vmatmul.mubr.bf16.gmra.mrb[0].mxu0 %v327
        %v546 = vpop.f32.mrb[0].mxu0
        %v547 = vadd.f32 %v350, %v546
        %v548 = vpop.f32.mrb[0].mxu0
        %v549 = vpop.f32.mrb[0].mxu0
        %v550 = vadd.f32 %v350, %v549
        %v551 = vpop.f32.mrb[0].mxu0
        %552 = vmatprep.mubr.bf16.mxu0 0
        %553 = vmatmul.mubr.bf16.gmra.mrb[0].mxu0 %v328
        %v554 = vpop.f32.mrb[0].mxu0
        %v555 = vadd.f32 %v350, %v554
        %v556 = vpop.f32.mrb[0].mxu0
        %v557 = vpop.f32.mrb[0].mxu0
        %v558 = vadd.f32 %v350, %v557
        %v559 = vpop.f32.mrb[0].mxu0
        %560 = vdwg.mxu0
        %v561 = vmax.f32 %v435, 0.0
        %v562 = vmax.f32 %v438, 0.0
        %v563 = vmax.f32 %v443, 0.0
        %v564 = vmax.f32 %v446, 0.0
        %v565 = vmax.f32 %v451, 0.0
        %v566 = vmax.f32 %v454, 0.0
        %v567 = vmax.f32 %v459, 0.0
        %v568 = vmax.f32 %v462, 0.0
        %v569 = vmax.f32 %v467, 0.0
        %v570 = vmax.f32 %v470, 0.0
        %v571 = vmax.f32 %v475, 0.0
        %v572 = vmax.f32 %v478, 0.0
        %v573 = vmax.f32 %v483, 0.0
        %v574 = vmax.f32 %v486, 0.0
        %v575 = vmax.f32 %v491, 0.0
        %v576 = vmax.f32 %v494, 0.0
        %v577 = vmax.f32 %v499, 0.0
        %v578 = vmax.f32 %v502, 0.0
        %v579 = vmax.f32 %v507, 0.0
        %v580 = vmax.f32 %v510, 0.0
        %v581 = vmax.f32 %v515, 0.0
        %v582 = vmax.f32 %v518, 0.0
        %v583 = vmax.f32 %v523, 0.0
        %v584 = vmax.f32 %v526, 0.0
        %v585 = vmax.f32 %v531, 0.0
        %v586 = vmax.f32 %v534, 0.0
        %v587 = vmax.f32 %v539, 0.0
        %v588 = vmax.f32 %v542, 0.0
        %v589 = vmax.f32 %v547, 0.0
        %v590 = vmax.f32 %v550, 0.0
        %v591 = vmax.f32 %v555, 0.0
        %v592 = vmax.f32 %v558, 0.0
        %v593 = vlaneseq
        %v594 = vshrl.u32 %v593, 7
        %v595 = vadd.s32 %v594, 8
        %v596 = vadd.s32 %v594, 16
        %v597 = vadd.s32 %v594, 24
        %v598 = vadd.s32 %v594, 32
        %v599 = vadd.s32 %v594, 40
        %v600 = vadd.s32 %v594, 48
        %v601 = vadd.s32 %v594, 56
        %v602 = vadd.s32 %v594, 64
        %v603 = vadd.s32 %v594, 72
        %v604 = vadd.s32 %v594, 80
        %v605 = vadd.s32 %v594, 88
        %v606 = vadd.s32 %v594, 96
        %v607 = vadd.s32 %v594, 104
        %v608 = vadd.s32 %v594, 112
        %v609 = vadd.s32 %v594, 120
        %v610 = vadd.s32 %v594, 128
        %v611 = vadd.s32 %v594, 136
        %v612 = vadd.s32 %v594, 144
        %v613 = vadd.s32 %v594, 152
        %v614 = vadd.s32 %v594, 160
        %v615 = vadd.s32 %v594, 168
        %v616 = vadd.s32 %v594, 176
        %v617 = vadd.s32 %v594, 184
        %v618 = vadd.s32 %v594, 192
        %v619 = vadd.s32 %v594, 200
        %v620 = vadd.s32 %v594, 208
        %v621 = vadd.s32 %v594, 216
        %v622 = vadd.s32 %v594, 224
        %v623 = vadd.s32 %v594, 232
        %v624 = vadd.s32 %v594, 240
        %v625 = vadd.s32 %v594, 248
        %v626 = vand.u32 %v594, 255
        %v627 = vand.u32 %v595, 255
        %v628 = vand.u32 %v596, 255
        %v629 = vand.u32 %v597, 255
        %v630 = vand.u32 %v598, 255
        %v631 = vand.u32 %v599, 255
        %v632 = vand.u32 %v600, 255
        %v633 = vand.u32 %v601, 255
        %v634 = vand.u32 %v602, 255
        %v635 = vand.u32 %v603, 255
        %v636 = vand.u32 %v604, 255
        %v637 = vand.u32 %v605, 255
        %v638 = vand.u32 %v606, 255
        %v639 = vand.u32 %v607, 255
        %v640 = vand.u32 %v608, 255
        %v641 = vand.u32 %v609, 255
        %v642 = vand.u32 %v610, 255
        %v643 = vand.u32 %v611, 255
        %v644 = vand.u32 %v612, 255
        %v645 = vand.u32 %v613, 255
        %v646 = vand.u32 %v614, 255
        %v647 = vand.u32 %v615, 255
        %v648 = vand.u32 %v616, 255
        %v649 = vand.u32 %v617, 255
        %v650 = vand.u32 %v618, 255
        %v651 = vand.u32 %v619, 255
        %v652 = vand.u32 %v620, 255
        %v653 = vand.u32 %v621, 255
        %v654 = vand.u32 %v622, 255
        %v655 = vand.u32 %v623, 255
        %v656 = vand.u32 %v624, 255
        %v657 = vand.u32 %v625, 255
        %v658 = vand.u32 %v626, 15
        %v659 = vand.u32 %v627, 15
        %v660 = vand.u32 %v628, 15
        %v661 = vand.u32 %v629, 15
        %v662 = vand.u32 %v630, 15
        %v663 = vand.u32 %v631, 15
        %v664 = vand.u32 %v632, 15
        %v665 = vand.u32 %v633, 15
        %v666 = vand.u32 %v634, 15
        %v667 = vand.u32 %v635, 15
        %v668 = vand.u32 %v636, 15
        %v669 = vand.u32 %v637, 15
        %v670 = vand.u32 %v638, 15
        %v671 = vand.u32 %v639, 15
        %v672 = vand.u32 %v640, 15
        %v673 = vand.u32 %v641, 15
        %v674 = vand.u32 %v642, 15
        %v675 = vand.u32 %v643, 15
        %v676 = vand.u32 %v644, 15
        %v677 = vand.u32 %v645, 15
        %v678 = vand.u32 %v646, 15
        %v679 = vand.u32 %v647, 15
        %v680 = vand.u32 %v648, 15
        %v681 = vand.u32 %v649, 15
        %v682 = vand.u32 %v650, 15
        %v683 = vand.u32 %v651, 15
        %v684 = vand.u32 %v652, 15
        %v685 = vand.u32 %v653, 15
        %v686 = vand.u32 %v654, 15
        %v687 = vand.u32 %v655, 15
        %v688 = vand.u32 %v656, 15
        %v689 = vand.u32 %v657, 15
        %v690 = vrot.slane %v561, 7
        %v691 = vrot.slane %v562, 7
        %v692 = vrot.slane %v563, 7
        %v693 = vrot.slane %v564, 7
        %v694 = vrot.slane %v565, 7
        %v695 = vrot.slane %v566, 7
        %v696 = vrot.slane %v567, 7
        %v697 = vrot.slane %v568, 7
        %v698 = vrot.slane %v569, 7
        %v699 = vrot.slane %v570, 7
        %v700 = vrot.slane %v571, 7
        %v701 = vrot.slane %v572, 7
        %v702 = vrot.slane %v573, 7
        %v703 = vrot.slane %v574, 7
        %v704 = vrot.slane %v575, 7
        %v705 = vrot.slane %v576, 7
        %v706 = vrot.slane %v577, 7
        %v707 = vrot.slane %v578, 7
        %v708 = vrot.slane %v579, 7
        %v709 = vrot.slane %v580, 7
        %v710 = vrot.slane %v581, 7
        %v711 = vrot.slane %v582, 7
        %v712 = vrot.slane %v583, 7
        %v713 = vrot.slane %v584, 7
        %v714 = vrot.slane %v585, 7
        %v715 = vrot.slane %v586, 7
        %v716 = vrot.slane %v587, 7
        %v717 = vrot.slane %v588, 7
        %v718 = vrot.slane %v589, 7
        %v719 = vrot.slane %v590, 7
        %v720 = vrot.slane %v591, 7
        %v721 = vrot.slane %v592, 7
        %vm722 = vcmp.lt.s32.totalorder %v594, 1
        %v723 = vsel %vm722, %v720, %v721
        %v724 = vsel %vm722, %v719, %v720
        %v725 = vsel %vm722, %v718, %v719
        %v726 = vsel %vm722, %v717, %v718
        %v727 = vsel %vm722, %v716, %v717
        %v728 = vsel %vm722, %v715, %v716
        %v729 = vsel %vm722, %v714, %v715
        %v730 = vsel %vm722, %v713, %v714
        %v731 = vsel %vm722, %v712, %v713
        %v732 = vsel %vm722, %v711, %v712
        %v733 = vsel %vm722, %v710, %v711
        %v734 = vsel %vm722, %v709, %v710
        %v735 = vsel %vm722, %v708, %v709
        %v736 = vsel %vm722, %v707, %v708
        %v737 = vsel %vm722, %v706, %v707
        %v738 = vsel %vm722, %v705, %v706
        %v739 = vsel %vm722, %v704, %v705
        %v740 = vsel %vm722, %v703, %v704
        %v741 = vsel %vm722, %v702, %v703
        %v742 = vsel %vm722, %v701, %v702
        %v743 = vsel %vm722, %v700, %v701
        %v744 = vsel %vm722, %v699, %v700
        %v745 = vsel %vm722, %v698, %v699
        %v746 = vsel %vm722, %v697, %v698
        %v747 = vsel %vm722, %v696, %v697
        %v748 = vsel %vm722, %v695, %v696
        %v749 = vsel %vm722, %v694, %v695
        %v750 = vsel %vm722, %v693, %v694
        %v751 = vsel %vm722, %v692, %v693
        %v752 = vsel %vm722, %v691, %v692
        %v753 = vsel %vm722, %v690, %v691
        %v754 = vsel %vm722, %v721, %v690
        %vm755 = vcmp.ge.s32.totalorder %v626, 16
        %vm756 = vcmp.ge.s32.totalorder %v627, 16
        %vm757 = vcmp.ge.s32.totalorder %v628, 16
        %vm758 = vcmp.ge.s32.totalorder %v629, 16
        %vm759 = vcmp.ge.s32.totalorder %v630, 16
        %vm760 = vcmp.ge.s32.totalorder %v631, 16
        %vm761 = vcmp.ge.s32.totalorder %v632, 16
        %vm762 = vcmp.ge.s32.totalorder %v633, 16
        %vm763 = vcmp.ge.s32.totalorder %v634, 16
        %vm764 = vcmp.ge.s32.totalorder %v635, 16
        %vm765 = vcmp.ge.s32.totalorder %v636, 16
        %vm766 = vcmp.ge.s32.totalorder %v637, 16
        %vm767 = vcmp.ge.s32.totalorder %v638, 16
        %vm768 = vcmp.ge.s32.totalorder %v639, 16
        %vm769 = vcmp.ge.s32.totalorder %v640, 16
        %vm770 = vcmp.ge.s32.totalorder %v641, 16
        %vm771 = vcmp.ge.s32.totalorder %v642, 16
        %vm772 = vcmp.ge.s32.totalorder %v643, 16
        %vm773 = vcmp.ge.s32.totalorder %v644, 16
        %vm774 = vcmp.ge.s32.totalorder %v645, 16
        %vm775 = vcmp.ge.s32.totalorder %v646, 16
        %vm776 = vcmp.ge.s32.totalorder %v647, 16
        %vm777 = vcmp.ge.s32.totalorder %v648, 16
        %vm778 = vcmp.ge.s32.totalorder %v649, 16
        %vm779 = vcmp.ge.s32.totalorder %v650, 16
        %vm780 = vcmp.ge.s32.totalorder %v651, 16
        %vm781 = vcmp.ge.s32.totalorder %v652, 16
        %vm782 = vcmp.ge.s32.totalorder %v653, 16
        %vm783 = vcmp.ge.s32.totalorder %v654, 16
        %vm784 = vcmp.ge.s32.totalorder %v655, 16
        %vm785 = vcmp.ge.s32.totalorder %v656, 16
        %vm786 = vcmp.ge.s32.totalorder %v657, 16
        %vm787 = vcmp.ge.s32.totalorder %v658, 1
        %vm788 = vcmp.ge.s32.totalorder %v659, 1
        %vm789 = vcmp.ge.s32.totalorder %v660, 1
        %vm790 = vcmp.ge.s32.totalorder %v661, 1
        %vm791 = vcmp.ge.s32.totalorder %v662, 1
        %vm792 = vcmp.ge.s32.totalorder %v663, 1
        %vm793 = vcmp.ge.s32.totalorder %v664, 1
        %vm794 = vcmp.ge.s32.totalorder %v665, 1
        %vm795 = vcmp.ge.s32.totalorder %v666, 1
        %vm796 = vcmp.ge.s32.totalorder %v667, 1
        %vm797 = vcmp.ge.s32.totalorder %v668, 1
        %vm798 = vcmp.ge.s32.totalorder %v669, 1
        %vm799 = vcmp.ge.s32.totalorder %v670, 1
        %vm800 = vcmp.ge.s32.totalorder %v671, 1
        %vm801 = vcmp.ge.s32.totalorder %v672, 1
        %vm802 = vcmp.ge.s32.totalorder %v673, 1
        %vm803 = vcmp.ge.s32.totalorder %v674, 1
        %vm804 = vcmp.ge.s32.totalorder %v675, 1
        %vm805 = vcmp.ge.s32.totalorder %v676, 1
        %vm806 = vcmp.ge.s32.totalorder %v677, 1
        %vm807 = vcmp.ge.s32.totalorder %v678, 1
        %vm808 = vcmp.ge.s32.totalorder %v679, 1
        %vm809 = vcmp.ge.s32.totalorder %v680, 1
        %vm810 = vcmp.ge.s32.totalorder %v681, 1
        %vm811 = vcmp.ge.s32.totalorder %v682, 1
        %vm812 = vcmp.ge.s32.totalorder %v683, 1
        %vm813 = vcmp.ge.s32.totalorder %v684, 1
        %vm814 = vcmp.ge.s32.totalorder %v685, 1
        %vm815 = vcmp.ge.s32.totalorder %v686, 1
        %vm816 = vcmp.ge.s32.totalorder %v687, 1
        %vm817 = vcmp.ge.s32.totalorder %v688, 1
        %vm818 = vcmp.ge.s32.totalorder %v689, 1
        %vm819 = vmand %vm755, %vm787
        %vm820 = vmand %vm756, %vm788
        %vm821 = vmand %vm757, %vm789
        %vm822 = vmand %vm758, %vm790
        %vm823 = vmand %vm759, %vm791
        %vm824 = vmand %vm760, %vm792
        %vm825 = vmand %vm761, %vm793
        %vm826 = vmand %vm762, %vm794
        %vm827 = vmand %vm763, %vm795
        %vm828 = vmand %vm764, %vm796
        %vm829 = vmand %vm765, %vm797
        %vm830 = vmand %vm766, %vm798
        %vm831 = vmand %vm767, %vm799
        %vm832 = vmand %vm768, %vm800
        %vm833 = vmand %vm769, %vm801
        %vm834 = vmand %vm770, %vm802
        %vm835 = vmand %vm771, %vm803
        %vm836 = vmand %vm772, %vm804
        %vm837 = vmand %vm773, %vm805
        %vm838 = vmand %vm774, %vm806
        %vm839 = vmand %vm775, %vm807
        %vm840 = vmand %vm776, %vm808
        %vm841 = vmand %vm777, %vm809
        %vm842 = vmand %vm778, %vm810
        %vm843 = vmand %vm779, %vm811
        %vm844 = vmand %vm780, %vm812
        %vm845 = vmand %vm781, %vm813
        %vm846 = vmand %vm782, %vm814
        %vm847 = vmand %vm783, %vm815
        %vm848 = vmand %vm784, %vm816
        %vm849 = vmand %vm785, %vm817
        %vm850 = vmand %vm786, %vm818
        %v851 = vsel %vm819, 1, 0
        %v852 = vsel %vm820, 1, 0
        %v853 = vsel %vm821, 1, 0
        %v854 = vsel %vm822, 1, 0
        %v855 = vsel %vm823, 1, 0
        %v856 = vsel %vm824, 1, 0
        %v857 = vsel %vm825, 1, 0
        %v858 = vsel %vm826, 1, 0
        %v859 = vsel %vm827, 1, 0
        %v860 = vsel %vm828, 1, 0
        %v861 = vsel %vm829, 1, 0
        %v862 = vsel %vm830, 1, 0
        %v863 = vsel %vm831, 1, 0
        %v864 = vsel %vm832, 1, 0
        %v865 = vsel %vm833, 1, 0
        %v866 = vsel %vm834, 1, 0
        %v867 = vsel %vm835, 1, 0
        %v868 = vsel %vm836, 1, 0
        %v869 = vsel %vm837, 1, 0
        %v870 = vsel %vm838, 1, 0
        %v871 = vsel %vm839, 1, 0
        %v872 = vsel %vm840, 1, 0
        %v873 = vsel %vm841, 1, 0
        %v874 = vsel %vm842, 1, 0
        %v875 = vsel %vm843, 1, 0
        %v876 = vsel %vm844, 1, 0
        %v877 = vsel %vm845, 1, 0
        %v878 = vsel %vm846, 1, 0
        %v879 = vsel %vm847, 1, 0
        %v880 = vsel %vm848, 1, 0
        %v881 = vsel %vm849, 1, 0
        %v882 = vsel %vm850, 1, 0
        %vm883 = vcmp.eq.s32.totalorder %v851, 1
        %vm884 = vcmp.eq.s32.totalorder %v852, 1
        %vm885 = vcmp.eq.s32.totalorder %v853, 1
        %vm886 = vcmp.eq.s32.totalorder %v854, 1
        %vm887 = vcmp.eq.s32.totalorder %v855, 1
        %vm888 = vcmp.eq.s32.totalorder %v856, 1
        %vm889 = vcmp.eq.s32.totalorder %v857, 1
        %vm890 = vcmp.eq.s32.totalorder %v858, 1
        %vm891 = vcmp.eq.s32.totalorder %v859, 1
        %vm892 = vcmp.eq.s32.totalorder %v860, 1
        %vm893 = vcmp.eq.s32.totalorder %v861, 1
        %vm894 = vcmp.eq.s32.totalorder %v862, 1
        %vm895 = vcmp.eq.s32.totalorder %v863, 1
        %vm896 = vcmp.eq.s32.totalorder %v864, 1
        %vm897 = vcmp.eq.s32.totalorder %v865, 1
        %vm898 = vcmp.eq.s32.totalorder %v866, 1
        %vm899 = vcmp.eq.s32.totalorder %v867, 1
        %vm900 = vcmp.eq.s32.totalorder %v868, 1
        %vm901 = vcmp.eq.s32.totalorder %v869, 1
        %vm902 = vcmp.eq.s32.totalorder %v870, 1
        %vm903 = vcmp.eq.s32.totalorder %v871, 1
        %vm904 = vcmp.eq.s32.totalorder %v872, 1
        %vm905 = vcmp.eq.s32.totalorder %v873, 1
        %vm906 = vcmp.eq.s32.totalorder %v874, 1
        %vm907 = vcmp.eq.s32.totalorder %v875, 1
        %vm908 = vcmp.eq.s32.totalorder %v876, 1
        %vm909 = vcmp.eq.s32.totalorder %v877, 1
        %vm910 = vcmp.eq.s32.totalorder %v878, 1
        %vm911 = vcmp.eq.s32.totalorder %v879, 1
        %vm912 = vcmp.eq.s32.totalorder %v880, 1
        %vm913 = vcmp.eq.s32.totalorder %v881, 1
        %vm914 = vcmp.eq.s32.totalorder %v882, 1
        %v915 = vsel %vm883, %v724, 0.0
        %v916 = vsel %vm884, %v723, 0.0
        %v917 = vsel %vm885, %v754, 0.0
        %v918 = vsel %vm886, %v753, 0.0
        %v919 = vsel %vm887, %v752, 0.0
        %v920 = vsel %vm888, %v751, 0.0
        %v921 = vsel %vm889, %v750, 0.0
        %v922 = vsel %vm890, %v749, 0.0
        %v923 = vsel %vm891, %v748, 0.0
        %v924 = vsel %vm892, %v747, 0.0
        %v925 = vsel %vm893, %v746, 0.0
        %v926 = vsel %vm894, %v745, 0.0
        %v927 = vsel %vm895, %v744, 0.0
        %v928 = vsel %vm896, %v743, 0.0
        %v929 = vsel %vm897, %v742, 0.0
        %v930 = vsel %vm898, %v741, 0.0
        %v931 = vsel %vm899, %v740, 0.0
        %v932 = vsel %vm900, %v739, 0.0
        %v933 = vsel %vm901, %v738, 0.0
        %v934 = vsel %vm902, %v737, 0.0
        %v935 = vsel %vm903, %v736, 0.0
        %v936 = vsel %vm904, %v735, 0.0
        %v937 = vsel %vm905, %v734, 0.0
        %v938 = vsel %vm906, %v733, 0.0
        %v939 = vsel %vm907, %v732, 0.0
        %v940 = vsel %vm908, %v731, 0.0
        %v941 = vsel %vm909, %v730, 0.0
        %v942 = vsel %vm910, %v729, 0.0
        %v943 = vsel %vm911, %v728, 0.0
        %v944 = vsel %vm912, %v727, 0.0
        %v945 = vsel %vm913, %v726, 0.0
        %v946 = vsel %vm914, %v725, 0.0
        %v947 = vpack.c.bf16 %v916, %v915
        %v948 = vpack.c.bf16 %v918, %v917
        %v949 = vpack.c.bf16 %v920, %v919
        %v950 = vpack.c.bf16 %v922, %v921
        %v951 = vpack.c.bf16 %v924, %v923
        %v952 = vpack.c.bf16 %v926, %v925
        %v953 = vpack.c.bf16 %v928, %v927
        %v954 = vpack.c.bf16 %v930, %v929
        %v955 = vpack.c.bf16 %v932, %v931
        %v956 = vpack.c.bf16 %v934, %v933
        %v957 = vpack.c.bf16 %v936, %v935
        %v958 = vpack.c.bf16 %v938, %v937
        %v959 = vpack.c.bf16 %v940, %v939
        %v960 = vpack.c.bf16 %v942, %v941
        %v961 = vpack.c.bf16 %v944, %v943
        %v962 = vpack.c.bf16 %v946, %v945
        %v963 = vsel %vm755, 1, 0
        %v964 = vsel %vm756, 1, 0
        %v965 = vsel %vm757, 1, 0
        %v966 = vsel %vm758, 1, 0
        %v967 = vsel %vm759, 1, 0
        %v968 = vsel %vm760, 1, 0
        %v969 = vsel %vm761, 1, 0
        %v970 = vsel %vm762, 1, 0
        %v971 = vsel %vm763, 1, 0
        %v972 = vsel %vm764, 1, 0
        %v973 = vsel %vm765, 1, 0
        %v974 = vsel %vm766, 1, 0
        %v975 = vsel %vm767, 1, 0
        %v976 = vsel %vm768, 1, 0
        %v977 = vsel %vm769, 1, 0
        %v978 = vsel %vm770, 1, 0
        %v979 = vsel %vm771, 1, 0
        %v980 = vsel %vm772, 1, 0
        %v981 = vsel %vm773, 1, 0
        %v982 = vsel %vm774, 1, 0
        %v983 = vsel %vm775, 1, 0
        %v984 = vsel %vm776, 1, 0
        %v985 = vsel %vm777, 1, 0
        %v986 = vsel %vm778, 1, 0
        %v987 = vsel %vm779, 1, 0
        %v988 = vsel %vm780, 1, 0
        %v989 = vsel %vm781, 1, 0
        %v990 = vsel %vm782, 1, 0
        %v991 = vsel %vm783, 1, 0
        %v992 = vsel %vm784, 1, 0
        %v993 = vsel %vm785, 1, 0
        %v994 = vsel %vm786, 1, 0
        %vm995 = vcmp.eq.s32.totalorder %v963, 1
        %vm996 = vcmp.eq.s32.totalorder %v964, 1
        %vm997 = vcmp.eq.s32.totalorder %v965, 1
        %vm998 = vcmp.eq.s32.totalorder %v966, 1
        %vm999 = vcmp.eq.s32.totalorder %v967, 1
        %vm1000 = vcmp.eq.s32.totalorder %v968, 1
        %vm1001 = vcmp.eq.s32.totalorder %v969, 1
        %vm1002 = vcmp.eq.s32.totalorder %v970, 1
        %vm1003 = vcmp.eq.s32.totalorder %v971, 1
        %vm1004 = vcmp.eq.s32.totalorder %v972, 1
        %vm1005 = vcmp.eq.s32.totalorder %v973, 1
        %vm1006 = vcmp.eq.s32.totalorder %v974, 1
        %vm1007 = vcmp.eq.s32.totalorder %v975, 1
        %vm1008 = vcmp.eq.s32.totalorder %v976, 1
        %vm1009 = vcmp.eq.s32.totalorder %v977, 1
        %vm1010 = vcmp.eq.s32.totalorder %v978, 1
        %vm1011 = vcmp.eq.s32.totalorder %v979, 1
        %vm1012 = vcmp.eq.s32.totalorder %v980, 1
        %vm1013 = vcmp.eq.s32.totalorder %v981, 1
        %vm1014 = vcmp.eq.s32.totalorder %v982, 1
        %vm1015 = vcmp.eq.s32.totalorder %v983, 1
        %vm1016 = vcmp.eq.s32.totalorder %v984, 1
        %vm1017 = vcmp.eq.s32.totalorder %v985, 1
        %vm1018 = vcmp.eq.s32.totalorder %v986, 1
        %vm1019 = vcmp.eq.s32.totalorder %v987, 1
        %vm1020 = vcmp.eq.s32.totalorder %v988, 1
        %vm1021 = vcmp.eq.s32.totalorder %v989, 1
        %vm1022 = vcmp.eq.s32.totalorder %v990, 1
        %vm1023 = vcmp.eq.s32.totalorder %v991, 1
        %vm1024 = vcmp.eq.s32.totalorder %v992, 1
        %vm1025 = vcmp.eq.s32.totalorder %v993, 1
        %vm1026 = vcmp.eq.s32.totalorder %v994, 1
        %v1027 = vsel %vm995, %v591, 0.0
        %v1028 = vsel %vm996, %v592, 0.0
        %v1029 = vsel %vm997, %v561, 0.0
        %v1030 = vsel %vm998, %v562, 0.0
        %v1031 = vsel %vm999, %v563, 0.0
        %v1032 = vsel %vm1000, %v564, 0.0
        %v1033 = vsel %vm1001, %v565, 0.0
        %v1034 = vsel %vm1002, %v566, 0.0
        %v1035 = vsel %vm1003, %v567, 0.0
        %v1036 = vsel %vm1004, %v568, 0.0
        %v1037 = vsel %vm1005, %v569, 0.0
        %v1038 = vsel %vm1006, %v570, 0.0
        %v1039 = vsel %vm1007, %v571, 0.0
        %v1040 = vsel %vm1008, %v572, 0.0
        %v1041 = vsel %vm1009, %v573, 0.0
        %v1042 = vsel %vm1010, %v574, 0.0
        %v1043 = vsel %vm1011, %v575, 0.0
        %v1044 = vsel %vm1012, %v576, 0.0
        %v1045 = vsel %vm1013, %v577, 0.0
        %v1046 = vsel %vm1014, %v578, 0.0
        %v1047 = vsel %vm1015, %v579, 0.0
        %v1048 = vsel %vm1016, %v580, 0.0
        %v1049 = vsel %vm1017, %v581, 0.0
        %v1050 = vsel %vm1018, %v582, 0.0
        %v1051 = vsel %vm1019, %v583, 0.0
        %v1052 = vsel %vm1020, %v584, 0.0
        %v1053 = vsel %vm1021, %v585, 0.0
        %v1054 = vsel %vm1022, %v586, 0.0
        %v1055 = vsel %vm1023, %v587, 0.0
        %v1056 = vsel %vm1024, %v588, 0.0
        %v1057 = vsel %vm1025, %v589, 0.0
        %v1058 = vsel %vm1026, %v590, 0.0
        %v1059 = vpack.c.bf16 %v1028, %v1027
        %v1060 = vpack.c.bf16 %v1030, %v1029
        %v1061 = vpack.c.bf16 %v1032, %v1031
        %v1062 = vpack.c.bf16 %v1034, %v1033
        %v1063 = vpack.c.bf16 %v1036, %v1035
        %v1064 = vpack.c.bf16 %v1038, %v1037
        %v1065 = vpack.c.bf16 %v1040, %v1039
        %v1066 = vpack.c.bf16 %v1042, %v1041
        %v1067 = vpack.c.bf16 %v1044, %v1043
        %v1068 = vpack.c.bf16 %v1046, %v1045
        %v1069 = vpack.c.bf16 %v1048, %v1047
        %v1070 = vpack.c.bf16 %v1050, %v1049
        %v1071 = vpack.c.bf16 %v1052, %v1051
        %v1072 = vpack.c.bf16 %v1054, %v1053
        %v1073 = vpack.c.bf16 %v1056, %v1055
        %v1074 = vpack.c.bf16 %v1058, %v1057
        %v1075 = vrot.slane %v561, 1
        %v1076 = vrot.slane %v562, 1
        %v1077 = vrot.slane %v563, 1
        %v1078 = vrot.slane %v564, 1
        %v1079 = vrot.slane %v565, 1
        %v1080 = vrot.slane %v566, 1
        %v1081 = vrot.slane %v567, 1
        %v1082 = vrot.slane %v568, 1
        %v1083 = vrot.slane %v569, 1
        %v1084 = vrot.slane %v570, 1
        %v1085 = vrot.slane %v571, 1
        %v1086 = vrot.slane %v572, 1
        %v1087 = vrot.slane %v573, 1
        %v1088 = vrot.slane %v574, 1
        %v1089 = vrot.slane %v575, 1
        %v1090 = vrot.slane %v576, 1
        %v1091 = vrot.slane %v577, 1
        %v1092 = vrot.slane %v578, 1
        %v1093 = vrot.slane %v579, 1
        %v1094 = vrot.slane %v580, 1
        %v1095 = vrot.slane %v581, 1
        %v1096 = vrot.slane %v582, 1
        %v1097 = vrot.slane %v583, 1
        %v1098 = vrot.slane %v584, 1
        %v1099 = vrot.slane %v585, 1
        %v1100 = vrot.slane %v586, 1
        %v1101 = vrot.slane %v587, 1
        %v1102 = vrot.slane %v588, 1
        %v1103 = vrot.slane %v589, 1
        %v1104 = vrot.slane %v590, 1
        %v1105 = vrot.slane %v591, 1
        %v1106 = vrot.slane %v592, 1
        %vm1107 = vcmp.lt.s32.totalorder %v594, 7
        %v1108 = vsel %vm1107, %v1105, %v1106
        %v1109 = vsel %vm1107, %v1104, %v1105
        %v1110 = vsel %vm1107, %v1103, %v1104
        %v1111 = vsel %vm1107, %v1102, %v1103
        %v1112 = vsel %vm1107, %v1101, %v1102
        %v1113 = vsel %vm1107, %v1100, %v1101
        %v1114 = vsel %vm1107, %v1099, %v1100
        %v1115 = vsel %vm1107, %v1098, %v1099
        %v1116 = vsel %vm1107, %v1097, %v1098
        %v1117 = vsel %vm1107, %v1096, %v1097
        %v1118 = vsel %vm1107, %v1095, %v1096
        %v1119 = vsel %vm1107, %v1094, %v1095
        %v1120 = vsel %vm1107, %v1093, %v1094
        %v1121 = vsel %vm1107, %v1092, %v1093
        %v1122 = vsel %vm1107, %v1091, %v1092
        %v1123 = vsel %vm1107, %v1090, %v1091
        %v1124 = vsel %vm1107, %v1089, %v1090
        %v1125 = vsel %vm1107, %v1088, %v1089
        %v1126 = vsel %vm1107, %v1087, %v1088
        %v1127 = vsel %vm1107, %v1086, %v1087
        %v1128 = vsel %vm1107, %v1085, %v1086
        %v1129 = vsel %vm1107, %v1084, %v1085
        %v1130 = vsel %vm1107, %v1083, %v1084
        %v1131 = vsel %vm1107, %v1082, %v1083
        %v1132 = vsel %vm1107, %v1081, %v1082
        %v1133 = vsel %vm1107, %v1080, %v1081
        %v1134 = vsel %vm1107, %v1079, %v1080
        %v1135 = vsel %vm1107, %v1078, %v1079
        %v1136 = vsel %vm1107, %v1077, %v1078
        %v1137 = vsel %vm1107, %v1076, %v1077
        %v1138 = vsel %vm1107, %v1075, %v1076
        %v1139 = vsel %vm1107, %v1106, %v1075
        %vm1140 = vcmp.le.s32.totalorder %v658, 14
        %vm1141 = vcmp.le.s32.totalorder %v659, 14
        %vm1142 = vcmp.le.s32.totalorder %v660, 14
        %vm1143 = vcmp.le.s32.totalorder %v661, 14
        %vm1144 = vcmp.le.s32.totalorder %v662, 14
        %vm1145 = vcmp.le.s32.totalorder %v663, 14
        %vm1146 = vcmp.le.s32.totalorder %v664, 14
        %vm1147 = vcmp.le.s32.totalorder %v665, 14
        %vm1148 = vcmp.le.s32.totalorder %v666, 14
        %vm1149 = vcmp.le.s32.totalorder %v667, 14
        %vm1150 = vcmp.le.s32.totalorder %v668, 14
        %vm1151 = vcmp.le.s32.totalorder %v669, 14
        %vm1152 = vcmp.le.s32.totalorder %v670, 14
        %vm1153 = vcmp.le.s32.totalorder %v671, 14
        %vm1154 = vcmp.le.s32.totalorder %v672, 14
        %vm1155 = vcmp.le.s32.totalorder %v673, 14
        %vm1156 = vcmp.le.s32.totalorder %v674, 14
        %vm1157 = vcmp.le.s32.totalorder %v675, 14
        %vm1158 = vcmp.le.s32.totalorder %v676, 14
        %vm1159 = vcmp.le.s32.totalorder %v677, 14
        %vm1160 = vcmp.le.s32.totalorder %v678, 14
        %vm1161 = vcmp.le.s32.totalorder %v679, 14
        %vm1162 = vcmp.le.s32.totalorder %v680, 14
        %vm1163 = vcmp.le.s32.totalorder %v681, 14
        %vm1164 = vcmp.le.s32.totalorder %v682, 14
        %vm1165 = vcmp.le.s32.totalorder %v683, 14
        %vm1166 = vcmp.le.s32.totalorder %v684, 14
        %vm1167 = vcmp.le.s32.totalorder %v685, 14
        %vm1168 = vcmp.le.s32.totalorder %v686, 14
        %vm1169 = vcmp.le.s32.totalorder %v687, 14
        %vm1170 = vcmp.le.s32.totalorder %v688, 14
        %vm1171 = vcmp.le.s32.totalorder %v689, 14
        %vm1172 = vmand %vm755, %vm1140
        %vm1173 = vmand %vm756, %vm1141
        %vm1174 = vmand %vm757, %vm1142
        %vm1175 = vmand %vm758, %vm1143
        %vm1176 = vmand %vm759, %vm1144
        %vm1177 = vmand %vm760, %vm1145
        %vm1178 = vmand %vm761, %vm1146
        %vm1179 = vmand %vm762, %vm1147
        %vm1180 = vmand %vm763, %vm1148
        %vm1181 = vmand %vm764, %vm1149
        %vm1182 = vmand %vm765, %vm1150
        %vm1183 = vmand %vm766, %vm1151
        %vm1184 = vmand %vm767, %vm1152
        %vm1185 = vmand %vm768, %vm1153
        %vm1186 = vmand %vm769, %vm1154
        %vm1187 = vmand %vm770, %vm1155
        %vm1188 = vmand %vm771, %vm1156
        %vm1189 = vmand %vm772, %vm1157
        %vm1190 = vmand %vm773, %vm1158
        %vm1191 = vmand %vm774, %vm1159
        %vm1192 = vmand %vm775, %vm1160
        %vm1193 = vmand %vm776, %vm1161
        %vm1194 = vmand %vm777, %vm1162
        %vm1195 = vmand %vm778, %vm1163
        %vm1196 = vmand %vm779, %vm1164
        %vm1197 = vmand %vm780, %vm1165
        %vm1198 = vmand %vm781, %vm1166
        %vm1199 = vmand %vm782, %vm1167
        %vm1200 = vmand %vm783, %vm1168
        %vm1201 = vmand %vm784, %vm1169
        %vm1202 = vmand %vm785, %vm1170
        %vm1203 = vmand %vm786, %vm1171
        %v1204 = vsel %vm1172, 1, 0
        %v1205 = vsel %vm1173, 1, 0
        %v1206 = vsel %vm1174, 1, 0
        %v1207 = vsel %vm1175, 1, 0
        %v1208 = vsel %vm1176, 1, 0
        %v1209 = vsel %vm1177, 1, 0
        %v1210 = vsel %vm1178, 1, 0
        %v1211 = vsel %vm1179, 1, 0
        %v1212 = vsel %vm1180, 1, 0
        %v1213 = vsel %vm1181, 1, 0
        %v1214 = vsel %vm1182, 1, 0
        %v1215 = vsel %vm1183, 1, 0
        %v1216 = vsel %vm1184, 1, 0
        %v1217 = vsel %vm1185, 1, 0
        %v1218 = vsel %vm1186, 1, 0
        %v1219 = vsel %vm1187, 1, 0
        %v1220 = vsel %vm1188, 1, 0
        %v1221 = vsel %vm1189, 1, 0
        %v1222 = vsel %vm1190, 1, 0
        %v1223 = vsel %vm1191, 1, 0
        %v1224 = vsel %vm1192, 1, 0
        %v1225 = vsel %vm1193, 1, 0
        %v1226 = vsel %vm1194, 1, 0
        %v1227 = vsel %vm1195, 1, 0
        %v1228 = vsel %vm1196, 1, 0
        %v1229 = vsel %vm1197, 1, 0
        %v1230 = vsel %vm1198, 1, 0
        %v1231 = vsel %vm1199, 1, 0
        %v1232 = vsel %vm1200, 1, 0
        %v1233 = vsel %vm1201, 1, 0
        %v1234 = vsel %vm1202, 1, 0
        %v1235 = vsel %vm1203, 1, 0
        %vm1236 = vcmp.eq.s32.totalorder %v1204, 1
        %vm1237 = vcmp.eq.s32.totalorder %v1205, 1
        %vm1238 = vcmp.eq.s32.totalorder %v1206, 1
        %vm1239 = vcmp.eq.s32.totalorder %v1207, 1
        %vm1240 = vcmp.eq.s32.totalorder %v1208, 1
        %vm1241 = vcmp.eq.s32.totalorder %v1209, 1
        %vm1242 = vcmp.eq.s32.totalorder %v1210, 1
        %vm1243 = vcmp.eq.s32.totalorder %v1211, 1
        %vm1244 = vcmp.eq.s32.totalorder %v1212, 1
        %vm1245 = vcmp.eq.s32.totalorder %v1213, 1
        %vm1246 = vcmp.eq.s32.totalorder %v1214, 1
        %vm1247 = vcmp.eq.s32.totalorder %v1215, 1
        %vm1248 = vcmp.eq.s32.totalorder %v1216, 1
        %vm1249 = vcmp.eq.s32.totalorder %v1217, 1
        %vm1250 = vcmp.eq.s32.totalorder %v1218, 1
        %vm1251 = vcmp.eq.s32.totalorder %v1219, 1
        %vm1252 = vcmp.eq.s32.totalorder %v1220, 1
        %vm1253 = vcmp.eq.s32.totalorder %v1221, 1
        %vm1254 = vcmp.eq.s32.totalorder %v1222, 1
        %vm1255 = vcmp.eq.s32.totalorder %v1223, 1
        %vm1256 = vcmp.eq.s32.totalorder %v1224, 1
        %vm1257 = vcmp.eq.s32.totalorder %v1225, 1
        %vm1258 = vcmp.eq.s32.totalorder %v1226, 1
        %vm1259 = vcmp.eq.s32.totalorder %v1227, 1
        %vm1260 = vcmp.eq.s32.totalorder %v1228, 1
        %vm1261 = vcmp.eq.s32.totalorder %v1229, 1
        %vm1262 = vcmp.eq.s32.totalorder %v1230, 1
        %vm1263 = vcmp.eq.s32.totalorder %v1231, 1
        %vm1264 = vcmp.eq.s32.totalorder %v1232, 1
        %vm1265 = vcmp.eq.s32.totalorder %v1233, 1
        %vm1266 = vcmp.eq.s32.totalorder %v1234, 1
        %vm1267 = vcmp.eq.s32.totalorder %v1235, 1
        %v1268 = vsel %vm1236, %v1108, 0.0
        %v1269 = vsel %vm1237, %v1139, 0.0
        %v1270 = vsel %vm1238, %v1138, 0.0
        %v1271 = vsel %vm1239, %v1137, 0.0
        %v1272 = vsel %vm1240, %v1136, 0.0
        %v1273 = vsel %vm1241, %v1135, 0.0
        %v1274 = vsel %vm1242, %v1134, 0.0
        %v1275 = vsel %vm1243, %v1133, 0.0
        %v1276 = vsel %vm1244, %v1132, 0.0
        %v1277 = vsel %vm1245, %v1131, 0.0
        %v1278 = vsel %vm1246, %v1130, 0.0
        %v1279 = vsel %vm1247, %v1129, 0.0
        %v1280 = vsel %vm1248, %v1128, 0.0
        %v1281 = vsel %vm1249, %v1127, 0.0
        %v1282 = vsel %vm1250, %v1126, 0.0
        %v1283 = vsel %vm1251, %v1125, 0.0
        %v1284 = vsel %vm1252, %v1124, 0.0
        %v1285 = vsel %vm1253, %v1123, 0.0
        %v1286 = vsel %vm1254, %v1122, 0.0
        %v1287 = vsel %vm1255, %v1121, 0.0
        %v1288 = vsel %vm1256, %v1120, 0.0
        %v1289 = vsel %vm1257, %v1119, 0.0
        %v1290 = vsel %vm1258, %v1118, 0.0
        %v1291 = vsel %vm1259, %v1117, 0.0
        %v1292 = vsel %vm1260, %v1116, 0.0
        %v1293 = vsel %vm1261, %v1115, 0.0
        %v1294 = vsel %vm1262, %v1114, 0.0
        %v1295 = vsel %vm1263, %v1113, 0.0
        %v1296 = vsel %vm1264, %v1112, 0.0
        %v1297 = vsel %vm1265, %v1111, 0.0
        %v1298 = vsel %vm1266, %v1110, 0.0
        %v1299 = vsel %vm1267, %v1109, 0.0
        %v1300 = vpack.c.bf16 %v1269, %v1268
        %v1301 = vpack.c.bf16 %v1271, %v1270
        %v1302 = vpack.c.bf16 %v1273, %v1272
        %v1303 = vpack.c.bf16 %v1275, %v1274
        %v1304 = vpack.c.bf16 %v1277, %v1276
        %v1305 = vpack.c.bf16 %v1279, %v1278
        %v1306 = vpack.c.bf16 %v1281, %v1280
        %v1307 = vpack.c.bf16 %v1283, %v1282
        %v1308 = vpack.c.bf16 %v1285, %v1284
        %v1309 = vpack.c.bf16 %v1287, %v1286
        %v1310 = vpack.c.bf16 %v1289, %v1288
        %v1311 = vpack.c.bf16 %v1291, %v1290
        %v1312 = vpack.c.bf16 %v1293, %v1292
        %v1313 = vpack.c.bf16 %v1295, %v1294
        %v1314 = vpack.c.bf16 %v1297, %v1296
        %v1315 = vpack.c.bf16 %v1299, %v1298
        %v1316 = vsel %vm787, 1, 0
        %v1317 = vsel %vm788, 1, 0
        %v1318 = vsel %vm789, 1, 0
        %v1319 = vsel %vm790, 1, 0
        %v1320 = vsel %vm791, 1, 0
        %v1321 = vsel %vm792, 1, 0
        %v1322 = vsel %vm793, 1, 0
        %v1323 = vsel %vm794, 1, 0
        %v1324 = vsel %vm795, 1, 0
        %v1325 = vsel %vm796, 1, 0
        %v1326 = vsel %vm797, 1, 0
        %v1327 = vsel %vm798, 1, 0
        %v1328 = vsel %vm799, 1, 0
        %v1329 = vsel %vm800, 1, 0
        %v1330 = vsel %vm801, 1, 0
        %v1331 = vsel %vm802, 1, 0
        %v1332 = vsel %vm803, 1, 0
        %v1333 = vsel %vm804, 1, 0
        %v1334 = vsel %vm805, 1, 0
        %v1335 = vsel %vm806, 1, 0
        %v1336 = vsel %vm807, 1, 0
        %v1337 = vsel %vm808, 1, 0
        %v1338 = vsel %vm809, 1, 0
        %v1339 = vsel %vm810, 1, 0
        %v1340 = vsel %vm811, 1, 0
        %v1341 = vsel %vm812, 1, 0
        %v1342 = vsel %vm813, 1, 0
        %v1343 = vsel %vm814, 1, 0
        %v1344 = vsel %vm815, 1, 0
        %v1345 = vsel %vm816, 1, 0
        %v1346 = vsel %vm817, 1, 0
        %v1347 = vsel %vm818, 1, 0
        %vm1348 = vcmp.eq.s32.totalorder %v1316, 1
        %vm1349 = vcmp.eq.s32.totalorder %v1317, 1
        %vm1350 = vcmp.eq.s32.totalorder %v1318, 1
        %vm1351 = vcmp.eq.s32.totalorder %v1319, 1
        %vm1352 = vcmp.eq.s32.totalorder %v1320, 1
        %vm1353 = vcmp.eq.s32.totalorder %v1321, 1
        %vm1354 = vcmp.eq.s32.totalorder %v1322, 1
        %vm1355 = vcmp.eq.s32.totalorder %v1323, 1
        %vm1356 = vcmp.eq.s32.totalorder %v1324, 1
        %vm1357 = vcmp.eq.s32.totalorder %v1325, 1
        %vm1358 = vcmp.eq.s32.totalorder %v1326, 1
        %vm1359 = vcmp.eq.s32.totalorder %v1327, 1
        %vm1360 = vcmp.eq.s32.totalorder %v1328, 1
        %vm1361 = vcmp.eq.s32.totalorder %v1329, 1
        %vm1362 = vcmp.eq.s32.totalorder %v1330, 1
        %vm1363 = vcmp.eq.s32.totalorder %v1331, 1
        %vm1364 = vcmp.eq.s32.totalorder %v1332, 1
        %vm1365 = vcmp.eq.s32.totalorder %v1333, 1
        %vm1366 = vcmp.eq.s32.totalorder %v1334, 1
        %vm1367 = vcmp.eq.s32.totalorder %v1335, 1
        %vm1368 = vcmp.eq.s32.totalorder %v1336, 1
        %vm1369 = vcmp.eq.s32.totalorder %v1337, 1
        %vm1370 = vcmp.eq.s32.totalorder %v1338, 1
        %vm1371 = vcmp.eq.s32.totalorder %v1339, 1
        %vm1372 = vcmp.eq.s32.totalorder %v1340, 1
        %vm1373 = vcmp.eq.s32.totalorder %v1341, 1
        %vm1374 = vcmp.eq.s32.totalorder %v1342, 1
        %vm1375 = vcmp.eq.s32.totalorder %v1343, 1
        %vm1376 = vcmp.eq.s32.totalorder %v1344, 1
        %vm1377 = vcmp.eq.s32.totalorder %v1345, 1
        %vm1378 = vcmp.eq.s32.totalorder %v1346, 1
        %vm1379 = vcmp.eq.s32.totalorder %v1347, 1
        %v1380 = vsel %vm1348, %v754, 0.0
        %v1381 = vsel %vm1349, %v753, 0.0
        %v1382 = vsel %vm1350, %v752, 0.0
        %v1383 = vsel %vm1351, %v751, 0.0
        %v1384 = vsel %vm1352, %v750, 0.0
        %v1385 = vsel %vm1353, %v749, 0.0
        %v1386 = vsel %vm1354, %v748, 0.0
        %v1387 = vsel %vm1355, %v747, 0.0
        %v1388 = vsel %vm1356, %v746, 0.0
        %v1389 = vsel %vm1357, %v745, 0.0
        %v1390 = vsel %vm1358, %v744, 0.0
        %v1391 = vsel %vm1359, %v743, 0.0
        %v1392 = vsel %vm1360, %v742, 0.0
        %v1393 = vsel %vm1361, %v741, 0.0
        %v1394 = vsel %vm1362, %v740, 0.0
        %v1395 = vsel %vm1363, %v739, 0.0
        %v1396 = vsel %vm1364, %v738, 0.0
        %v1397 = vsel %vm1365, %v737, 0.0
        %v1398 = vsel %vm1366, %v736, 0.0
        %v1399 = vsel %vm1367, %v735, 0.0
        %v1400 = vsel %vm1368, %v734, 0.0
        %v1401 = vsel %vm1369, %v733, 0.0
        %v1402 = vsel %vm1370, %v732, 0.0
        %v1403 = vsel %vm1371, %v731, 0.0
        %v1404 = vsel %vm1372, %v730, 0.0
        %v1405 = vsel %vm1373, %v729, 0.0
        %v1406 = vsel %vm1374, %v728, 0.0
        %v1407 = vsel %vm1375, %v727, 0.0
        %v1408 = vsel %vm1376, %v726, 0.0
        %v1409 = vsel %vm1377, %v725, 0.0
        %v1410 = vsel %vm1378, %v724, 0.0
        %v1411 = vsel %vm1379, %v723, 0.0
        %v1412 = vpack.c.bf16 %v1381, %v1380
        %v1413 = vpack.c.bf16 %v1383, %v1382
        %v1414 = vpack.c.bf16 %v1385, %v1384
        %v1415 = vpack.c.bf16 %v1387, %v1386
        %v1416 = vpack.c.bf16 %v1389, %v1388
        %v1417 = vpack.c.bf16 %v1391, %v1390
        %v1418 = vpack.c.bf16 %v1393, %v1392
        %v1419 = vpack.c.bf16 %v1395, %v1394
        %v1420 = vpack.c.bf16 %v1397, %v1396
        %v1421 = vpack.c.bf16 %v1399, %v1398
        %v1422 = vpack.c.bf16 %v1401, %v1400
        %v1423 = vpack.c.bf16 %v1403, %v1402
        %v1424 = vpack.c.bf16 %v1405, %v1404
        %v1425 = vpack.c.bf16 %v1407, %v1406
        %v1426 = vpack.c.bf16 %v1409, %v1408
        %v1427 = vpack.c.bf16 %v1411, %v1410
        %v1428 = vpack.c.bf16 %v562, %v561
        %v1429 = vpack.c.bf16 %v564, %v563
        %v1430 = vpack.c.bf16 %v566, %v565
        %v1431 = vpack.c.bf16 %v568, %v567
        %v1432 = vpack.c.bf16 %v570, %v569
        %v1433 = vpack.c.bf16 %v572, %v571
        %v1434 = vpack.c.bf16 %v574, %v573
        %v1435 = vpack.c.bf16 %v576, %v575
        %v1436 = vpack.c.bf16 %v578, %v577
        %v1437 = vpack.c.bf16 %v580, %v579
        %v1438 = vpack.c.bf16 %v582, %v581
        %v1439 = vpack.c.bf16 %v584, %v583
        %v1440 = vpack.c.bf16 %v586, %v585
        %v1441 = vpack.c.bf16 %v588, %v587
        %v1442 = vpack.c.bf16 %v590, %v589
        %v1443 = vpack.c.bf16 %v592, %v591
        %v1444 = vsel %vm1140, 1, 0
        %v1445 = vsel %vm1141, 1, 0
        %v1446 = vsel %vm1142, 1, 0
        %v1447 = vsel %vm1143, 1, 0
        %v1448 = vsel %vm1144, 1, 0
        %v1449 = vsel %vm1145, 1, 0
        %v1450 = vsel %vm1146, 1, 0
        %v1451 = vsel %vm1147, 1, 0
        %v1452 = vsel %vm1148, 1, 0
        %v1453 = vsel %vm1149, 1, 0
        %v1454 = vsel %vm1150, 1, 0
        %v1455 = vsel %vm1151, 1, 0
        %v1456 = vsel %vm1152, 1, 0
        %v1457 = vsel %vm1153, 1, 0
        %v1458 = vsel %vm1154, 1, 0
        %v1459 = vsel %vm1155, 1, 0
        %v1460 = vsel %vm1156, 1, 0
        %v1461 = vsel %vm1157, 1, 0
        %v1462 = vsel %vm1158, 1, 0
        %v1463 = vsel %vm1159, 1, 0
        %v1464 = vsel %vm1160, 1, 0
        %v1465 = vsel %vm1161, 1, 0
        %v1466 = vsel %vm1162, 1, 0
        %v1467 = vsel %vm1163, 1, 0
        %v1468 = vsel %vm1164, 1, 0
        %v1469 = vsel %vm1165, 1, 0
        %v1470 = vsel %vm1166, 1, 0
        %v1471 = vsel %vm1167, 1, 0
        %v1472 = vsel %vm1168, 1, 0
        %v1473 = vsel %vm1169, 1, 0
        %v1474 = vsel %vm1170, 1, 0
        %v1475 = vsel %vm1171, 1, 0
        %vm1476 = vcmp.eq.s32.totalorder %v1444, 1
        %vm1477 = vcmp.eq.s32.totalorder %v1445, 1
        %vm1478 = vcmp.eq.s32.totalorder %v1446, 1
        %vm1479 = vcmp.eq.s32.totalorder %v1447, 1
        %vm1480 = vcmp.eq.s32.totalorder %v1448, 1
        %vm1481 = vcmp.eq.s32.totalorder %v1449, 1
        %vm1482 = vcmp.eq.s32.totalorder %v1450, 1
        %vm1483 = vcmp.eq.s32.totalorder %v1451, 1
        %vm1484 = vcmp.eq.s32.totalorder %v1452, 1
        %vm1485 = vcmp.eq.s32.totalorder %v1453, 1
        %vm1486 = vcmp.eq.s32.totalorder %v1454, 1
        %vm1487 = vcmp.eq.s32.totalorder %v1455, 1
        %vm1488 = vcmp.eq.s32.totalorder %v1456, 1
        %vm1489 = vcmp.eq.s32.totalorder %v1457, 1
        %vm1490 = vcmp.eq.s32.totalorder %v1458, 1
        %vm1491 = vcmp.eq.s32.totalorder %v1459, 1
        %vm1492 = vcmp.eq.s32.totalorder %v1460, 1
        %vm1493 = vcmp.eq.s32.totalorder %v1461, 1
        %vm1494 = vcmp.eq.s32.totalorder %v1462, 1
        %vm1495 = vcmp.eq.s32.totalorder %v1463, 1
        %vm1496 = vcmp.eq.s32.totalorder %v1464, 1
        %vm1497 = vcmp.eq.s32.totalorder %v1465, 1
        %vm1498 = vcmp.eq.s32.totalorder %v1466, 1
        %vm1499 = vcmp.eq.s32.totalorder %v1467, 1
        %vm1500 = vcmp.eq.s32.totalorder %v1468, 1
        %vm1501 = vcmp.eq.s32.totalorder %v1469, 1
        %vm1502 = vcmp.eq.s32.totalorder %v1470, 1
        %vm1503 = vcmp.eq.s32.totalorder %v1471, 1
        %vm1504 = vcmp.eq.s32.totalorder %v1472, 1
        %vm1505 = vcmp.eq.s32.totalorder %v1473, 1
        %vm1506 = vcmp.eq.s32.totalorder %v1474, 1
        %vm1507 = vcmp.eq.s32.totalorder %v1475, 1
        %v1508 = vsel %vm1476, %v1138, 0.0
        %v1509 = vsel %vm1477, %v1137, 0.0
        %v1510 = vsel %vm1478, %v1136, 0.0
        %v1511 = vsel %vm1479, %v1135, 0.0
        %v1512 = vsel %vm1480, %v1134, 0.0
        %v1513 = vsel %vm1481, %v1133, 0.0
        %v1514 = vsel %vm1482, %v1132, 0.0
        %v1515 = vsel %vm1483, %v1131, 0.0
        %v1516 = vsel %vm1484, %v1130, 0.0
        %v1517 = vsel %vm1485, %v1129, 0.0
        %v1518 = vsel %vm1486, %v1128, 0.0
        %v1519 = vsel %vm1487, %v1127, 0.0
        %v1520 = vsel %vm1488, %v1126, 0.0
        %v1521 = vsel %vm1489, %v1125, 0.0
        %v1522 = vsel %vm1490, %v1124, 0.0
        %v1523 = vsel %vm1491, %v1123, 0.0
        %v1524 = vsel %vm1492, %v1122, 0.0
        %v1525 = vsel %vm1493, %v1121, 0.0
        %v1526 = vsel %vm1494, %v1120, 0.0
        %v1527 = vsel %vm1495, %v1119, 0.0
        %v1528 = vsel %vm1496, %v1118, 0.0
        %v1529 = vsel %vm1497, %v1117, 0.0
        %v1530 = vsel %vm1498, %v1116, 0.0
        %v1531 = vsel %vm1499, %v1115, 0.0
        %v1532 = vsel %vm1500, %v1114, 0.0
        %v1533 = vsel %vm1501, %v1113, 0.0
        %v1534 = vsel %vm1502, %v1112, 0.0
        %v1535 = vsel %vm1503, %v1111, 0.0
        %v1536 = vsel %vm1504, %v1110, 0.0
        %v1537 = vsel %vm1505, %v1109, 0.0
        %v1538 = vsel %vm1506, %v1108, 0.0
        %v1539 = vsel %vm1507, %v1139, 0.0
        %v1540 = vpack.c.bf16 %v1509, %v1508
        %v1541 = vpack.c.bf16 %v1511, %v1510
        %v1542 = vpack.c.bf16 %v1513, %v1512
        %v1543 = vpack.c.bf16 %v1515, %v1514
        %v1544 = vpack.c.bf16 %v1517, %v1516
        %v1545 = vpack.c.bf16 %v1519, %v1518
        %v1546 = vpack.c.bf16 %v1521, %v1520
        %v1547 = vpack.c.bf16 %v1523, %v1522
        %v1548 = vpack.c.bf16 %v1525, %v1524
        %v1549 = vpack.c.bf16 %v1527, %v1526
        %v1550 = vpack.c.bf16 %v1529, %v1528
        %v1551 = vpack.c.bf16 %v1531, %v1530
        %v1552 = vpack.c.bf16 %v1533, %v1532
        %v1553 = vpack.c.bf16 %v1535, %v1534
        %v1554 = vpack.c.bf16 %v1537, %v1536
        %v1555 = vpack.c.bf16 %v1539, %v1538
        %vm1556 = vcmp.lt.s32.totalorder %v626, 240
        %vm1557 = vcmp.lt.s32.totalorder %v627, 240
        %vm1558 = vcmp.lt.s32.totalorder %v628, 240
        %vm1559 = vcmp.lt.s32.totalorder %v629, 240
        %vm1560 = vcmp.lt.s32.totalorder %v630, 240
        %vm1561 = vcmp.lt.s32.totalorder %v631, 240
        %vm1562 = vcmp.lt.s32.totalorder %v632, 240
        %vm1563 = vcmp.lt.s32.totalorder %v633, 240
        %vm1564 = vcmp.lt.s32.totalorder %v634, 240
        %vm1565 = vcmp.lt.s32.totalorder %v635, 240
        %vm1566 = vcmp.lt.s32.totalorder %v636, 240
        %vm1567 = vcmp.lt.s32.totalorder %v637, 240
        %vm1568 = vcmp.lt.s32.totalorder %v638, 240
        %vm1569 = vcmp.lt.s32.totalorder %v639, 240
        %vm1570 = vcmp.lt.s32.totalorder %v640, 240
        %vm1571 = vcmp.lt.s32.totalorder %v641, 240
        %vm1572 = vcmp.lt.s32.totalorder %v642, 240
        %vm1573 = vcmp.lt.s32.totalorder %v643, 240
        %vm1574 = vcmp.lt.s32.totalorder %v644, 240
        %vm1575 = vcmp.lt.s32.totalorder %v645, 240
        %vm1576 = vcmp.lt.s32.totalorder %v646, 240
        %vm1577 = vcmp.lt.s32.totalorder %v647, 240
        %vm1578 = vcmp.lt.s32.totalorder %v648, 240
        %vm1579 = vcmp.lt.s32.totalorder %v649, 240
        %vm1580 = vcmp.lt.s32.totalorder %v650, 240
        %vm1581 = vcmp.lt.s32.totalorder %v651, 240
        %vm1582 = vcmp.lt.s32.totalorder %v652, 240
        %vm1583 = vcmp.lt.s32.totalorder %v653, 240
        %vm1584 = vcmp.lt.s32.totalorder %v654, 240
        %vm1585 = vcmp.lt.s32.totalorder %v655, 240
        %vm1586 = vcmp.lt.s32.totalorder %v656, 240
        %vm1587 = vcmp.lt.s32.totalorder %v657, 240
        %vm1588 = vmand %vm1556, %vm787
        %vm1589 = vmand %vm1557, %vm788
        %vm1590 = vmand %vm1558, %vm789
        %vm1591 = vmand %vm1559, %vm790
        %vm1592 = vmand %vm1560, %vm791
        %vm1593 = vmand %vm1561, %vm792
        %vm1594 = vmand %vm1562, %vm793
        %vm1595 = vmand %vm1563, %vm794
        %vm1596 = vmand %vm1564, %vm795
        %vm1597 = vmand %vm1565, %vm796
        %vm1598 = vmand %vm1566, %vm797
        %vm1599 = vmand %vm1567, %vm798
        %vm1600 = vmand %vm1568, %vm799
        %vm1601 = vmand %vm1569, %vm800
        %vm1602 = vmand %vm1570, %vm801
        %vm1603 = vmand %vm1571, %vm802
        %vm1604 = vmand %vm1572, %vm803
        %vm1605 = vmand %vm1573, %vm804
        %vm1606 = vmand %vm1574, %vm805
        %vm1607 = vmand %vm1575, %vm806
        %vm1608 = vmand %vm1576, %vm807
        %vm1609 = vmand %vm1577, %vm808
        %vm1610 = vmand %vm1578, %vm809
        %vm1611 = vmand %vm1579, %vm810
        %vm1612 = vmand %vm1580, %vm811
        %vm1613 = vmand %vm1581, %vm812
        %vm1614 = vmand %vm1582, %vm813
        %vm1615 = vmand %vm1583, %vm814
        %vm1616 = vmand %vm1584, %vm815
        %vm1617 = vmand %vm1585, %vm816
        %vm1618 = vmand %vm1586, %vm817
        %vm1619 = vmand %vm1587, %vm818
        %v1620 = vsel %vm1588, 1, 0
        %v1621 = vsel %vm1589, 1, 0
        %v1622 = vsel %vm1590, 1, 0
        %v1623 = vsel %vm1591, 1, 0
        %v1624 = vsel %vm1592, 1, 0
        %v1625 = vsel %vm1593, 1, 0
        %v1626 = vsel %vm1594, 1, 0
        %v1627 = vsel %vm1595, 1, 0
        %v1628 = vsel %vm1596, 1, 0
        %v1629 = vsel %vm1597, 1, 0
        %v1630 = vsel %vm1598, 1, 0
        %v1631 = vsel %vm1599, 1, 0
        %v1632 = vsel %vm1600, 1, 0
        %v1633 = vsel %vm1601, 1, 0
        %v1634 = vsel %vm1602, 1, 0
        %v1635 = vsel %vm1603, 1, 0
        %v1636 = vsel %vm1604, 1, 0
        %v1637 = vsel %vm1605, 1, 0
        %v1638 = vsel %vm1606, 1, 0
        %v1639 = vsel %vm1607, 1, 0
        %v1640 = vsel %vm1608, 1, 0
        %v1641 = vsel %vm1609, 1, 0
        %v1642 = vsel %vm1610, 1, 0
        %v1643 = vsel %vm1611, 1, 0
        %v1644 = vsel %vm1612, 1, 0
        %v1645 = vsel %vm1613, 1, 0
        %v1646 = vsel %vm1614, 1, 0
        %v1647 = vsel %vm1615, 1, 0
        %v1648 = vsel %vm1616, 1, 0
        %v1649 = vsel %vm1617, 1, 0
        %v1650 = vsel %vm1618, 1, 0
        %v1651 = vsel %vm1619, 1, 0
        %vm1652 = vcmp.eq.s32.totalorder %v1620, 1
        %vm1653 = vcmp.eq.s32.totalorder %v1621, 1
        %vm1654 = vcmp.eq.s32.totalorder %v1622, 1
        %vm1655 = vcmp.eq.s32.totalorder %v1623, 1
        %vm1656 = vcmp.eq.s32.totalorder %v1624, 1
        %vm1657 = vcmp.eq.s32.totalorder %v1625, 1
        %vm1658 = vcmp.eq.s32.totalorder %v1626, 1
        %vm1659 = vcmp.eq.s32.totalorder %v1627, 1
        %vm1660 = vcmp.eq.s32.totalorder %v1628, 1
        %vm1661 = vcmp.eq.s32.totalorder %v1629, 1
        %vm1662 = vcmp.eq.s32.totalorder %v1630, 1
        %vm1663 = vcmp.eq.s32.totalorder %v1631, 1
        %vm1664 = vcmp.eq.s32.totalorder %v1632, 1
        %vm1665 = vcmp.eq.s32.totalorder %v1633, 1
        %vm1666 = vcmp.eq.s32.totalorder %v1634, 1
        %vm1667 = vcmp.eq.s32.totalorder %v1635, 1
        %vm1668 = vcmp.eq.s32.totalorder %v1636, 1
        %vm1669 = vcmp.eq.s32.totalorder %v1637, 1
        %vm1670 = vcmp.eq.s32.totalorder %v1638, 1
        %vm1671 = vcmp.eq.s32.totalorder %v1639, 1
        %vm1672 = vcmp.eq.s32.totalorder %v1640, 1
        %vm1673 = vcmp.eq.s32.totalorder %v1641, 1
        %vm1674 = vcmp.eq.s32.totalorder %v1642, 1
        %vm1675 = vcmp.eq.s32.totalorder %v1643, 1
        %vm1676 = vcmp.eq.s32.totalorder %v1644, 1
        %vm1677 = vcmp.eq.s32.totalorder %v1645, 1
        %vm1678 = vcmp.eq.s32.totalorder %v1646, 1
        %vm1679 = vcmp.eq.s32.totalorder %v1647, 1
        %vm1680 = vcmp.eq.s32.totalorder %v1648, 1
        %vm1681 = vcmp.eq.s32.totalorder %v1649, 1
        %vm1682 = vcmp.eq.s32.totalorder %v1650, 1
        %vm1683 = vcmp.eq.s32.totalorder %v1651, 1
        %v1684 = vsel %vm1652, %v752, 0.0
        %v1685 = vsel %vm1653, %v751, 0.0
        %v1686 = vsel %vm1654, %v750, 0.0
        %v1687 = vsel %vm1655, %v749, 0.0
        %v1688 = vsel %vm1656, %v748, 0.0
        %v1689 = vsel %vm1657, %v747, 0.0
        %v1690 = vsel %vm1658, %v746, 0.0
        %v1691 = vsel %vm1659, %v745, 0.0
        %v1692 = vsel %vm1660, %v744, 0.0
        %v1693 = vsel %vm1661, %v743, 0.0
        %v1694 = vsel %vm1662, %v742, 0.0
        %v1695 = vsel %vm1663, %v741, 0.0
        %v1696 = vsel %vm1664, %v740, 0.0
        %v1697 = vsel %vm1665, %v739, 0.0
        %v1698 = vsel %vm1666, %v738, 0.0
        %v1699 = vsel %vm1667, %v737, 0.0
        %v1700 = vsel %vm1668, %v736, 0.0
        %v1701 = vsel %vm1669, %v735, 0.0
        %v1702 = vsel %vm1670, %v734, 0.0
        %v1703 = vsel %vm1671, %v733, 0.0
        %v1704 = vsel %vm1672, %v732, 0.0
        %v1705 = vsel %vm1673, %v731, 0.0
        %v1706 = vsel %vm1674, %v730, 0.0
        %v1707 = vsel %vm1675, %v729, 0.0
        %v1708 = vsel %vm1676, %v728, 0.0
        %v1709 = vsel %vm1677, %v727, 0.0
        %v1710 = vsel %vm1678, %v726, 0.0
        %v1711 = vsel %vm1679, %v725, 0.0
        %v1712 = vsel %vm1680, %v724, 0.0
        %v1713 = vsel %vm1681, %v723, 0.0
        %v1714 = vsel %vm1682, %v754, 0.0
        %v1715 = vsel %vm1683, %v753, 0.0
        %v1716 = vpack.c.bf16 %v1685, %v1684
        %v1717 = vpack.c.bf16 %v1687, %v1686
        %v1718 = vpack.c.bf16 %v1689, %v1688
        %v1719 = vpack.c.bf16 %v1691, %v1690
        %v1720 = vpack.c.bf16 %v1693, %v1692
        %v1721 = vpack.c.bf16 %v1695, %v1694
        %v1722 = vpack.c.bf16 %v1697, %v1696
        %v1723 = vpack.c.bf16 %v1699, %v1698
        %v1724 = vpack.c.bf16 %v1701, %v1700
        %v1725 = vpack.c.bf16 %v1703, %v1702
        %v1726 = vpack.c.bf16 %v1705, %v1704
        %v1727 = vpack.c.bf16 %v1707, %v1706
        %v1728 = vpack.c.bf16 %v1709, %v1708
        %v1729 = vpack.c.bf16 %v1711, %v1710
        %v1730 = vpack.c.bf16 %v1713, %v1712
        %v1731 = vpack.c.bf16 %v1715, %v1714
        %v1732 = vsel %vm1556, 1, 0
        %v1733 = vsel %vm1557, 1, 0
        %v1734 = vsel %vm1558, 1, 0
        %v1735 = vsel %vm1559, 1, 0
        %v1736 = vsel %vm1560, 1, 0
        %v1737 = vsel %vm1561, 1, 0
        %v1738 = vsel %vm1562, 1, 0
        %v1739 = vsel %vm1563, 1, 0
        %v1740 = vsel %vm1564, 1, 0
        %v1741 = vsel %vm1565, 1, 0
        %v1742 = vsel %vm1566, 1, 0
        %v1743 = vsel %vm1567, 1, 0
        %v1744 = vsel %vm1568, 1, 0
        %v1745 = vsel %vm1569, 1, 0
        %v1746 = vsel %vm1570, 1, 0
        %v1747 = vsel %vm1571, 1, 0
        %v1748 = vsel %vm1572, 1, 0
        %v1749 = vsel %vm1573, 1, 0
        %v1750 = vsel %vm1574, 1, 0
        %v1751 = vsel %vm1575, 1, 0
        %v1752 = vsel %vm1576, 1, 0
        %v1753 = vsel %vm1577, 1, 0
        %v1754 = vsel %vm1578, 1, 0
        %v1755 = vsel %vm1579, 1, 0
        %v1756 = vsel %vm1580, 1, 0
        %v1757 = vsel %vm1581, 1, 0
        %v1758 = vsel %vm1582, 1, 0
        %v1759 = vsel %vm1583, 1, 0
        %v1760 = vsel %vm1584, 1, 0
        %v1761 = vsel %vm1585, 1, 0
        %v1762 = vsel %vm1586, 1, 0
        %v1763 = vsel %vm1587, 1, 0
        %vm1764 = vcmp.eq.s32.totalorder %v1732, 1
        %vm1765 = vcmp.eq.s32.totalorder %v1733, 1
        %vm1766 = vcmp.eq.s32.totalorder %v1734, 1
        %vm1767 = vcmp.eq.s32.totalorder %v1735, 1
        %vm1768 = vcmp.eq.s32.totalorder %v1736, 1
        %vm1769 = vcmp.eq.s32.totalorder %v1737, 1
        %vm1770 = vcmp.eq.s32.totalorder %v1738, 1
        %vm1771 = vcmp.eq.s32.totalorder %v1739, 1
        %vm1772 = vcmp.eq.s32.totalorder %v1740, 1
        %vm1773 = vcmp.eq.s32.totalorder %v1741, 1
        %vm1774 = vcmp.eq.s32.totalorder %v1742, 1
        %vm1775 = vcmp.eq.s32.totalorder %v1743, 1
        %vm1776 = vcmp.eq.s32.totalorder %v1744, 1
        %vm1777 = vcmp.eq.s32.totalorder %v1745, 1
        %vm1778 = vcmp.eq.s32.totalorder %v1746, 1
        %vm1779 = vcmp.eq.s32.totalorder %v1747, 1
        %vm1780 = vcmp.eq.s32.totalorder %v1748, 1
        %vm1781 = vcmp.eq.s32.totalorder %v1749, 1
        %vm1782 = vcmp.eq.s32.totalorder %v1750, 1
        %vm1783 = vcmp.eq.s32.totalorder %v1751, 1
        %vm1784 = vcmp.eq.s32.totalorder %v1752, 1
        %vm1785 = vcmp.eq.s32.totalorder %v1753, 1
        %vm1786 = vcmp.eq.s32.totalorder %v1754, 1
        %vm1787 = vcmp.eq.s32.totalorder %v1755, 1
        %vm1788 = vcmp.eq.s32.totalorder %v1756, 1
        %vm1789 = vcmp.eq.s32.totalorder %v1757, 1
        %vm1790 = vcmp.eq.s32.totalorder %v1758, 1
        %vm1791 = vcmp.eq.s32.totalorder %v1759, 1
        %vm1792 = vcmp.eq.s32.totalorder %v1760, 1
        %vm1793 = vcmp.eq.s32.totalorder %v1761, 1
        %vm1794 = vcmp.eq.s32.totalorder %v1762, 1
        %vm1795 = vcmp.eq.s32.totalorder %v1763, 1
        %v1796 = vsel %vm1764, %v563, 0.0
        %v1797 = vsel %vm1765, %v564, 0.0
        %v1798 = vsel %vm1766, %v565, 0.0
        %v1799 = vsel %vm1767, %v566, 0.0
        %v1800 = vsel %vm1768, %v567, 0.0
        %v1801 = vsel %vm1769, %v568, 0.0
        %v1802 = vsel %vm1770, %v569, 0.0
        %v1803 = vsel %vm1771, %v570, 0.0
        %v1804 = vsel %vm1772, %v571, 0.0
        %v1805 = vsel %vm1773, %v572, 0.0
        %v1806 = vsel %vm1774, %v573, 0.0
        %v1807 = vsel %vm1775, %v574, 0.0
        %v1808 = vsel %vm1776, %v575, 0.0
        %v1809 = vsel %vm1777, %v576, 0.0
        %v1810 = vsel %vm1778, %v577, 0.0
        %v1811 = vsel %vm1779, %v578, 0.0
        %v1812 = vsel %vm1780, %v579, 0.0
        %v1813 = vsel %vm1781, %v580, 0.0
        %v1814 = vsel %vm1782, %v581, 0.0
        %v1815 = vsel %vm1783, %v582, 0.0
        %v1816 = vsel %vm1784, %v583, 0.0
        %v1817 = vsel %vm1785, %v584, 0.0
        %v1818 = vsel %vm1786, %v585, 0.0
        %v1819 = vsel %vm1787, %v586, 0.0
        %v1820 = vsel %vm1788, %v587, 0.0
        %v1821 = vsel %vm1789, %v588, 0.0
        %v1822 = vsel %vm1790, %v589, 0.0
        %v1823 = vsel %vm1791, %v590, 0.0
        %v1824 = vsel %vm1792, %v591, 0.0
        %v1825 = vsel %vm1793, %v592, 0.0
        %v1826 = vsel %vm1794, %v561, 0.0
        %v1827 = vsel %vm1795, %v562, 0.0
        %v1828 = vpack.c.bf16 %v1797, %v1796
        %v1829 = vpack.c.bf16 %v1799, %v1798
        %v1830 = vpack.c.bf16 %v1801, %v1800
        %v1831 = vpack.c.bf16 %v1803, %v1802
        %v1832 = vpack.c.bf16 %v1805, %v1804
        %v1833 = vpack.c.bf16 %v1807, %v1806
        %v1834 = vpack.c.bf16 %v1809, %v1808
        %v1835 = vpack.c.bf16 %v1811, %v1810
        %v1836 = vpack.c.bf16 %v1813, %v1812
        %v1837 = vpack.c.bf16 %v1815, %v1814
        %v1838 = vpack.c.bf16 %v1817, %v1816
        %v1839 = vpack.c.bf16 %v1819, %v1818
        %v1840 = vpack.c.bf16 %v1821, %v1820
        %v1841 = vpack.c.bf16 %v1823, %v1822
        %v1842 = vpack.c.bf16 %v1825, %v1824
        %v1843 = vpack.c.bf16 %v1827, %v1826
        %vm1844 = vmand %vm1556, %vm1140
        %vm1845 = vmand %vm1557, %vm1141
        %vm1846 = vmand %vm1558, %vm1142
        %vm1847 = vmand %vm1559, %vm1143
        %vm1848 = vmand %vm1560, %vm1144
        %vm1849 = vmand %vm1561, %vm1145
        %vm1850 = vmand %vm1562, %vm1146
        %vm1851 = vmand %vm1563, %vm1147
        %vm1852 = vmand %vm1564, %vm1148
        %vm1853 = vmand %vm1565, %vm1149
        %vm1854 = vmand %vm1566, %vm1150
        %vm1855 = vmand %vm1567, %vm1151
        %vm1856 = vmand %vm1568, %vm1152
        %vm1857 = vmand %vm1569, %vm1153
        %vm1858 = vmand %vm1570, %vm1154
        %vm1859 = vmand %vm1571, %vm1155
        %vm1860 = vmand %vm1572, %vm1156
        %vm1861 = vmand %vm1573, %vm1157
        %vm1862 = vmand %vm1574, %vm1158
        %vm1863 = vmand %vm1575, %vm1159
        %vm1864 = vmand %vm1576, %vm1160
        %vm1865 = vmand %vm1577, %vm1161
        %vm1866 = vmand %vm1578, %vm1162
        %vm1867 = vmand %vm1579, %vm1163
        %vm1868 = vmand %vm1580, %vm1164
        %vm1869 = vmand %vm1581, %vm1165
        %vm1870 = vmand %vm1582, %vm1166
        %vm1871 = vmand %vm1583, %vm1167
        %vm1872 = vmand %vm1584, %vm1168
        %vm1873 = vmand %vm1585, %vm1169
        %vm1874 = vmand %vm1586, %vm1170
        %vm1875 = vmand %vm1587, %vm1171
        %v1876 = vsel %vm1844, 1, 0
        %v1877 = vsel %vm1845, 1, 0
        %v1878 = vsel %vm1846, 1, 0
        %v1879 = vsel %vm1847, 1, 0
        %v1880 = vsel %vm1848, 1, 0
        %v1881 = vsel %vm1849, 1, 0
        %v1882 = vsel %vm1850, 1, 0
        %v1883 = vsel %vm1851, 1, 0
        %v1884 = vsel %vm1852, 1, 0
        %v1885 = vsel %vm1853, 1, 0
        %v1886 = vsel %vm1854, 1, 0
        %v1887 = vsel %vm1855, 1, 0
        %v1888 = vsel %vm1856, 1, 0
        %v1889 = vsel %vm1857, 1, 0
        %v1890 = vsel %vm1858, 1, 0
        %v1891 = vsel %vm1859, 1, 0
        %v1892 = vsel %vm1860, 1, 0
        %v1893 = vsel %vm1861, 1, 0
        %v1894 = vsel %vm1862, 1, 0
        %v1895 = vsel %vm1863, 1, 0
        %v1896 = vsel %vm1864, 1, 0
        %v1897 = vsel %vm1865, 1, 0
        %v1898 = vsel %vm1866, 1, 0
        %v1899 = vsel %vm1867, 1, 0
        %v1900 = vsel %vm1868, 1, 0
        %v1901 = vsel %vm1869, 1, 0
        %v1902 = vsel %vm1870, 1, 0
        %v1903 = vsel %vm1871, 1, 0
        %v1904 = vsel %vm1872, 1, 0
        %v1905 = vsel %vm1873, 1, 0
        %v1906 = vsel %vm1874, 1, 0
        %v1907 = vsel %vm1875, 1, 0
        %vm1908 = vcmp.eq.s32.totalorder %v1876, 1
        %vm1909 = vcmp.eq.s32.totalorder %v1877, 1
        %vm1910 = vcmp.eq.s32.totalorder %v1878, 1
        %vm1911 = vcmp.eq.s32.totalorder %v1879, 1
        %vm1912 = vcmp.eq.s32.totalorder %v1880, 1
        %vm1913 = vcmp.eq.s32.totalorder %v1881, 1
        %vm1914 = vcmp.eq.s32.totalorder %v1882, 1
        %vm1915 = vcmp.eq.s32.totalorder %v1883, 1
        %vm1916 = vcmp.eq.s32.totalorder %v1884, 1
        %vm1917 = vcmp.eq.s32.totalorder %v1885, 1
        %vm1918 = vcmp.eq.s32.totalorder %v1886, 1
        %vm1919 = vcmp.eq.s32.totalorder %v1887, 1
        %vm1920 = vcmp.eq.s32.totalorder %v1888, 1
        %vm1921 = vcmp.eq.s32.totalorder %v1889, 1
        %vm1922 = vcmp.eq.s32.totalorder %v1890, 1
        %vm1923 = vcmp.eq.s32.totalorder %v1891, 1
        %vm1924 = vcmp.eq.s32.totalorder %v1892, 1
        %vm1925 = vcmp.eq.s32.totalorder %v1893, 1
        %vm1926 = vcmp.eq.s32.totalorder %v1894, 1
        %vm1927 = vcmp.eq.s32.totalorder %v1895, 1
        %vm1928 = vcmp.eq.s32.totalorder %v1896, 1
        %vm1929 = vcmp.eq.s32.totalorder %v1897, 1
        %vm1930 = vcmp.eq.s32.totalorder %v1898, 1
        %vm1931 = vcmp.eq.s32.totalorder %v1899, 1
        %vm1932 = vcmp.eq.s32.totalorder %v1900, 1
        %vm1933 = vcmp.eq.s32.totalorder %v1901, 1
        %vm1934 = vcmp.eq.s32.totalorder %v1902, 1
        %vm1935 = vcmp.eq.s32.totalorder %v1903, 1
        %vm1936 = vcmp.eq.s32.totalorder %v1904, 1
        %vm1937 = vcmp.eq.s32.totalorder %v1905, 1
        %vm1938 = vcmp.eq.s32.totalorder %v1906, 1
        %vm1939 = vcmp.eq.s32.totalorder %v1907, 1
        %v1940 = vsel %vm1908, %v1136, 0.0
        %v1941 = vsel %vm1909, %v1135, 0.0
        %v1942 = vsel %vm1910, %v1134, 0.0
        %v1943 = vsel %vm1911, %v1133, 0.0
        %v1944 = vsel %vm1912, %v1132, 0.0
        %v1945 = vsel %vm1913, %v1131, 0.0
        %v1946 = vsel %vm1914, %v1130, 0.0
        %v1947 = vsel %vm1915, %v1129, 0.0
        %v1948 = vsel %vm1916, %v1128, 0.0
        %v1949 = vsel %vm1917, %v1127, 0.0
        %v1950 = vsel %vm1918, %v1126, 0.0
        %v1951 = vsel %vm1919, %v1125, 0.0
        %v1952 = vsel %vm1920, %v1124, 0.0
        %v1953 = vsel %vm1921, %v1123, 0.0
        %v1954 = vsel %vm1922, %v1122, 0.0
        %v1955 = vsel %vm1923, %v1121, 0.0
        %v1956 = vsel %vm1924, %v1120, 0.0
        %v1957 = vsel %vm1925, %v1119, 0.0
        %v1958 = vsel %vm1926, %v1118, 0.0
        %v1959 = vsel %vm1927, %v1117, 0.0
        %v1960 = vsel %vm1928, %v1116, 0.0
        %v1961 = vsel %vm1929, %v1115, 0.0
        %v1962 = vsel %vm1930, %v1114, 0.0
        %v1963 = vsel %vm1931, %v1113, 0.0
        %v1964 = vsel %vm1932, %v1112, 0.0
        %v1965 = vsel %vm1933, %v1111, 0.0
        %v1966 = vsel %vm1934, %v1110, 0.0
        %v1967 = vsel %vm1935, %v1109, 0.0
        %v1968 = vsel %vm1936, %v1108, 0.0
        %v1969 = vsel %vm1937, %v1139, 0.0
        %v1970 = vsel %vm1938, %v1138, 0.0
        %v1971 = vsel %vm1939, %v1137, 0.0
        %v1972 = vpack.c.bf16 %v1941, %v1940
        %v1973 = vpack.c.bf16 %v1943, %v1942
        %v1974 = vpack.c.bf16 %v1945, %v1944
        %v1975 = vpack.c.bf16 %v1947, %v1946
        %v1976 = vpack.c.bf16 %v1949, %v1948
        %v1977 = vpack.c.bf16 %v1951, %v1950
        %v1978 = vpack.c.bf16 %v1953, %v1952
        %v1979 = vpack.c.bf16 %v1955, %v1954
        %v1980 = vpack.c.bf16 %v1957, %v1956
        %v1981 = vpack.c.bf16 %v1959, %v1958
        %v1982 = vpack.c.bf16 %v1961, %v1960
        %v1983 = vpack.c.bf16 %v1963, %v1962
        %v1984 = vpack.c.bf16 %v1965, %v1964
        %v1985 = vpack.c.bf16 %v1967, %v1966
        %v1986 = vpack.c.bf16 %v1969, %v1968
        %v1987 = vpack.c.bf16 %v1971, %v1970
        %v1988 = vld [vmem:[%s3] sm:$0xf]
        %v1989 = vld [vmem:[%s3 + $0x4] sm:$0xf]
        %v1990 = vld [vmem:[%s3 + $0x8] sm:$0xf]
        %v1991 = vld [vmem:[%s3 + $0xc] sm:$0xf]
        %v1992 = vld [vmem:[%s3 + $0x10] sm:$0xf]
        %v1993 = vld [vmem:[%s3 + $0x14] sm:$0xf]
        %v1994 = vld [vmem:[%s3 + $0x18] sm:$0xf]
        %v1995 = vld [vmem:[%s3 + $0x1c] sm:$0xf]
        %v1996 = vld [vmem:[%s3 + $0x20] sm:$0xf]
        %v1997 = vld [vmem:[%s3 + $0x24] sm:$0xf]
        %v1998 = vld [vmem:[%s3 + $0x28] sm:$0xf]
        %v1999 = vld [vmem:[%s3 + $0x2c] sm:$0xf]
        %v2000 = vld [vmem:[%s3 + $0x30] sm:$0xf]
        %v2001 = vld [vmem:[%s3 + $0x34] sm:$0xf]
        %v2002 = vld [vmem:[%s3 + $0x38] sm:$0xf]
        %v2003 = vld [vmem:[%s3 + $0x3c] sm:$0xf]
        %v2004 = vld [vmem:[%s3 + $0x40] sm:$0xf]
        %v2005 = vld [vmem:[%s3 + $0x44] sm:$0xf]
        %v2006 = vld [vmem:[%s3 + $0x48] sm:$0xf]
        %v2007 = vld [vmem:[%s3 + $0x4c] sm:$0xf]
        %v2008 = vld [vmem:[%s3 + $0x50] sm:$0xf]
        %v2009 = vld [vmem:[%s3 + $0x54] sm:$0xf]
        %v2010 = vld [vmem:[%s3 + $0x58] sm:$0xf]
        %v2011 = vld [vmem:[%s3 + $0x5c] sm:$0xf]
        %v2012 = vld [vmem:[%s3 + $0x60] sm:$0xf]
        %v2013 = vld [vmem:[%s3 + $0x64] sm:$0xf]
        %v2014 = vld [vmem:[%s3 + $0x68] sm:$0xf]
        %v2015 = vld [vmem:[%s3 + $0x6c] sm:$0xf]
        %v2016 = vld [vmem:[%s3 + $0x70] sm:$0xf]
        %v2017 = vld [vmem:[%s3 + $0x74] sm:$0xf]
        %v2018 = vld [vmem:[%s3 + $0x78] sm:$0xf]
        %v2019 = vld [vmem:[%s3 + $0x7c] sm:$0xf]
        %v2020 = vld [vmem:[%s3 + $0x80] sm:$0xf]
        %v2021 = vld [vmem:[%s3 + $0x84] sm:$0xf]
        %v2022 = vld [vmem:[%s3 + $0x88] sm:$0xf]
        %v2023 = vld [vmem:[%s3 + $0x8c] sm:$0xf]
        %v2024 = vld [vmem:[%s3 + $0x90] sm:$0xf]
        %v2025 = vld [vmem:[%s3 + $0x94] sm:$0xf]
        %v2026 = vld [vmem:[%s3 + $0x98] sm:$0xf]
        %v2027 = vld [vmem:[%s3 + $0x9c] sm:$0xf]
        %v2028 = vld [vmem:[%s3 + $0xa0] sm:$0xf]
        %v2029 = vld [vmem:[%s3 + $0xa4] sm:$0xf]
        %v2030 = vld [vmem:[%s3 + $0xa8] sm:$0xf]
        %v2031 = vld [vmem:[%s3 + $0xac] sm:$0xf]
        %v2032 = vld [vmem:[%s3 + $0xb0] sm:$0xf]
        %v2033 = vld [vmem:[%s3 + $0xb4] sm:$0xf]
        %v2034 = vld [vmem:[%s3 + $0xb8] sm:$0xf]
        %v2035 = vld [vmem:[%s3 + $0xbc] sm:$0xf]
        %v2036 = vld [vmem:[%s3 + $0xc0] sm:$0xf]
        %v2037 = vld [vmem:[%s3 + $0xc4] sm:$0xf]
        %v2038 = vld [vmem:[%s3 + $0xc8] sm:$0xf]
        %v2039 = vld [vmem:[%s3 + $0xcc] sm:$0xf]
        %v2040 = vld [vmem:[%s3 + $0xd0] sm:$0xf]
        %v2041 = vld [vmem:[%s3 + $0xd4] sm:$0xf]
        %v2042 = vld [vmem:[%s3 + $0xd8] sm:$0xf]
        %v2043 = vld [vmem:[%s3 + $0xdc] sm:$0xf]
        %v2044 = vld [vmem:[%s3 + $0xe0] sm:$0xf]
        %v2045 = vld [vmem:[%s3 + $0xe4] sm:$0xf]
        %v2046 = vld [vmem:[%s3 + $0xe8] sm:$0xf]
        %v2047 = vld [vmem:[%s3 + $0xec] sm:$0xf]
        %v2048 = vld [vmem:[%s3 + $0xf0] sm:$0xf]
        %v2049 = vld [vmem:[%s3 + $0xf4] sm:$0xf]
        %v2050 = vld [vmem:[%s3 + $0xf8] sm:$0xf]
        %v2051 = vld [vmem:[%s3 + $0xfc] sm:$0xf]
        %v2052 = vld [vmem:[%s3 + $0x100] sm:$0xf]
        %v2053 = vld [vmem:[%s3 + $0x104] sm:$0xf]
        %v2054 = vld [vmem:[%s3 + $0x108] sm:$0xf]
        %v2055 = vld [vmem:[%s3 + $0x10c] sm:$0xf]
        %v2056 = vld [vmem:[%s3 + $0x110] sm:$0xf]
        %v2057 = vld [vmem:[%s3 + $0x114] sm:$0xf]
        %v2058 = vld [vmem:[%s3 + $0x118] sm:$0xf]
        %v2059 = vld [vmem:[%s3 + $0x11c] sm:$0xf]
        %v2060 = vld [vmem:[%s3 + $0x120] sm:$0xf]
        %v2061 = vld [vmem:[%s3 + $0x124] sm:$0xf]
        %v2062 = vld [vmem:[%s3 + $0x128] sm:$0xf]
        %v2063 = vld [vmem:[%s3 + $0x12c] sm:$0xf]
        %v2064 = vld [vmem:[%s3 + $0x130] sm:$0xf]
        %v2065 = vld [vmem:[%s3 + $0x134] sm:$0xf]
        %v2066 = vld [vmem:[%s3 + $0x138] sm:$0xf]
        %v2067 = vld [vmem:[%s3 + $0x13c] sm:$0xf]
        %v2068 = vld [vmem:[%s3 + $0x140] sm:$0xf]
        %v2069 = vld [vmem:[%s3 + $0x144] sm:$0xf]
        %v2070 = vld [vmem:[%s3 + $0x148] sm:$0xf]
        %v2071 = vld [vmem:[%s3 + $0x14c] sm:$0xf]
        %v2072 = vld [vmem:[%s3 + $0x150] sm:$0xf]
        %v2073 = vld [vmem:[%s3 + $0x154] sm:$0xf]
        %v2074 = vld [vmem:[%s3 + $0x158] sm:$0xf]
        %v2075 = vld [vmem:[%s3 + $0x15c] sm:$0xf]
        %v2076 = vld [vmem:[%s3 + $0x160] sm:$0xf]
        %v2077 = vld [vmem:[%s3 + $0x164] sm:$0xf]
        %v2078 = vld [vmem:[%s3 + $0x168] sm:$0xf]
        %v2079 = vld [vmem:[%s3 + $0x16c] sm:$0xf]
        %v2080 = vld [vmem:[%s3 + $0x170] sm:$0xf]
        %v2081 = vld [vmem:[%s3 + $0x174] sm:$0xf]
        %v2082 = vld [vmem:[%s3 + $0x178] sm:$0xf]
        %v2083 = vld [vmem:[%s3 + $0x17c] sm:$0xf]
        %v2084 = vld [vmem:[%s3 + $0x180] sm:$0xf]
        %v2085 = vld [vmem:[%s3 + $0x184] sm:$0xf]
        %v2086 = vld [vmem:[%s3 + $0x188] sm:$0xf]
        %v2087 = vld [vmem:[%s3 + $0x18c] sm:$0xf]
        %v2088 = vld [vmem:[%s3 + $0x190] sm:$0xf]
        %v2089 = vld [vmem:[%s3 + $0x194] sm:$0xf]
        %v2090 = vld [vmem:[%s3 + $0x198] sm:$0xf]
        %v2091 = vld [vmem:[%s3 + $0x19c] sm:$0xf]
        %v2092 = vld [vmem:[%s3 + $0x1a0] sm:$0xf]
        %v2093 = vld [vmem:[%s3 + $0x1a4] sm:$0xf]
        %v2094 = vld [vmem:[%s3 + $0x1a8] sm:$0xf]
        %v2095 = vld [vmem:[%s3 + $0x1ac] sm:$0xf]
        %v2096 = vld [vmem:[%s3 + $0x1b0] sm:$0xf]
        %v2097 = vld [vmem:[%s3 + $0x1b4] sm:$0xf]
        %v2098 = vld [vmem:[%s3 + $0x1b8] sm:$0xf]
        %v2099 = vld [vmem:[%s3 + $0x1bc] sm:$0xf]
        %v2100 = vld [vmem:[%s3 + $0x1c0] sm:$0xf]
        %v2101 = vld [vmem:[%s3 + $0x1c4] sm:$0xf]
        %v2102 = vld [vmem:[%s3 + $0x1c8] sm:$0xf]
        %v2103 = vld [vmem:[%s3 + $0x1cc] sm:$0xf]
        %v2104 = vld [vmem:[%s3 + $0x1d0] sm:$0xf]
        %v2105 = vld [vmem:[%s3 + $0x1d4] sm:$0xf]
        %v2106 = vld [vmem:[%s3 + $0x1d8] sm:$0xf]
        %v2107 = vld [vmem:[%s3 + $0x1dc] sm:$0xf]
        %v2108 = vld [vmem:[%s3 + $0x1e0] sm:$0xf]
        %v2109 = vld [vmem:[%s3 + $0x1e4] sm:$0xf]
        %v2110 = vld [vmem:[%s3 + $0x1e8] sm:$0xf]
        %v2111 = vld [vmem:[%s3 + $0x1ec] sm:$0xf]
        %v2112 = vld [vmem:[%s3 + $0x1f0] sm:$0xf]
        %v2113 = vld [vmem:[%s3 + $0x1f4] sm:$0xf]
        %v2114 = vld [vmem:[%s3 + $0x1f8] sm:$0xf]
        %v2115 = vld [vmem:[%s3 + $0x1fc] sm:$0xf]
        %v2116 = vld [vmem:[%s3 + $0x200] sm:$0xf]
        %v2117 = vld [vmem:[%s3 + $0x204] sm:$0xf]
        %v2118 = vld [vmem:[%s3 + $0x208] sm:$0xf]
        %v2119 = vld [vmem:[%s3 + $0x20c] sm:$0xf]
        %v2120 = vld [vmem:[%s3 + $0x210] sm:$0xf]
        %v2121 = vld [vmem:[%s3 + $0x214] sm:$0xf]
        %v2122 = vld [vmem:[%s3 + $0x218] sm:$0xf]
        %v2123 = vld [vmem:[%s3 + $0x21c] sm:$0xf]
        %v2124 = vld [vmem:[%s3 + $0x220] sm:$0xf]
        %v2125 = vld [vmem:[%s3 + $0x224] sm:$0xf]
        %v2126 = vld [vmem:[%s3 + $0x228] sm:$0xf]
        %v2127 = vld [vmem:[%s3 + $0x22c] sm:$0xf]
        %v2128 = vld [vmem:[%s3 + $0x230] sm:$0xf]
        %v2129 = vld [vmem:[%s3 + $0x234] sm:$0xf]
        %v2130 = vld [vmem:[%s3 + $0x238] sm:$0xf]
        %v2131 = vld [vmem:[%s3 + $0x23c] sm:$0xf]
        %v2132 = vld [vmem:[%s4] sm:$0x1]
        %v2134 = vlaneseq
        %v2135 = vshrl.u32 %v2134, 7
        %v2136 = vsub.s32 0, %v2135
        %v2137 = vrot.slane %v2132, %v2136
        %v2283 = vunpack.c.l.b16 %v1988
        %v2284 = vunpack.c.l.b16 %v1989
        %v2285 = vunpack.c.l.b16 %v1990
        %v2286 = vunpack.c.l.b16 %v1991
        %v2287 = vunpack.c.l.b16 %v1992
        %v2288 = vunpack.c.l.b16 %v1993
        %v2289 = vunpack.c.l.b16 %v1994
        %v2290 = vunpack.c.l.b16 %v1995
        %v2291 = vunpack.c.l.b16 %v1996
        %v2292 = vunpack.c.l.b16 %v1997
        %v2293 = vunpack.c.l.b16 %v1998
        %v2294 = vunpack.c.l.b16 %v1999
        %v2295 = vunpack.c.l.b16 %v2000
        %v2296 = vunpack.c.l.b16 %v2001
        %v2297 = vunpack.c.l.b16 %v2002
        %v2298 = vunpack.c.l.b16 %v2003
        %v2299 = vunpack.c.l.b16 %v2004
        %v2300 = vunpack.c.l.b16 %v2005
        %v2301 = vunpack.c.l.b16 %v2006
        %v2302 = vunpack.c.l.b16 %v2007
        %v2303 = vunpack.c.l.b16 %v2008
        %v2304 = vunpack.c.l.b16 %v2009
        %v2305 = vunpack.c.l.b16 %v2010
        %v2306 = vunpack.c.l.b16 %v2011
        %v2307 = vunpack.c.l.b16 %v2012
        %v2308 = vunpack.c.l.b16 %v2013
        %v2309 = vunpack.c.l.b16 %v2014
        %v2310 = vunpack.c.l.b16 %v2015
        %v2311 = vunpack.c.l.b16 %v2016
        %v2312 = vunpack.c.l.b16 %v2017
        %v2313 = vunpack.c.l.b16 %v2018
        %v2314 = vunpack.c.l.b16 %v2019
        %v2315 = vunpack.c.l.b16 %v2020
        %v2316 = vunpack.c.l.b16 %v2021
        %v2317 = vunpack.c.l.b16 %v2022
        %v2318 = vunpack.c.l.b16 %v2023
        %v2319 = vunpack.c.l.b16 %v2024
        %v2320 = vunpack.c.l.b16 %v2025
        %v2321 = vunpack.c.l.b16 %v2026
        %v2322 = vunpack.c.l.b16 %v2027
        %v2323 = vunpack.c.l.b16 %v2028
        %v2324 = vunpack.c.l.b16 %v2029
        %v2325 = vunpack.c.l.b16 %v2030
        %v2326 = vunpack.c.l.b16 %v2031
        %v2327 = vunpack.c.l.b16 %v2032
        %v2328 = vunpack.c.l.b16 %v2033
        %v2329 = vunpack.c.l.b16 %v2034
        %v2330 = vunpack.c.l.b16 %v2035
        %v2331 = vunpack.c.l.b16 %v2036
        %v2332 = vunpack.c.l.b16 %v2037
        %v2333 = vunpack.c.l.b16 %v2038
        %v2334 = vunpack.c.l.b16 %v2039
        %v2335 = vunpack.c.l.b16 %v2040
        %v2336 = vunpack.c.l.b16 %v2041
        %v2337 = vunpack.c.l.b16 %v2042
        %v2338 = vunpack.c.l.b16 %v2043
        %v2339 = vunpack.c.l.b16 %v2044
        %v2340 = vunpack.c.l.b16 %v2045
        %v2341 = vunpack.c.l.b16 %v2046
        %v2342 = vunpack.c.l.b16 %v2047
        %v2343 = vunpack.c.l.b16 %v2048
        %v2344 = vunpack.c.l.b16 %v2049
        %v2345 = vunpack.c.l.b16 %v2050
        %v2346 = vunpack.c.l.b16 %v2051
        %v2347 = vunpack.c.l.b16 %v2052
        %v2348 = vunpack.c.l.b16 %v2053
        %v2349 = vunpack.c.l.b16 %v2054
        %v2350 = vunpack.c.l.b16 %v2055
        %v2351 = vunpack.c.l.b16 %v2056
        %v2352 = vunpack.c.l.b16 %v2057
        %v2353 = vunpack.c.l.b16 %v2058
        %v2354 = vunpack.c.l.b16 %v2059
        %v2355 = vunpack.c.l.b16 %v2060
        %v2356 = vunpack.c.l.b16 %v2061
        %v2357 = vunpack.c.l.b16 %v2062
        %v2358 = vunpack.c.l.b16 %v2063
        %v2359 = vunpack.c.l.b16 %v2064
        %v2360 = vunpack.c.l.b16 %v2065
        %v2361 = vunpack.c.l.b16 %v2066
        %v2362 = vunpack.c.l.b16 %v2067
        %v2363 = vunpack.c.l.b16 %v2068
        %v2364 = vunpack.c.l.b16 %v2069
        %v2365 = vunpack.c.l.b16 %v2070
        %v2366 = vunpack.c.l.b16 %v2071
        %v2367 = vunpack.c.l.b16 %v2072
        %v2368 = vunpack.c.l.b16 %v2073
        %v2369 = vunpack.c.l.b16 %v2074
        %v2370 = vunpack.c.l.b16 %v2075
        %v2371 = vunpack.c.l.b16 %v2076
        %v2372 = vunpack.c.l.b16 %v2077
        %v2373 = vunpack.c.l.b16 %v2078
        %v2374 = vunpack.c.l.b16 %v2079
        %v2375 = vunpack.c.l.b16 %v2080
        %v2376 = vunpack.c.l.b16 %v2081
        %v2377 = vunpack.c.l.b16 %v2082
        %v2378 = vunpack.c.l.b16 %v2083
        %v2379 = vunpack.c.l.b16 %v2084
        %v2380 = vunpack.c.l.b16 %v2085
        %v2381 = vunpack.c.l.b16 %v2086
        %v2382 = vunpack.c.l.b16 %v2087
        %v2383 = vunpack.c.l.b16 %v2088
        %v2384 = vunpack.c.l.b16 %v2089
        %v2385 = vunpack.c.l.b16 %v2090
        %v2386 = vunpack.c.l.b16 %v2091
        %v2387 = vunpack.c.l.b16 %v2092
        %v2388 = vunpack.c.l.b16 %v2093
        %v2389 = vunpack.c.l.b16 %v2094
        %v2390 = vunpack.c.l.b16 %v2095
        %v2391 = vunpack.c.l.b16 %v2096
        %v2392 = vunpack.c.l.b16 %v2097
        %v2393 = vunpack.c.l.b16 %v2098
        %v2394 = vunpack.c.l.b16 %v2099
        %v2395 = vunpack.c.l.b16 %v2100
        %v2396 = vunpack.c.l.b16 %v2101
        %v2397 = vunpack.c.l.b16 %v2102
        %v2398 = vunpack.c.l.b16 %v2103
        %v2399 = vunpack.c.l.b16 %v2104
        %v2400 = vunpack.c.l.b16 %v2105
        %v2401 = vunpack.c.l.b16 %v2106
        %v2402 = vunpack.c.l.b16 %v2107
        %v2403 = vunpack.c.l.b16 %v2108
        %v2404 = vunpack.c.l.b16 %v2109
        %v2405 = vunpack.c.l.b16 %v2110
        %v2406 = vunpack.c.l.b16 %v2111
        %v2407 = vunpack.c.l.b16 %v2112
        %v2408 = vunpack.c.l.b16 %v2113
        %v2409 = vunpack.c.l.b16 %v2114
        %v2410 = vunpack.c.l.b16 %v2115
        %v2411 = vunpack.c.l.b16 %v2116
        %v2412 = vunpack.c.l.b16 %v2117
        %v2413 = vunpack.c.l.b16 %v2118
        %v2414 = vunpack.c.l.b16 %v2119
        %v2415 = vunpack.c.l.b16 %v2120
        %v2416 = vunpack.c.l.b16 %v2121
        %v2417 = vunpack.c.l.b16 %v2122
        %v2418 = vunpack.c.l.b16 %v2123
        %v2419 = vunpack.c.l.b16 %v2124
        %v2420 = vunpack.c.l.b16 %v2125
        %v2421 = vunpack.c.l.b16 %v2126
        %v2422 = vunpack.c.l.b16 %v2127
        %v2423 = vunpack.c.l.b16 %v2128
        %v2424 = vunpack.c.l.b16 %v2129
        %v2425 = vunpack.c.l.b16 %v2130
        %v2426 = vunpack.c.l.b16 %v2131
        %v2427 = vpack.c.b16 %v2284, %v2283
        %v2428 = vpack.c.b16 %v2286, %v2285
        %v2429 = vpack.c.b16 %v2288, %v2287
        %v2430 = vpack.c.b16 %v2290, %v2289
        %v2431 = vpack.c.b16 %v2292, %v2291
        %v2432 = vpack.c.b16 %v2294, %v2293
        %v2433 = vpack.c.b16 %v2296, %v2295
        %v2434 = vpack.c.b16 %v2298, %v2297
        %v2435 = vpack.c.b16 %v2300, %v2299
        %v2436 = vpack.c.b16 %v2302, %v2301
        %v2437 = vpack.c.b16 %v2304, %v2303
        %v2438 = vpack.c.b16 %v2306, %v2305
        %v2439 = vpack.c.b16 %v2308, %v2307
        %v2440 = vpack.c.b16 %v2310, %v2309
        %v2441 = vpack.c.b16 %v2312, %v2311
        %v2442 = vpack.c.b16 %v2314, %v2313
        %v2443 = vpack.c.b16 %v2316, %v2315
        %v2444 = vpack.c.b16 %v2318, %v2317
        %v2445 = vpack.c.b16 %v2320, %v2319
        %v2446 = vpack.c.b16 %v2322, %v2321
        %v2447 = vpack.c.b16 %v2324, %v2323
        %v2448 = vpack.c.b16 %v2326, %v2325
        %v2449 = vpack.c.b16 %v2328, %v2327
        %v2450 = vpack.c.b16 %v2330, %v2329
        %v2451 = vpack.c.b16 %v2332, %v2331
        %v2452 = vpack.c.b16 %v2334, %v2333
        %v2453 = vpack.c.b16 %v2336, %v2335
        %v2454 = vpack.c.b16 %v2338, %v2337
        %v2455 = vpack.c.b16 %v2340, %v2339
        %v2456 = vpack.c.b16 %v2342, %v2341
        %v2457 = vpack.c.b16 %v2344, %v2343
        %v2458 = vpack.c.b16 %v2346, %v2345
        %v2459 = vpack.c.b16 %v2348, %v2347
        %v2460 = vpack.c.b16 %v2350, %v2349
        %v2461 = vpack.c.b16 %v2352, %v2351
        %v2462 = vpack.c.b16 %v2354, %v2353
        %v2463 = vpack.c.b16 %v2356, %v2355
        %v2464 = vpack.c.b16 %v2358, %v2357
        %v2465 = vpack.c.b16 %v2360, %v2359
        %v2466 = vpack.c.b16 %v2362, %v2361
        %v2467 = vpack.c.b16 %v2364, %v2363
        %v2468 = vpack.c.b16 %v2366, %v2365
        %v2469 = vpack.c.b16 %v2368, %v2367
        %v2470 = vpack.c.b16 %v2370, %v2369
        %v2471 = vpack.c.b16 %v2372, %v2371
        %v2472 = vpack.c.b16 %v2374, %v2373
        %v2473 = vpack.c.b16 %v2376, %v2375
        %v2474 = vpack.c.b16 %v2378, %v2377
        %v2475 = vpack.c.b16 %v2380, %v2379
        %v2476 = vpack.c.b16 %v2382, %v2381
        %v2477 = vpack.c.b16 %v2384, %v2383
        %v2478 = vpack.c.b16 %v2386, %v2385
        %v2479 = vpack.c.b16 %v2388, %v2387
        %v2480 = vpack.c.b16 %v2390, %v2389
        %v2481 = vpack.c.b16 %v2392, %v2391
        %v2482 = vpack.c.b16 %v2394, %v2393
        %v2483 = vpack.c.b16 %v2396, %v2395
        %v2484 = vpack.c.b16 %v2398, %v2397
        %v2485 = vpack.c.b16 %v2400, %v2399
        %v2486 = vpack.c.b16 %v2402, %v2401
        %v2487 = vpack.c.b16 %v2404, %v2403
        %v2488 = vpack.c.b16 %v2406, %v2405
        %v2489 = vpack.c.b16 %v2408, %v2407
        %v2490 = vpack.c.b16 %v2410, %v2409
        %v2491 = vpack.c.b16 %v2412, %v2411
        %v2492 = vpack.c.b16 %v2414, %v2413
        %v2493 = vpack.c.b16 %v2416, %v2415
        %v2494 = vpack.c.b16 %v2418, %v2417
        %v2495 = vpack.c.b16 %v2420, %v2419
        %v2496 = vpack.c.b16 %v2422, %v2421
        %v2497 = vpack.c.b16 %v2424, %v2423
        %v2498 = vpack.c.b16 %v2426, %v2425
        %2571 = vmatprep.subr.bf16.mxu0 0
        %2572 = vmatpush1.bf16.msra.mxu0 %v2427
        %2573 = vmatprep.subr.bf16.mxu0 0
        %2574 = vmatpush1.bf16.msra.mxu0 %v2428
        %2575 = vmatprep.subr.bf16.mxu0 0
        %2576 = vmatpush1.bf16.msra.mxu0 %v2429
        %2577 = vmatprep.subr.bf16.mxu0 0
        %2578 = vmatpush1.bf16.msra.mxu0 %v2430
        %2579 = vmatprep.subr.bf16.mxu0 0
        %2580 = vmatpush1.bf16.msra.mxu0 %v2431
        %2581 = vmatprep.subr.bf16.mxu0 0
        %2582 = vmatpush1.bf16.msra.mxu0 %v2432
        %2583 = vmatprep.subr.bf16.mxu0 0
        %2584 = vmatpush1.bf16.msra.mxu0 %v2433
        %2585 = vmatprep.subr.bf16.mxu0 0
        %2586 = vmatpush1.bf16.msra.mxu0 %v2434
        %2587 = vmatprep.subr.bf16.mxu0 0
        %2588 = vmatpush1.bf16.msra.mxu0 %v2435
        %2589 = vmatprep.subr.bf16.mxu0 0
        %2590 = vmatpush1.bf16.msra.mxu0 %v2436
        %2591 = vmatprep.subr.bf16.mxu0 0
        %2592 = vmatpush1.bf16.msra.mxu0 %v2437
        %2593 = vmatprep.subr.bf16.mxu0 0
        %2594 = vmatpush1.bf16.msra.mxu0 %v2438
        %2595 = vmatprep.subr.bf16.mxu0 0
        %2596 = vmatpush1.bf16.msra.mxu0 %v2439
        %2597 = vmatprep.subr.bf16.mxu0 0
        %2598 = vmatpush1.bf16.msra.mxu0 %v2440
        %2599 = vmatprep.subr.bf16.mxu0 0
        %2600 = vmatpush1.bf16.msra.mxu0 %v2441
        %2601 = vmatprep.subr.bf16.mxu0 0
        %2602 = vmatpush1.bf16.msra.mxu0 %v2442
        %2603 = vmatprep.mubr.bf16.mxu0 %v1059
        %2604 = vmatmul.mubr.bf16.gmra.mrb[0].mxu0 %v947
        %v2605 = vpop.f32.mrb[0].mxu0
        %v2606 = vadd.f32 %v2137, %v2605
        %v2607 = vpop.f32.mrb[0].mxu0
        %v2608 = vpop.f32.mrb[0].mxu0
        %v2609 = vadd.f32 %v2137, %v2608
        %v2610 = vpop.f32.mrb[0].mxu0
        %2611 = vmatprep.mubr.bf16.mxu0 %v1060
        %2612 = vmatmul.mubr.bf16.gmra.mrb[0].mxu0 %v948
        %v2613 = vpop.f32.mrb[0].mxu0
        %v2614 = vadd.f32 %v2137, %v2613
        %v2615 = vpop.f32.mrb[0].mxu0
        %v2616 = vpop.f32.mrb[0].mxu0
        %v2617 = vadd.f32 %v2137, %v2616
        %v2618 = vpop.f32.mrb[0].mxu0
        %2619 = vmatprep.mubr.bf16.mxu0 %v1061
        %2620 = vmatmul.mubr.bf16.gmra.mrb[0].mxu0 %v949
        %v2621 = vpop.f32.mrb[0].mxu0
        %v2622 = vadd.f32 %v2137, %v2621
        %v2623 = vpop.f32.mrb[0].mxu0
        %v2624 = vpop.f32.mrb[0].mxu0
        %v2625 = vadd.f32 %v2137, %v2624
        %v2626 = vpop.f32.mrb[0].mxu0
        %2627 = vmatprep.mubr.bf16.mxu0 %v1062
        %2628 = vmatmul.mubr.bf16.gmra.mrb[0].mxu0 %v950
        %v2629 = vpop.f32.mrb[0].mxu0
        %v2630 = vadd.f32 %v2137, %v2629
        %v2631 = vpop.f32.mrb[0].mxu0
        %v2632 = vpop.f32.mrb[0].mxu0
        %v2633 = vadd.f32 %v2137, %v2632
        %v2634 = vpop.f32.mrb[0].mxu0
        %2635 = vmatprep.mubr.bf16.mxu0 %v1063
        %2636 = vmatmul.mubr.bf16.gmra.mrb[0].mxu0 %v951
        %v2637 = vpop.f32.mrb[0].mxu0
        %v2638 = vadd.f32 %v2137, %v2637
        %v2639 = vpop.f32.mrb[0].mxu0
        %v2640 = vpop.f32.mrb[0].mxu0
        %v2641 = vadd.f32 %v2137, %v2640
        %v2642 = vpop.f32.mrb[0].mxu0
        %2643 = vmatprep.mubr.bf16.mxu0 %v1064
        %2644 = vmatmul.mubr.bf16.gmra.mrb[0].mxu0 %v952
        %v2645 = vpop.f32.mrb[0].mxu0
        %v2646 = vadd.f32 %v2137, %v2645
        %v2647 = vpop.f32.mrb[0].mxu0
        %v2648 = vpop.f32.mrb[0].mxu0
        %v2649 = vadd.f32 %v2137, %v2648
        %v2650 = vpop.f32.mrb[0].mxu0
        %2651 = vmatprep.mubr.bf16.mxu0 %v1065
        %2652 = vmatmul.mubr.bf16.gmra.mrb[0].mxu0 %v953
        %v2653 = vpop.f32.mrb[0].mxu0
        %v2654 = vadd.f32 %v2137, %v2653
        %v2655 = vpop.f32.mrb[0].mxu0
        %v2656 = vpop.f32.mrb[0].mxu0
        %v2657 = vadd.f32 %v2137, %v2656
        %v2658 = vpop.f32.mrb[0].mxu0
        %2659 = vmatprep.mubr.bf16.mxu0 %v1066
        %2660 = vmatmul.mubr.bf16.gmra.mrb[0].mxu0 %v954
        %v2661 = vpop.f32.mrb[0].mxu0
        %v2662 = vadd.f32 %v2137, %v2661
        %v2663 = vpop.f32.mrb[0].mxu0
        %v2664 = vpop.f32.mrb[0].mxu0
        %v2665 = vadd.f32 %v2137, %v2664
        %v2666 = vpop.f32.mrb[0].mxu0
        %2667 = vmatprep.mubr.bf16.mxu0 %v1067
        %2668 = vmatmul.mubr.bf16.gmra.mrb[0].mxu0 %v955
        %v2669 = vpop.f32.mrb[0].mxu0
        %v2670 = vadd.f32 %v2137, %v2669
        %v2671 = vpop.f32.mrb[0].mxu0
        %v2672 = vpop.f32.mrb[0].mxu0
        %v2673 = vadd.f32 %v2137, %v2672
        %v2674 = vpop.f32.mrb[0].mxu0
        %2675 = vmatprep.mubr.bf16.mxu0 %v1068
        %2676 = vmatmul.mubr.bf16.gmra.mrb[0].mxu0 %v956
        %v2677 = vpop.f32.mrb[0].mxu0
        %v2678 = vadd.f32 %v2137, %v2677
        %v2679 = vpop.f32.mrb[0].mxu0
        %v2680 = vpop.f32.mrb[0].mxu0
        %v2681 = vadd.f32 %v2137, %v2680
        %v2682 = vpop.f32.mrb[0].mxu0
        %2683 = vmatprep.mubr.bf16.mxu0 %v1069
        %2684 = vmatmul.mubr.bf16.gmra.mrb[0].mxu0 %v957
        %v2685 = vpop.f32.mrb[0].mxu0
        %v2686 = vadd.f32 %v2137, %v2685
        %v2687 = vpop.f32.mrb[0].mxu0
        %v2688 = vpop.f32.mrb[0].mxu0
        %v2689 = vadd.f32 %v2137, %v2688
        %v2690 = vpop.f32.mrb[0].mxu0
        %2691 = vmatprep.mubr.bf16.mxu0 %v1070
        %2692 = vmatmul.mubr.bf16.gmra.mrb[0].mxu0 %v958
        %v2693 = vpop.f32.mrb[0].mxu0
        %v2694 = vadd.f32 %v2137, %v2693
        %v2695 = vpop.f32.mrb[0].mxu0
        %v2696 = vpop.f32.mrb[0].mxu0
        %v2697 = vadd.f32 %v2137, %v2696
        %v2698 = vpop.f32.mrb[0].mxu0
        %2699 = vmatprep.mubr.bf16.mxu0 %v1071
        %2700 = vmatmul.mubr.bf16.gmra.mrb[0].mxu0 %v959
        %v2701 = vpop.f32.mrb[0].mxu0
        %v2702 = vadd.f32 %v2137, %v2701
        %v2703 = vpop.f32.mrb[0].mxu0
        %v2704 = vpop.f32.mrb[0].mxu0
        %v2705 = vadd.f32 %v2137, %v2704
        %v2706 = vpop.f32.mrb[0].mxu0
        %2707 = vmatprep.mubr.bf16.mxu0 %v1072
        %2708 = vmatmul.mubr.bf16.gmra.mrb[0].mxu0 %v960
        %v2709 = vpop.f32.mrb[0].mxu0
        %v2710 = vadd.f32 %v2137, %v2709
        %v2711 = vpop.f32.mrb[0].mxu0
        %v2712 = vpop.f32.mrb[0].mxu0
        %v2713 = vadd.f32 %v2137, %v2712
        %v2714 = vpop.f32.mrb[0].mxu0
        %2715 = vmatprep.mubr.bf16.mxu0 %v1073
        %2716 = vmatmul.mubr.bf16.gmra.mrb[0].mxu0 %v961
        %v2717 = vpop.f32.mrb[0].mxu0
        %v2718 = vadd.f32 %v2137, %v2717
        %v2719 = vpop.f32.mrb[0].mxu0
        %v2720 = vpop.f32.mrb[0].mxu0
        %v2721 = vadd.f32 %v2137, %v2720
        %v2722 = vpop.f32.mrb[0].mxu0
        %2723 = vmatprep.mubr.bf16.mxu0 %v1074
        %2724 = vmatmul.mubr.bf16.gmra.mrb[0].mxu0 %v962
        %v2725 = vpop.f32.mrb[0].mxu0
        %v2726 = vadd.f32 %v2137, %v2725
        %v2727 = vpop.f32.mrb[0].mxu0
        %v2728 = vpop.f32.mrb[0].mxu0
        %v2729 = vadd.f32 %v2137, %v2728
        %v2730 = vpop.f32.mrb[0].mxu0
        %2731 = vdwg.mxu0
        %2732 = vmatprep.subr.bf16.mxu0 0
        %2733 = vmatpush1.bf16.msra.mxu0 %v2443
        %2734 = vmatprep.subr.bf16.mxu0 0
        %2735 = vmatpush1.bf16.msra.mxu0 %v2444
        %2736 = vmatprep.subr.bf16.mxu0 0
        %2737 = vmatpush1.bf16.msra.mxu0 %v2445
        %2738 = vmatprep.subr.bf16.mxu0 0
        %2739 = vmatpush1.bf16.msra.mxu0 %v2446
        %2740 = vmatprep.subr.bf16.mxu0 0
        %2741 = vmatpush1.bf16.msra.mxu0 %v2447
        %2742 = vmatprep.subr.bf16.mxu0 0
        %2743 = vmatpush1.bf16.msra.mxu0 %v2448
        %2744 = vmatprep.subr.bf16.mxu0 0
        %2745 = vmatpush1.bf16.msra.mxu0 %v2449
        %2746 = vmatprep.subr.bf16.mxu0 0
        %2747 = vmatpush1.bf16.msra.mxu0 %v2450
        %2748 = vmatprep.subr.bf16.mxu0 0
        %2749 = vmatpush1.bf16.msra.mxu0 %v2451
        %2750 = vmatprep.subr.bf16.mxu0 0
        %2751 = vmatpush1.bf16.msra.mxu0 %v2452
        %2752 = vmatprep.subr.bf16.mxu0 0
        %2753 = vmatpush1.bf16.msra.mxu0 %v2453
        %2754 = vmatprep.subr.bf16.mxu0 0
        %2755 = vmatpush1.bf16.msra.mxu0 %v2454
        %2756 = vmatprep.subr.bf16.mxu0 0
        %2757 = vmatpush1.bf16.msra.mxu0 %v2455
        %2758 = vmatprep.subr.bf16.mxu0 0
        %2759 = vmatpush1.bf16.msra.mxu0 %v2456
        %2760 = vmatprep.subr.bf16.mxu0 0
        %2761 = vmatpush1.bf16.msra.mxu0 %v2457
        %2762 = vmatprep.subr.bf16.mxu0 0
        %2763 = vmatpush1.bf16.msra.mxu0 %v2458
        %2764 = vmatprep.mubr.bf16.mxu0 %v1412
        %2765 = vmatmul.mubr.bf16.gmra.mrb[0].mxu0 %v1300
        %v2766 = vpop.f32.mrb[0].mxu0
        %v2767 = vadd.f32 %v2606, %v2766
        %v2768 = vpop.f32.mrb[0].mxu0
        %v2769 = vpop.f32.mrb[0].mxu0
        %v2770 = vadd.f32 %v2609, %v2769
        %v2771 = vpop.f32.mrb[0].mxu0
        %2772 = vmatprep.mubr.bf16.mxu0 %v1413
        %2773 = vmatmul.mubr.bf16.gmra.mrb[0].mxu0 %v1301
        %v2774 = vpop.f32.mrb[0].mxu0
        %v2775 = vadd.f32 %v2614, %v2774
        %v2776 = vpop.f32.mrb[0].mxu0
        %v2777 = vpop.f32.mrb[0].mxu0
        %v2778 = vadd.f32 %v2617, %v2777
        %v2779 = vpop.f32.mrb[0].mxu0
        %2780 = vmatprep.mubr.bf16.mxu0 %v1414
        %2781 = vmatmul.mubr.bf16.gmra.mrb[0].mxu0 %v1302
        %v2782 = vpop.f32.mrb[0].mxu0
        %v2783 = vadd.f32 %v2622, %v2782
        %v2784 = vpop.f32.mrb[0].mxu0
        %v2785 = vpop.f32.mrb[0].mxu0
        %v2786 = vadd.f32 %v2625, %v2785
        %v2787 = vpop.f32.mrb[0].mxu0
        %2788 = vmatprep.mubr.bf16.mxu0 %v1415
        %2789 = vmatmul.mubr.bf16.gmra.mrb[0].mxu0 %v1303
        %v2790 = vpop.f32.mrb[0].mxu0
        %v2791 = vadd.f32 %v2630, %v2790
        %v2792 = vpop.f32.mrb[0].mxu0
        %v2793 = vpop.f32.mrb[0].mxu0
        %v2794 = vadd.f32 %v2633, %v2793
        %v2795 = vpop.f32.mrb[0].mxu0
        %2796 = vmatprep.mubr.bf16.mxu0 %v1416
        %2797 = vmatmul.mubr.bf16.gmra.mrb[0].mxu0 %v1304
        %v2798 = vpop.f32.mrb[0].mxu0
        %v2799 = vadd.f32 %v2638, %v2798
        %v2800 = vpop.f32.mrb[0].mxu0
        %v2801 = vpop.f32.mrb[0].mxu0
        %v2802 = vadd.f32 %v2641, %v2801
        %v2803 = vpop.f32.mrb[0].mxu0
        %2804 = vmatprep.mubr.bf16.mxu0 %v1417
        %2805 = vmatmul.mubr.bf16.gmra.mrb[0].mxu0 %v1305
        %v2806 = vpop.f32.mrb[0].mxu0
        %v2807 = vadd.f32 %v2646, %v2806
        %v2808 = vpop.f32.mrb[0].mxu0
        %v2809 = vpop.f32.mrb[0].mxu0
        %v2810 = vadd.f32 %v2649, %v2809
        %v2811 = vpop.f32.mrb[0].mxu0
        %2812 = vmatprep.mubr.bf16.mxu0 %v1418
        %2813 = vmatmul.mubr.bf16.gmra.mrb[0].mxu0 %v1306
        %v2814 = vpop.f32.mrb[0].mxu0
        %v2815 = vadd.f32 %v2654, %v2814
        %v2816 = vpop.f32.mrb[0].mxu0
        %v2817 = vpop.f32.mrb[0].mxu0
        %v2818 = vadd.f32 %v2657, %v2817
        %v2819 = vpop.f32.mrb[0].mxu0
        %2820 = vmatprep.mubr.bf16.mxu0 %v1419
        %2821 = vmatmul.mubr.bf16.gmra.mrb[0].mxu0 %v1307
        %v2822 = vpop.f32.mrb[0].mxu0
        %v2823 = vadd.f32 %v2662, %v2822
        %v2824 = vpop.f32.mrb[0].mxu0
        %v2825 = vpop.f32.mrb[0].mxu0
        %v2826 = vadd.f32 %v2665, %v2825
        %v2827 = vpop.f32.mrb[0].mxu0
        %2828 = vmatprep.mubr.bf16.mxu0 %v1420
        %2829 = vmatmul.mubr.bf16.gmra.mrb[0].mxu0 %v1308
        %v2830 = vpop.f32.mrb[0].mxu0
        %v2831 = vadd.f32 %v2670, %v2830
        %v2832 = vpop.f32.mrb[0].mxu0
        %v2833 = vpop.f32.mrb[0].mxu0
        %v2834 = vadd.f32 %v2673, %v2833
        %v2835 = vpop.f32.mrb[0].mxu0
        %2836 = vmatprep.mubr.bf16.mxu0 %v1421
        %2837 = vmatmul.mubr.bf16.gmra.mrb[0].mxu0 %v1309
        %v2838 = vpop.f32.mrb[0].mxu0
        %v2839 = vadd.f32 %v2678, %v2838
        %v2840 = vpop.f32.mrb[0].mxu0
        %v2841 = vpop.f32.mrb[0].mxu0
        %v2842 = vadd.f32 %v2681, %v2841
        %v2843 = vpop.f32.mrb[0].mxu0
        %2844 = vmatprep.mubr.bf16.mxu0 %v1422
        %2845 = vmatmul.mubr.bf16.gmra.mrb[0].mxu0 %v1310
        %v2846 = vpop.f32.mrb[0].mxu0
        %v2847 = vadd.f32 %v2686, %v2846
        %v2848 = vpop.f32.mrb[0].mxu0
        %v2849 = vpop.f32.mrb[0].mxu0
        %v2850 = vadd.f32 %v2689, %v2849
        %v2851 = vpop.f32.mrb[0].mxu0
        %2852 = vmatprep.mubr.bf16.mxu0 %v1423
        %2853 = vmatmul.mubr.bf16.gmra.mrb[0].mxu0 %v1311
        %v2854 = vpop.f32.mrb[0].mxu0
        %v2855 = vadd.f32 %v2694, %v2854
        %v2856 = vpop.f32.mrb[0].mxu0
        %v2857 = vpop.f32.mrb[0].mxu0
        %v2858 = vadd.f32 %v2697, %v2857
        %v2859 = vpop.f32.mrb[0].mxu0
        %2860 = vmatprep.mubr.bf16.mxu0 %v1424
        %2861 = vmatmul.mubr.bf16.gmra.mrb[0].mxu0 %v1312
        %v2862 = vpop.f32.mrb[0].mxu0
        %v2863 = vadd.f32 %v2702, %v2862
        %v2864 = vpop.f32.mrb[0].mxu0
        %v2865 = vpop.f32.mrb[0].mxu0
        %v2866 = vadd.f32 %v2705, %v2865
        %v2867 = vpop.f32.mrb[0].mxu0
        %2868 = vmatprep.mubr.bf16.mxu0 %v1425
        %2869 = vmatmul.mubr.bf16.gmra.mrb[0].mxu0 %v1313
        %v2870 = vpop.f32.mrb[0].mxu0
        %v2871 = vadd.f32 %v2710, %v2870
        %v2872 = vpop.f32.mrb[0].mxu0
        %v2873 = vpop.f32.mrb[0].mxu0
        %v2874 = vadd.f32 %v2713, %v2873
        %v2875 = vpop.f32.mrb[0].mxu0
        %2876 = vmatprep.mubr.bf16.mxu0 %v1426
        %2877 = vmatmul.mubr.bf16.gmra.mrb[0].mxu0 %v1314
        %v2878 = vpop.f32.mrb[0].mxu0
        %v2879 = vadd.f32 %v2718, %v2878
        %v2880 = vpop.f32.mrb[0].mxu0
        %v2881 = vpop.f32.mrb[0].mxu0
        %v2882 = vadd.f32 %v2721, %v2881
        %v2883 = vpop.f32.mrb[0].mxu0
        %2884 = vmatprep.mubr.bf16.mxu0 %v1427
        %2885 = vmatmul.mubr.bf16.gmra.mrb[0].mxu0 %v1315
        %v2886 = vpop.f32.mrb[0].mxu0
        %v2887 = vadd.f32 %v2726, %v2886
        %v2888 = vpop.f32.mrb[0].mxu0
        %v2889 = vpop.f32.mrb[0].mxu0
        %v2890 = vadd.f32 %v2729, %v2889
        %v2891 = vpop.f32.mrb[0].mxu0
        %2892 = vdwg.mxu0
        %2893 = vmatprep.subr.bf16.mxu0 0
        %2894 = vmatpush1.bf16.msra.mxu0 %v2459
        %2895 = vmatprep.subr.bf16.mxu0 0
        %2896 = vmatpush1.bf16.msra.mxu0 %v2460
        %2897 = vmatprep.subr.bf16.mxu0 0
        %2898 = vmatpush1.bf16.msra.mxu0 %v2461
        %2899 = vmatprep.subr.bf16.mxu0 0
        %2900 = vmatpush1.bf16.msra.mxu0 %v2462
        %2901 = vmatprep.subr.bf16.mxu0 0
        %2902 = vmatpush1.bf16.msra.mxu0 %v2463
        %2903 = vmatprep.subr.bf16.mxu0 0
        %2904 = vmatpush1.bf16.msra.mxu0 %v2464
        %2905 = vmatprep.subr.bf16.mxu0 0
        %2906 = vmatpush1.bf16.msra.mxu0 %v2465
        %2907 = vmatprep.subr.bf16.mxu0 0
        %2908 = vmatpush1.bf16.msra.mxu0 %v2466
        %2909 = vmatprep.subr.bf16.mxu0 0
        %2910 = vmatpush1.bf16.msra.mxu0 %v2467
        %2911 = vmatprep.subr.bf16.mxu0 0
        %2912 = vmatpush1.bf16.msra.mxu0 %v2468
        %2913 = vmatprep.subr.bf16.mxu0 0
        %2914 = vmatpush1.bf16.msra.mxu0 %v2469
        %2915 = vmatprep.subr.bf16.mxu0 0
        %2916 = vmatpush1.bf16.msra.mxu0 %v2470
        %2917 = vmatprep.subr.bf16.mxu0 0
        %2918 = vmatpush1.bf16.msra.mxu0 %v2471
        %2919 = vmatprep.subr.bf16.mxu0 0
        %2920 = vmatpush1.bf16.msra.mxu0 %v2472
        %2921 = vmatprep.subr.bf16.mxu0 0
        %2922 = vmatpush1.bf16.msra.mxu0 %v2473
        %2923 = vmatprep.subr.bf16.mxu0 0
        %2924 = vmatpush1.bf16.msra.mxu0 %v2474
        %2925 = vmatprep.mubr.bf16.mxu0 %v1540
        %2926 = vmatmul.mubr.bf16.gmra.mrb[0].mxu0 %v1428
        %v2927 = vpop.f32.mrb[0].mxu0
        %v2928 = vadd.f32 %v2767, %v2927
        %v2929 = vpop.f32.mrb[0].mxu0
        %v2930 = vpop.f32.mrb[0].mxu0
        %v2931 = vadd.f32 %v2770, %v2930
        %v2932 = vpop.f32.mrb[0].mxu0
        %2933 = vmatprep.mubr.bf16.mxu0 %v1541
        %2934 = vmatmul.mubr.bf16.gmra.mrb[0].mxu0 %v1429
        %v2935 = vpop.f32.mrb[0].mxu0
        %v2936 = vadd.f32 %v2775, %v2935
        %v2937 = vpop.f32.mrb[0].mxu0
        %v2938 = vpop.f32.mrb[0].mxu0
        %v2939 = vadd.f32 %v2778, %v2938
        %v2940 = vpop.f32.mrb[0].mxu0
        %2941 = vmatprep.mubr.bf16.mxu0 %v1542
        %2942 = vmatmul.mubr.bf16.gmra.mrb[0].mxu0 %v1430
        %v2943 = vpop.f32.mrb[0].mxu0
        %v2944 = vadd.f32 %v2783, %v2943
        %v2945 = vpop.f32.mrb[0].mxu0
        %v2946 = vpop.f32.mrb[0].mxu0
        %v2947 = vadd.f32 %v2786, %v2946
        %v2948 = vpop.f32.mrb[0].mxu0
        %2949 = vmatprep.mubr.bf16.mxu0 %v1543
        %2950 = vmatmul.mubr.bf16.gmra.mrb[0].mxu0 %v1431
        %v2951 = vpop.f32.mrb[0].mxu0
        %v2952 = vadd.f32 %v2791, %v2951
        %v2953 = vpop.f32.mrb[0].mxu0
        %v2954 = vpop.f32.mrb[0].mxu0
        %v2955 = vadd.f32 %v2794, %v2954
        %v2956 = vpop.f32.mrb[0].mxu0
        %2957 = vmatprep.mubr.bf16.mxu0 %v1544
        %2958 = vmatmul.mubr.bf16.gmra.mrb[0].mxu0 %v1432
        %v2959 = vpop.f32.mrb[0].mxu0
        %v2960 = vadd.f32 %v2799, %v2959
        %v2961 = vpop.f32.mrb[0].mxu0
        %v2962 = vpop.f32.mrb[0].mxu0
        %v2963 = vadd.f32 %v2802, %v2962
        %v2964 = vpop.f32.mrb[0].mxu0
        %2965 = vmatprep.mubr.bf16.mxu0 %v1545
        %2966 = vmatmul.mubr.bf16.gmra.mrb[0].mxu0 %v1433
        %v2967 = vpop.f32.mrb[0].mxu0
        %v2968 = vadd.f32 %v2807, %v2967
        %v2969 = vpop.f32.mrb[0].mxu0
        %v2970 = vpop.f32.mrb[0].mxu0
        %v2971 = vadd.f32 %v2810, %v2970
        %v2972 = vpop.f32.mrb[0].mxu0
        %2973 = vmatprep.mubr.bf16.mxu0 %v1546
        %2974 = vmatmul.mubr.bf16.gmra.mrb[0].mxu0 %v1434
        %v2975 = vpop.f32.mrb[0].mxu0
        %v2976 = vadd.f32 %v2815, %v2975
        %v2977 = vpop.f32.mrb[0].mxu0
        %v2978 = vpop.f32.mrb[0].mxu0
        %v2979 = vadd.f32 %v2818, %v2978
        %v2980 = vpop.f32.mrb[0].mxu0
        %2981 = vmatprep.mubr.bf16.mxu0 %v1547
        %2982 = vmatmul.mubr.bf16.gmra.mrb[0].mxu0 %v1435
        %v2983 = vpop.f32.mrb[0].mxu0
        %v2984 = vadd.f32 %v2823, %v2983
        %v2985 = vpop.f32.mrb[0].mxu0
        %v2986 = vpop.f32.mrb[0].mxu0
        %v2987 = vadd.f32 %v2826, %v2986
        %v2988 = vpop.f32.mrb[0].mxu0
        %2989 = vmatprep.mubr.bf16.mxu0 %v1548
        %2990 = vmatmul.mubr.bf16.gmra.mrb[0].mxu0 %v1436
        %v2991 = vpop.f32.mrb[0].mxu0
        %v2992 = vadd.f32 %v2831, %v2991
        %v2993 = vpop.f32.mrb[0].mxu0
        %v2994 = vpop.f32.mrb[0].mxu0
        %v2995 = vadd.f32 %v2834, %v2994
        %v2996 = vpop.f32.mrb[0].mxu0
        %2997 = vmatprep.mubr.bf16.mxu0 %v1549
        %2998 = vmatmul.mubr.bf16.gmra.mrb[0].mxu0 %v1437
        %v2999 = vpop.f32.mrb[0].mxu0
        %v3000 = vadd.f32 %v2839, %v2999
        %v3001 = vpop.f32.mrb[0].mxu0
        %v3002 = vpop.f32.mrb[0].mxu0
        %v3003 = vadd.f32 %v2842, %v3002
        %v3004 = vpop.f32.mrb[0].mxu0
        %3005 = vmatprep.mubr.bf16.mxu0 %v1550
        %3006 = vmatmul.mubr.bf16.gmra.mrb[0].mxu0 %v1438
        %v3007 = vpop.f32.mrb[0].mxu0
        %v3008 = vadd.f32 %v2847, %v3007
        %v3009 = vpop.f32.mrb[0].mxu0
        %v3010 = vpop.f32.mrb[0].mxu0
        %v3011 = vadd.f32 %v2850, %v3010
        %v3012 = vpop.f32.mrb[0].mxu0
        %3013 = vmatprep.mubr.bf16.mxu0 %v1551
        %3014 = vmatmul.mubr.bf16.gmra.mrb[0].mxu0 %v1439
        %v3015 = vpop.f32.mrb[0].mxu0
        %v3016 = vadd.f32 %v2855, %v3015
        %v3017 = vpop.f32.mrb[0].mxu0
        %v3018 = vpop.f32.mrb[0].mxu0
        %v3019 = vadd.f32 %v2858, %v3018
        %v3020 = vpop.f32.mrb[0].mxu0
        %3021 = vmatprep.mubr.bf16.mxu0 %v1552
        %3022 = vmatmul.mubr.bf16.gmra.mrb[0].mxu0 %v1440
        %v3023 = vpop.f32.mrb[0].mxu0
        %v3024 = vadd.f32 %v2863, %v3023
        %v3025 = vpop.f32.mrb[0].mxu0
        %v3026 = vpop.f32.mrb[0].mxu0
        %v3027 = vadd.f32 %v2866, %v3026
        %v3028 = vpop.f32.mrb[0].mxu0
        %3029 = vmatprep.mubr.bf16.mxu0 %v1553
        %3030 = vmatmul.mubr.bf16.gmra.mrb[0].mxu0 %v1441
        %v3031 = vpop.f32.mrb[0].mxu0
        %v3032 = vadd.f32 %v2871, %v3031
        %v3033 = vpop.f32.mrb[0].mxu0
        %v3034 = vpop.f32.mrb[0].mxu0
        %v3035 = vadd.f32 %v2874, %v3034
        %v3036 = vpop.f32.mrb[0].mxu0
        %3037 = vmatprep.mubr.bf16.mxu0 %v1554
        %3038 = vmatmul.mubr.bf16.gmra.mrb[0].mxu0 %v1442
        %v3039 = vpop.f32.mrb[0].mxu0
        %v3040 = vadd.f32 %v2879, %v3039
        %v3041 = vpop.f32.mrb[0].mxu0
        %v3042 = vpop.f32.mrb[0].mxu0
        %v3043 = vadd.f32 %v2882, %v3042
        %v3044 = vpop.f32.mrb[0].mxu0
        %3045 = vmatprep.mubr.bf16.mxu0 %v1555
        %3046 = vmatmul.mubr.bf16.gmra.mrb[0].mxu0 %v1443
        %v3047 = vpop.f32.mrb[0].mxu0
        %v3048 = vadd.f32 %v2887, %v3047
        %v3049 = vpop.f32.mrb[0].mxu0
        %v3050 = vpop.f32.mrb[0].mxu0
        %v3051 = vadd.f32 %v2890, %v3050
        %v3052 = vpop.f32.mrb[0].mxu0
        %3053 = vdwg.mxu0
        %3054 = vmatprep.subr.bf16.mxu0 0
        %3055 = vmatpush1.bf16.msra.mxu0 %v2475
        %3056 = vmatprep.subr.bf16.mxu0 0
        %3057 = vmatpush1.bf16.msra.mxu0 %v2476
        %3058 = vmatprep.subr.bf16.mxu0 0
        %3059 = vmatpush1.bf16.msra.mxu0 %v2477
        %3060 = vmatprep.subr.bf16.mxu0 0
        %3061 = vmatpush1.bf16.msra.mxu0 %v2478
        %3062 = vmatprep.subr.bf16.mxu0 0
        %3063 = vmatpush1.bf16.msra.mxu0 %v2479
        %3064 = vmatprep.subr.bf16.mxu0 0
        %3065 = vmatpush1.bf16.msra.mxu0 %v2480
        %3066 = vmatprep.subr.bf16.mxu0 0
        %3067 = vmatpush1.bf16.msra.mxu0 %v2481
        %3068 = vmatprep.subr.bf16.mxu0 0
        %3069 = vmatpush1.bf16.msra.mxu0 %v2482
        %3070 = vmatprep.subr.bf16.mxu0 0
        %3071 = vmatpush1.bf16.msra.mxu0 %v2483
        %3072 = vmatprep.subr.bf16.mxu0 0
        %3073 = vmatpush1.bf16.msra.mxu0 %v2484
        %3074 = vmatprep.subr.bf16.mxu0 0
        %3075 = vmatpush1.bf16.msra.mxu0 %v2485
        %3076 = vmatprep.subr.bf16.mxu0 0
        %3077 = vmatpush1.bf16.msra.mxu0 %v2486
        %3078 = vmatprep.subr.bf16.mxu0 0
        %3079 = vmatpush1.bf16.msra.mxu0 %v2487
        %3080 = vmatprep.subr.bf16.mxu0 0
        %3081 = vmatpush1.bf16.msra.mxu0 %v2488
        %3082 = vmatprep.subr.bf16.mxu0 0
        %3083 = vmatpush1.bf16.msra.mxu0 %v2489
        %3084 = vmatprep.subr.bf16.mxu0 0
        %3085 = vmatpush1.bf16.msra.mxu0 %v2490
        %3086 = vmatprep.mubr.bf16.mxu0 %v1828
        %3087 = vmatmul.mubr.bf16.gmra.mrb[0].mxu0 %v1716
        %v3088 = vpop.f32.mrb[0].mxu0
        %v3089 = vadd.f32 %v2928, %v3088
        %v3090 = vpop.f32.mrb[0].mxu0
        %v3091 = vpop.f32.mrb[0].mxu0
        %v3092 = vadd.f32 %v2931, %v3091
        %v3093 = vpop.f32.mrb[0].mxu0
        %3094 = vmatprep.mubr.bf16.mxu0 %v1829
        %3095 = vmatmul.mubr.bf16.gmra.mrb[0].mxu0 %v1717
        %v3096 = vpop.f32.mrb[0].mxu0
        %v3097 = vadd.f32 %v2936, %v3096
        %v3098 = vpop.f32.mrb[0].mxu0
        %v3099 = vpop.f32.mrb[0].mxu0
        %v3100 = vadd.f32 %v2939, %v3099
        %v3101 = vpop.f32.mrb[0].mxu0
        %3102 = vmatprep.mubr.bf16.mxu0 %v1830
        %3103 = vmatmul.mubr.bf16.gmra.mrb[0].mxu0 %v1718
        %v3104 = vpop.f32.mrb[0].mxu0
        %v3105 = vadd.f32 %v2944, %v3104
        %v3106 = vpop.f32.mrb[0].mxu0
        %v3107 = vpop.f32.mrb[0].mxu0
        %v3108 = vadd.f32 %v2947, %v3107
        %v3109 = vpop.f32.mrb[0].mxu0
        %3110 = vmatprep.mubr.bf16.mxu0 %v1831
        %3111 = vmatmul.mubr.bf16.gmra.mrb[0].mxu0 %v1719
        %v3112 = vpop.f32.mrb[0].mxu0
        %v3113 = vadd.f32 %v2952, %v3112
        %v3114 = vpop.f32.mrb[0].mxu0
        %v3115 = vpop.f32.mrb[0].mxu0
        %v3116 = vadd.f32 %v2955, %v3115
        %v3117 = vpop.f32.mrb[0].mxu0
        %3118 = vmatprep.mubr.bf16.mxu0 %v1832
        %3119 = vmatmul.mubr.bf16.gmra.mrb[0].mxu0 %v1720
        %v3120 = vpop.f32.mrb[0].mxu0
        %v3121 = vadd.f32 %v2960, %v3120
        %v3122 = vpop.f32.mrb[0].mxu0
        %v3123 = vpop.f32.mrb[0].mxu0
        %v3124 = vadd.f32 %v2963, %v3123
        %v3125 = vpop.f32.mrb[0].mxu0
        %3126 = vmatprep.mubr.bf16.mxu0 %v1833
        %3127 = vmatmul.mubr.bf16.gmra.mrb[0].mxu0 %v1721
        %v3128 = vpop.f32.mrb[0].mxu0
        %v3129 = vadd.f32 %v2968, %v3128
        %v3130 = vpop.f32.mrb[0].mxu0
        %v3131 = vpop.f32.mrb[0].mxu0
        %v3132 = vadd.f32 %v2971, %v3131
        %v3133 = vpop.f32.mrb[0].mxu0
        %3134 = vmatprep.mubr.bf16.mxu0 %v1834
        %3135 = vmatmul.mubr.bf16.gmra.mrb[0].mxu0 %v1722
        %v3136 = vpop.f32.mrb[0].mxu0
        %v3137 = vadd.f32 %v2976, %v3136
        %v3138 = vpop.f32.mrb[0].mxu0
        %v3139 = vpop.f32.mrb[0].mxu0
        %v3140 = vadd.f32 %v2979, %v3139
        %v3141 = vpop.f32.mrb[0].mxu0
        %3142 = vmatprep.mubr.bf16.mxu0 %v1835
        %3143 = vmatmul.mubr.bf16.gmra.mrb[0].mxu0 %v1723
        %v3144 = vpop.f32.mrb[0].mxu0
        %v3145 = vadd.f32 %v2984, %v3144
        %v3146 = vpop.f32.mrb[0].mxu0
        %v3147 = vpop.f32.mrb[0].mxu0
        %v3148 = vadd.f32 %v2987, %v3147
        %v3149 = vpop.f32.mrb[0].mxu0
        %3150 = vmatprep.mubr.bf16.mxu0 %v1836
        %3151 = vmatmul.mubr.bf16.gmra.mrb[0].mxu0 %v1724
        %v3152 = vpop.f32.mrb[0].mxu0
        %v3153 = vadd.f32 %v2992, %v3152
        %v3154 = vpop.f32.mrb[0].mxu0
        %v3155 = vpop.f32.mrb[0].mxu0
        %v3156 = vadd.f32 %v2995, %v3155
        %v3157 = vpop.f32.mrb[0].mxu0
        %3158 = vmatprep.mubr.bf16.mxu0 %v1837
        %3159 = vmatmul.mubr.bf16.gmra.mrb[0].mxu0 %v1725
        %v3160 = vpop.f32.mrb[0].mxu0
        %v3161 = vadd.f32 %v3000, %v3160
        %v3162 = vpop.f32.mrb[0].mxu0
        %v3163 = vpop.f32.mrb[0].mxu0
        %v3164 = vadd.f32 %v3003, %v3163
        %v3165 = vpop.f32.mrb[0].mxu0
        %3166 = vmatprep.mubr.bf16.mxu0 %v1838
        %3167 = vmatmul.mubr.bf16.gmra.mrb[0].mxu0 %v1726
        %v3168 = vpop.f32.mrb[0].mxu0
        %v3169 = vadd.f32 %v3008, %v3168
        %v3170 = vpop.f32.mrb[0].mxu0
        %v3171 = vpop.f32.mrb[0].mxu0
        %v3172 = vadd.f32 %v3011, %v3171
        %v3173 = vpop.f32.mrb[0].mxu0
        %3174 = vmatprep.mubr.bf16.mxu0 %v1839
        %3175 = vmatmul.mubr.bf16.gmra.mrb[0].mxu0 %v1727
        %v3176 = vpop.f32.mrb[0].mxu0
        %v3177 = vadd.f32 %v3016, %v3176
        %v3178 = vpop.f32.mrb[0].mxu0
        %v3179 = vpop.f32.mrb[0].mxu0
        %v3180 = vadd.f32 %v3019, %v3179
        %v3181 = vpop.f32.mrb[0].mxu0
        %3182 = vmatprep.mubr.bf16.mxu0 %v1840
        %3183 = vmatmul.mubr.bf16.gmra.mrb[0].mxu0 %v1728
        %v3184 = vpop.f32.mrb[0].mxu0
        %v3185 = vadd.f32 %v3024, %v3184
        %v3186 = vpop.f32.mrb[0].mxu0
        %v3187 = vpop.f32.mrb[0].mxu0
        %v3188 = vadd.f32 %v3027, %v3187
        %v3189 = vpop.f32.mrb[0].mxu0
        %3190 = vmatprep.mubr.bf16.mxu0 %v1841
        %3191 = vmatmul.mubr.bf16.gmra.mrb[0].mxu0 %v1729
        %v3192 = vpop.f32.mrb[0].mxu0
        %v3193 = vadd.f32 %v3032, %v3192
        %v3194 = vpop.f32.mrb[0].mxu0
        %v3195 = vpop.f32.mrb[0].mxu0
        %v3196 = vadd.f32 %v3035, %v3195
        %v3197 = vpop.f32.mrb[0].mxu0
        %3198 = vmatprep.mubr.bf16.mxu0 %v1842
        %3199 = vmatmul.mubr.bf16.gmra.mrb[0].mxu0 %v1730
        %v3200 = vpop.f32.mrb[0].mxu0
        %v3201 = vadd.f32 %v3040, %v3200
        %v3202 = vpop.f32.mrb[0].mxu0
        %v3203 = vpop.f32.mrb[0].mxu0
        %v3204 = vadd.f32 %v3043, %v3203
        %v3205 = vpop.f32.mrb[0].mxu0
        %3206 = vmatprep.mubr.bf16.mxu0 %v1843
        %3207 = vmatmul.mubr.bf16.gmra.mrb[0].mxu0 %v1731
        %v3208 = vpop.f32.mrb[0].mxu0
        %v3209 = vadd.f32 %v3048, %v3208
        %v3210 = vpop.f32.mrb[0].mxu0
        %v3211 = vpop.f32.mrb[0].mxu0
        %v3212 = vadd.f32 %v3051, %v3211
        %v3213 = vpop.f32.mrb[0].mxu0
        %3214 = vdwg.mxu0
        %3215 = vmatprep.subr.bf16.mxu0 0
        %3216 = vmatpush1.bf16.msra.mxu0 %v2491
        %3217 = vmatprep.subr.bf16.mxu0 0
        %3218 = vmatpush1.bf16.msra.mxu0 %v2492
        %3219 = vmatprep.subr.bf16.mxu0 0
        %3220 = vmatpush1.bf16.msra.mxu0 %v2493
        %3221 = vmatprep.subr.bf16.mxu0 0
        %3222 = vmatpush1.bf16.msra.mxu0 %v2494
        %3223 = vmatprep.subr.bf16.mxu0 0
        %3224 = vmatpush1.bf16.msra.mxu0 %v2495
        %3225 = vmatprep.subr.bf16.mxu0 0
        %3226 = vmatpush1.bf16.msra.mxu0 %v2496
        %3227 = vmatprep.subr.bf16.mxu0 0
        %3228 = vmatpush1.bf16.msra.mxu0 %v2497
        %3229 = vmatprep.subr.bf16.mxu0 0
        %3230 = vmatpush1.bf16.msra.mxu0 %v2498
        %3231 = vmatprep.subr.bf16.mxu0 0
        %3232 = vmatpush1.bf16.msra.mxu0 0
        %3233 = vmatprep.subr.bf16.mxu0 0
        %3234 = vmatpush1.bf16.msra.mxu0 0
        %3235 = vmatprep.subr.bf16.mxu0 0
        %3236 = vmatpush1.bf16.msra.mxu0 0
        %3237 = vmatprep.subr.bf16.mxu0 0
        %3238 = vmatpush1.bf16.msra.mxu0 0
        %3239 = vmatprep.subr.bf16.mxu0 0
        %3240 = vmatpush1.bf16.msra.mxu0 0
        %3241 = vmatprep.subr.bf16.mxu0 0
        %3242 = vmatpush1.bf16.msra.mxu0 0
        %3243 = vmatprep.subr.bf16.mxu0 0
        %3244 = vmatpush1.bf16.msra.mxu0 0
        %3245 = vmatprep.subr.bf16.mxu0 0
        %3246 = vmatpush1.bf16.msra.mxu0 0
        %3247 = vmatprep.mubr.bf16.mxu0 0
        %3248 = vmatmul.mubr.bf16.gmra.mrb[0].mxu0 %v1972
        %v3249 = vpop.f32.mrb[0].mxu0
        %v3250 = vadd.f32 %v3089, %v3249
        %v3251 = vpop.f32.mrb[0].mxu0
        %v3252 = vpop.f32.mrb[0].mxu0
        %v3253 = vadd.f32 %v3092, %v3252
        %v3254 = vpop.f32.mrb[0].mxu0
        %3255 = vmatprep.mubr.bf16.mxu0 0
        %3256 = vmatmul.mubr.bf16.gmra.mrb[0].mxu0 %v1973
        %v3257 = vpop.f32.mrb[0].mxu0
        %v3258 = vadd.f32 %v3097, %v3257
        %v3259 = vpop.f32.mrb[0].mxu0
        %v3260 = vpop.f32.mrb[0].mxu0
        %v3261 = vadd.f32 %v3100, %v3260
        %v3262 = vpop.f32.mrb[0].mxu0
        %3263 = vmatprep.mubr.bf16.mxu0 0
        %3264 = vmatmul.mubr.bf16.gmra.mrb[0].mxu0 %v1974
        %v3265 = vpop.f32.mrb[0].mxu0
        %v3266 = vadd.f32 %v3105, %v3265
        %v3267 = vpop.f32.mrb[0].mxu0
        %v3268 = vpop.f32.mrb[0].mxu0
        %v3269 = vadd.f32 %v3108, %v3268
        %v3270 = vpop.f32.mrb[0].mxu0
        %3271 = vmatprep.mubr.bf16.mxu0 0
        %3272 = vmatmul.mubr.bf16.gmra.mrb[0].mxu0 %v1975
        %v3273 = vpop.f32.mrb[0].mxu0
        %v3274 = vadd.f32 %v3113, %v3273
        %v3275 = vpop.f32.mrb[0].mxu0
        %v3276 = vpop.f32.mrb[0].mxu0
        %v3277 = vadd.f32 %v3116, %v3276
        %v3278 = vpop.f32.mrb[0].mxu0
        %3279 = vmatprep.mubr.bf16.mxu0 0
        %3280 = vmatmul.mubr.bf16.gmra.mrb[0].mxu0 %v1976
        %v3281 = vpop.f32.mrb[0].mxu0
        %v3282 = vadd.f32 %v3121, %v3281
        %v3283 = vpop.f32.mrb[0].mxu0
        %v3284 = vpop.f32.mrb[0].mxu0
        %v3285 = vadd.f32 %v3124, %v3284
        %v3286 = vpop.f32.mrb[0].mxu0
        %3287 = vmatprep.mubr.bf16.mxu0 0
        %3288 = vmatmul.mubr.bf16.gmra.mrb[0].mxu0 %v1977
        %v3289 = vpop.f32.mrb[0].mxu0
        %v3290 = vadd.f32 %v3129, %v3289
        %v3291 = vpop.f32.mrb[0].mxu0
        %v3292 = vpop.f32.mrb[0].mxu0
        %v3293 = vadd.f32 %v3132, %v3292
        %v3294 = vpop.f32.mrb[0].mxu0
        %3295 = vmatprep.mubr.bf16.mxu0 0
        %3296 = vmatmul.mubr.bf16.gmra.mrb[0].mxu0 %v1978
        %v3297 = vpop.f32.mrb[0].mxu0
        %v3298 = vadd.f32 %v3137, %v3297
        %v3299 = vpop.f32.mrb[0].mxu0
        %v3300 = vpop.f32.mrb[0].mxu0
        %v3301 = vadd.f32 %v3140, %v3300
        %v3302 = vpop.f32.mrb[0].mxu0
        %3303 = vmatprep.mubr.bf16.mxu0 0
        %3304 = vmatmul.mubr.bf16.gmra.mrb[0].mxu0 %v1979
        %v3305 = vpop.f32.mrb[0].mxu0
        %v3306 = vadd.f32 %v3145, %v3305
        %v3307 = vpop.f32.mrb[0].mxu0
        %v3308 = vpop.f32.mrb[0].mxu0
        %v3309 = vadd.f32 %v3148, %v3308
        %v3310 = vpop.f32.mrb[0].mxu0
        %3311 = vmatprep.mubr.bf16.mxu0 0
        %3312 = vmatmul.mubr.bf16.gmra.mrb[0].mxu0 %v1980
        %v3313 = vpop.f32.mrb[0].mxu0
        %v3314 = vadd.f32 %v3153, %v3313
        %v3315 = vpop.f32.mrb[0].mxu0
        %v3316 = vpop.f32.mrb[0].mxu0
        %v3317 = vadd.f32 %v3156, %v3316
        %v3318 = vpop.f32.mrb[0].mxu0
        %3319 = vmatprep.mubr.bf16.mxu0 0
        %3320 = vmatmul.mubr.bf16.gmra.mrb[0].mxu0 %v1981
        %v3321 = vpop.f32.mrb[0].mxu0
        %v3322 = vadd.f32 %v3161, %v3321
        %v3323 = vpop.f32.mrb[0].mxu0
        %v3324 = vpop.f32.mrb[0].mxu0
        %v3325 = vadd.f32 %v3164, %v3324
        %v3326 = vpop.f32.mrb[0].mxu0
        %3327 = vmatprep.mubr.bf16.mxu0 0
        %3328 = vmatmul.mubr.bf16.gmra.mrb[0].mxu0 %v1982
        %v3329 = vpop.f32.mrb[0].mxu0
        %v3330 = vadd.f32 %v3169, %v3329
        %v3331 = vpop.f32.mrb[0].mxu0
        %v3332 = vpop.f32.mrb[0].mxu0
        %v3333 = vadd.f32 %v3172, %v3332
        %v3334 = vpop.f32.mrb[0].mxu0
        %3335 = vmatprep.mubr.bf16.mxu0 0
        %3336 = vmatmul.mubr.bf16.gmra.mrb[0].mxu0 %v1983
        %v3337 = vpop.f32.mrb[0].mxu0
        %v3338 = vadd.f32 %v3177, %v3337
        %v3339 = vpop.f32.mrb[0].mxu0
        %v3340 = vpop.f32.mrb[0].mxu0
        %v3341 = vadd.f32 %v3180, %v3340
        %v3342 = vpop.f32.mrb[0].mxu0
        %3343 = vmatprep.mubr.bf16.mxu0 0
        %3344 = vmatmul.mubr.bf16.gmra.mrb[0].mxu0 %v1984
        %v3345 = vpop.f32.mrb[0].mxu0
        %v3346 = vadd.f32 %v3185, %v3345
        %v3347 = vpop.f32.mrb[0].mxu0
        %v3348 = vpop.f32.mrb[0].mxu0
        %v3349 = vadd.f32 %v3188, %v3348
        %v3350 = vpop.f32.mrb[0].mxu0
        %3351 = vmatprep.mubr.bf16.mxu0 0
        %3352 = vmatmul.mubr.bf16.gmra.mrb[0].mxu0 %v1985
        %v3353 = vpop.f32.mrb[0].mxu0
        %v3354 = vadd.f32 %v3193, %v3353
        %v3355 = vpop.f32.mrb[0].mxu0
        %v3356 = vpop.f32.mrb[0].mxu0
        %v3357 = vadd.f32 %v3196, %v3356
        %v3358 = vpop.f32.mrb[0].mxu0
        %3359 = vmatprep.mubr.bf16.mxu0 0
        %3360 = vmatmul.mubr.bf16.gmra.mrb[0].mxu0 %v1986
        %v3361 = vpop.f32.mrb[0].mxu0
        %v3362 = vadd.f32 %v3201, %v3361
        %v3363 = vpop.f32.mrb[0].mxu0
        %v3364 = vpop.f32.mrb[0].mxu0
        %v3365 = vadd.f32 %v3204, %v3364
        %v3366 = vpop.f32.mrb[0].mxu0
        %3367 = vmatprep.mubr.bf16.mxu0 0
        %3368 = vmatmul.mubr.bf16.gmra.mrb[0].mxu0 %v1987
        %v3369 = vpop.f32.mrb[0].mxu0
        %v3370 = vadd.f32 %v3209, %v3369
        %v3371 = vpop.f32.mrb[0].mxu0
        %v3372 = vpop.f32.mrb[0].mxu0
        %v3373 = vadd.f32 %v3212, %v3372
        %v3374 = vpop.f32.mrb[0].mxu0
        %3375 = vdwg.mxu0
        %v3376 = vmax.f32 %v3250, 0.0
        %v3377 = vmax.f32 %v3253, 0.0
        %v3378 = vmax.f32 %v3258, 0.0
        %v3379 = vmax.f32 %v3261, 0.0
        %v3380 = vmax.f32 %v3266, 0.0
        %v3381 = vmax.f32 %v3269, 0.0
        %v3382 = vmax.f32 %v3274, 0.0
        %v3383 = vmax.f32 %v3277, 0.0
        %v3384 = vmax.f32 %v3282, 0.0
        %v3385 = vmax.f32 %v3285, 0.0
        %v3386 = vmax.f32 %v3290, 0.0
        %v3387 = vmax.f32 %v3293, 0.0
        %v3388 = vmax.f32 %v3298, 0.0
        %v3389 = vmax.f32 %v3301, 0.0
        %v3390 = vmax.f32 %v3306, 0.0
        %v3391 = vmax.f32 %v3309, 0.0
        %v3392 = vmax.f32 %v3314, 0.0
        %v3393 = vmax.f32 %v3317, 0.0
        %v3394 = vmax.f32 %v3322, 0.0
        %v3395 = vmax.f32 %v3325, 0.0
        %v3396 = vmax.f32 %v3330, 0.0
        %v3397 = vmax.f32 %v3333, 0.0
        %v3398 = vmax.f32 %v3338, 0.0
        %v3399 = vmax.f32 %v3341, 0.0
        %v3400 = vmax.f32 %v3346, 0.0
        %v3401 = vmax.f32 %v3349, 0.0
        %v3402 = vmax.f32 %v3354, 0.0
        %v3403 = vmax.f32 %v3357, 0.0
        %v3404 = vmax.f32 %v3362, 0.0
        %v3405 = vmax.f32 %v3365, 0.0
        %v3406 = vmax.f32 %v3370, 0.0
        %v3407 = vmax.f32 %v3373, 0.0
        %v3408 = vpack.c.bf16 %v3377, %v3376
        %v3409 = vpack.c.bf16 %v3379, %v3378
        %v3410 = vpack.c.bf16 %v3381, %v3380
        %v3411 = vpack.c.bf16 %v3383, %v3382
        %v3412 = vpack.c.bf16 %v3385, %v3384
        %v3413 = vpack.c.bf16 %v3387, %v3386
        %v3414 = vpack.c.bf16 %v3389, %v3388
        %v3415 = vpack.c.bf16 %v3391, %v3390
        %v3416 = vpack.c.bf16 %v3393, %v3392
        %v3417 = vpack.c.bf16 %v3395, %v3394
        %v3418 = vpack.c.bf16 %v3397, %v3396
        %v3419 = vpack.c.bf16 %v3399, %v3398
        %v3420 = vpack.c.bf16 %v3401, %v3400
        %v3421 = vpack.c.bf16 %v3403, %v3402
        %v3422 = vpack.c.bf16 %v3405, %v3404
        %v3423 = vpack.c.bf16 %v3407, %v3406
        %v3424 = vld [vmem:[%s5] sm:$0xf]
        %v3425 = vld [vmem:[%s5 + $0x4] sm:$0xf]
        %v3426 = vld [vmem:[%s5 + $0x8] sm:$0xf]
        %v3427 = vld [vmem:[%s5 + $0xc] sm:$0xf]
        %v3428 = vld [vmem:[%s5 + $0x10] sm:$0xf]
        %v3429 = vld [vmem:[%s5 + $0x14] sm:$0xf]
        %v3430 = vld [vmem:[%s5 + $0x18] sm:$0xf]
        %v3431 = vld [vmem:[%s5 + $0x1c] sm:$0xf]
        %v3432 = vld [vmem:[%s5 + $0x20] sm:$0xf]
        %v3433 = vld [vmem:[%s5 + $0x24] sm:$0xf]
        %v3434 = vld [vmem:[%s5 + $0x28] sm:$0xf]
        %v3435 = vld [vmem:[%s5 + $0x2c] sm:$0xf]
        %v3436 = vld [vmem:[%s5 + $0x30] sm:$0xf]
        %v3437 = vld [vmem:[%s5 + $0x34] sm:$0xf]
        %v3438 = vld [vmem:[%s5 + $0x38] sm:$0xf]
        %v3439 = vld [vmem:[%s5 + $0x3c] sm:$0xf]
        %v3440 = vld [vmem:[%s6] sm:$0x1]
        %v3442 = vlaneseq
        %v3443 = vshrl.u32 %v3442, 7
        %v3444 = vsub.s32 0, %v3443
        %v3445 = vrot.slane %v3440, %v3444
        %v3463 = vunpack.c.l.b16 %v3424
        %v3464 = vunpack.c.l.b16 %v3425
        %v3465 = vunpack.c.l.b16 %v3426
        %v3466 = vunpack.c.l.b16 %v3427
        %v3467 = vunpack.c.l.b16 %v3428
        %v3468 = vunpack.c.l.b16 %v3429
        %v3469 = vunpack.c.l.b16 %v3430
        %v3470 = vunpack.c.l.b16 %v3431
        %v3471 = vunpack.c.l.b16 %v3432
        %v3472 = vunpack.c.l.b16 %v3433
        %v3473 = vunpack.c.l.b16 %v3434
        %v3474 = vunpack.c.l.b16 %v3435
        %v3475 = vunpack.c.l.b16 %v3436
        %v3476 = vunpack.c.l.b16 %v3437
        %v3477 = vunpack.c.l.b16 %v3438
        %v3478 = vunpack.c.l.b16 %v3439
        %v3479 = vpack.c.b16 %v3464, %v3463
        %v3480 = vpack.c.b16 %v3466, %v3465
        %v3481 = vpack.c.b16 %v3468, %v3467
        %v3482 = vpack.c.b16 %v3470, %v3469
        %v3483 = vpack.c.b16 %v3472, %v3471
        %v3484 = vpack.c.b16 %v3474, %v3473
        %v3485 = vpack.c.b16 %v3476, %v3475
        %v3486 = vpack.c.b16 %v3478, %v3477
        %3495 = vmatprep.subr.bf16.mxu0 0
        %3496 = vmatpush1.bf16.msra.mxu0 %v3479
        %3497 = vmatprep.subr.bf16.mxu0 0
        %3498 = vmatpush1.bf16.msra.mxu0 %v3480
        %3499 = vmatprep.subr.bf16.mxu0 0
        %3500 = vmatpush1.bf16.msra.mxu0 %v3481
        %3501 = vmatprep.subr.bf16.mxu0 0
        %3502 = vmatpush1.bf16.msra.mxu0 %v3482
        %3503 = vmatprep.subr.bf16.mxu0 0
        %3504 = vmatpush1.bf16.msra.mxu0 %v3483
        %3505 = vmatprep.subr.bf16.mxu0 0
        %3506 = vmatpush1.bf16.msra.mxu0 %v3484
        %3507 = vmatprep.subr.bf16.mxu0 0
        %3508 = vmatpush1.bf16.msra.mxu0 %v3485
        %3509 = vmatprep.subr.bf16.mxu0 0
        %3510 = vmatpush1.bf16.msra.mxu0 %v3486
        %3511 = vmatprep.subr.bf16.mxu0 0
        %3512 = vmatpush1.bf16.msra.mxu0 0
        %3513 = vmatprep.subr.bf16.mxu0 0
        %3514 = vmatpush1.bf16.msra.mxu0 0
        %3515 = vmatprep.subr.bf16.mxu0 0
        %3516 = vmatpush1.bf16.msra.mxu0 0
        %3517 = vmatprep.subr.bf16.mxu0 0
        %3518 = vmatpush1.bf16.msra.mxu0 0
        %3519 = vmatprep.subr.bf16.mxu0 0
        %3520 = vmatpush1.bf16.msra.mxu0 0
        %3521 = vmatprep.subr.bf16.mxu0 0
        %3522 = vmatpush1.bf16.msra.mxu0 0
        %3523 = vmatprep.subr.bf16.mxu0 0
        %3524 = vmatpush1.bf16.msra.mxu0 0
        %3525 = vmatprep.subr.bf16.mxu0 0
        %3526 = vmatpush1.bf16.msra.mxu0 0
        %3527 = vmatprep.mubr.bf16.mxu0 0
        %3528 = vmatmul.mubr.bf16.gmra.mrb[0].mxu0 %v3408
        %v3529 = vpop.f32.mrb[0].mxu0
        %v3530 = vadd.f32 %v3445, %v3529
        %v3531 = vpop.f32.mrb[0].mxu0
        %v3532 = vpop.f32.mrb[0].mxu0
        %v3533 = vadd.f32 %v3445, %v3532
        %v3534 = vpop.f32.mrb[0].mxu0
        %3535 = vmatprep.mubr.bf16.mxu0 0
        %3536 = vmatmul.mubr.bf16.gmra.mrb[0].mxu0 %v3409
        %v3537 = vpop.f32.mrb[0].mxu0
        %v3538 = vadd.f32 %v3445, %v3537
        %v3539 = vpop.f32.mrb[0].mxu0
        %v3540 = vpop.f32.mrb[0].mxu0
        %v3541 = vadd.f32 %v3445, %v3540
        %v3542 = vpop.f32.mrb[0].mxu0
        %3543 = vmatprep.mubr.bf16.mxu0 0
        %3544 = vmatmul.mubr.bf16.gmra.mrb[0].mxu0 %v3410
        %v3545 = vpop.f32.mrb[0].mxu0
        %v3546 = vadd.f32 %v3445, %v3545
        %v3547 = vpop.f32.mrb[0].mxu0
        %v3548 = vpop.f32.mrb[0].mxu0
        %v3549 = vadd.f32 %v3445, %v3548
        %v3550 = vpop.f32.mrb[0].mxu0
        %3551 = vmatprep.mubr.bf16.mxu0 0
        %3552 = vmatmul.mubr.bf16.gmra.mrb[0].mxu0 %v3411
        %v3553 = vpop.f32.mrb[0].mxu0
        %v3554 = vadd.f32 %v3445, %v3553
        %v3555 = vpop.f32.mrb[0].mxu0
        %v3556 = vpop.f32.mrb[0].mxu0
        %v3557 = vadd.f32 %v3445, %v3556
        %v3558 = vpop.f32.mrb[0].mxu0
        %3559 = vmatprep.mubr.bf16.mxu0 0
        %3560 = vmatmul.mubr.bf16.gmra.mrb[0].mxu0 %v3412
        %v3561 = vpop.f32.mrb[0].mxu0
        %v3562 = vadd.f32 %v3445, %v3561
        %v3563 = vpop.f32.mrb[0].mxu0
        %v3564 = vpop.f32.mrb[0].mxu0
        %v3565 = vadd.f32 %v3445, %v3564
        %v3566 = vpop.f32.mrb[0].mxu0
        %3567 = vmatprep.mubr.bf16.mxu0 0
        %3568 = vmatmul.mubr.bf16.gmra.mrb[0].mxu0 %v3413
        %v3569 = vpop.f32.mrb[0].mxu0
        %v3570 = vadd.f32 %v3445, %v3569
        %v3571 = vpop.f32.mrb[0].mxu0
        %v3572 = vpop.f32.mrb[0].mxu0
        %v3573 = vadd.f32 %v3445, %v3572
        %v3574 = vpop.f32.mrb[0].mxu0
        %3575 = vmatprep.mubr.bf16.mxu0 0
        %3576 = vmatmul.mubr.bf16.gmra.mrb[0].mxu0 %v3414
        %v3577 = vpop.f32.mrb[0].mxu0
        %v3578 = vadd.f32 %v3445, %v3577
        %v3579 = vpop.f32.mrb[0].mxu0
        %v3580 = vpop.f32.mrb[0].mxu0
        %v3581 = vadd.f32 %v3445, %v3580
        %v3582 = vpop.f32.mrb[0].mxu0
        %3583 = vmatprep.mubr.bf16.mxu0 0
        %3584 = vmatmul.mubr.bf16.gmra.mrb[0].mxu0 %v3415
        %v3585 = vpop.f32.mrb[0].mxu0
        %v3586 = vadd.f32 %v3445, %v3585
        %v3587 = vpop.f32.mrb[0].mxu0
        %v3588 = vpop.f32.mrb[0].mxu0
        %v3589 = vadd.f32 %v3445, %v3588
        %v3590 = vpop.f32.mrb[0].mxu0
        %3591 = vmatprep.mubr.bf16.mxu0 0
        %3592 = vmatmul.mubr.bf16.gmra.mrb[0].mxu0 %v3416
        %v3593 = vpop.f32.mrb[0].mxu0
        %v3594 = vadd.f32 %v3445, %v3593
        %v3595 = vpop.f32.mrb[0].mxu0
        %v3596 = vpop.f32.mrb[0].mxu0
        %v3597 = vadd.f32 %v3445, %v3596
        %v3598 = vpop.f32.mrb[0].mxu0
        %3599 = vmatprep.mubr.bf16.mxu0 0
        %3600 = vmatmul.mubr.bf16.gmra.mrb[0].mxu0 %v3417
        %v3601 = vpop.f32.mrb[0].mxu0
        %v3602 = vadd.f32 %v3445, %v3601
        %v3603 = vpop.f32.mrb[0].mxu0
        %v3604 = vpop.f32.mrb[0].mxu0
        %v3605 = vadd.f32 %v3445, %v3604
        %v3606 = vpop.f32.mrb[0].mxu0
        %3607 = vmatprep.mubr.bf16.mxu0 0
        %3608 = vmatmul.mubr.bf16.gmra.mrb[0].mxu0 %v3418
        %v3609 = vpop.f32.mrb[0].mxu0
        %v3610 = vadd.f32 %v3445, %v3609
        %v3611 = vpop.f32.mrb[0].mxu0
        %v3612 = vpop.f32.mrb[0].mxu0
        %v3613 = vadd.f32 %v3445, %v3612
        %v3614 = vpop.f32.mrb[0].mxu0
        %3615 = vmatprep.mubr.bf16.mxu0 0
        %3616 = vmatmul.mubr.bf16.gmra.mrb[0].mxu0 %v3419
        %v3617 = vpop.f32.mrb[0].mxu0
        %v3618 = vadd.f32 %v3445, %v3617
        %v3619 = vpop.f32.mrb[0].mxu0
        %v3620 = vpop.f32.mrb[0].mxu0
        %v3621 = vadd.f32 %v3445, %v3620
        %v3622 = vpop.f32.mrb[0].mxu0
        %3623 = vmatprep.mubr.bf16.mxu0 0
        %3624 = vmatmul.mubr.bf16.gmra.mrb[0].mxu0 %v3420
        %v3625 = vpop.f32.mrb[0].mxu0
        %v3626 = vadd.f32 %v3445, %v3625
        %v3627 = vpop.f32.mrb[0].mxu0
        %v3628 = vpop.f32.mrb[0].mxu0
        %v3629 = vadd.f32 %v3445, %v3628
        %v3630 = vpop.f32.mrb[0].mxu0
        %3631 = vmatprep.mubr.bf16.mxu0 0
        %3632 = vmatmul.mubr.bf16.gmra.mrb[0].mxu0 %v3421
        %v3633 = vpop.f32.mrb[0].mxu0
        %v3634 = vadd.f32 %v3445, %v3633
        %v3635 = vpop.f32.mrb[0].mxu0
        %v3636 = vpop.f32.mrb[0].mxu0
        %v3637 = vadd.f32 %v3445, %v3636
        %v3638 = vpop.f32.mrb[0].mxu0
        %3639 = vmatprep.mubr.bf16.mxu0 0
        %3640 = vmatmul.mubr.bf16.gmra.mrb[0].mxu0 %v3422
        %v3641 = vpop.f32.mrb[0].mxu0
        %v3642 = vadd.f32 %v3445, %v3641
        %v3643 = vpop.f32.mrb[0].mxu0
        %v3644 = vpop.f32.mrb[0].mxu0
        %v3645 = vadd.f32 %v3445, %v3644
        %v3646 = vpop.f32.mrb[0].mxu0
        %3647 = vmatprep.mubr.bf16.mxu0 0
        %3648 = vmatmul.mubr.bf16.gmra.mrb[0].mxu0 %v3423
        %v3649 = vpop.f32.mrb[0].mxu0
        %v3650 = vadd.f32 %v3445, %v3649
        %v3651 = vpop.f32.mrb[0].mxu0
        %v3652 = vpop.f32.mrb[0].mxu0
        %v3653 = vadd.f32 %v3445, %v3652
        %v3654 = vpop.f32.mrb[0].mxu0
        %3655 = vdwg.mxu0
        %v3656 = vadd.f32 %v3530, %v281
        %v3657 = vadd.f32 %v3533, %v282
        %v3658 = vadd.f32 %v3538, %v283
        %v3659 = vadd.f32 %v3541, %v284
        %v3660 = vadd.f32 %v3546, %v285
        %v3661 = vadd.f32 %v3549, %v286
        %v3662 = vadd.f32 %v3554, %v287
        %v3663 = vadd.f32 %v3557, %v288
        %v3664 = vadd.f32 %v3562, %v289
        %v3665 = vadd.f32 %v3565, %v290
        %v3666 = vadd.f32 %v3570, %v291
        %v3667 = vadd.f32 %v3573, %v292
        %v3668 = vadd.f32 %v3578, %v293
        %v3669 = vadd.f32 %v3581, %v294
        %v3670 = vadd.f32 %v3586, %v295
        %v3671 = vadd.f32 %v3589, %v296
        %v3672 = vadd.f32 %v3594, %v297
        %v3673 = vadd.f32 %v3597, %v298
        %v3674 = vadd.f32 %v3602, %v299
        %v3675 = vadd.f32 %v3605, %v300
        %v3676 = vadd.f32 %v3610, %v301
        %v3677 = vadd.f32 %v3613, %v302
        %v3678 = vadd.f32 %v3618, %v303
        %v3679 = vadd.f32 %v3621, %v304
        %v3680 = vadd.f32 %v3626, %v305
        %v3681 = vadd.f32 %v3629, %v306
        %v3682 = vadd.f32 %v3634, %v307
        %v3683 = vadd.f32 %v3637, %v308
        %v3684 = vadd.f32 %v3642, %v309
        %v3685 = vadd.f32 %v3645, %v310
        %v3686 = vadd.f32 %v3650, %v311
        %v3687 = vadd.f32 %v3653, %v312
        %v3688 = vmax.f32 %v3656, 0.0
        %v3689 = vmax.f32 %v3657, 0.0
        %v3690 = vmax.f32 %v3658, 0.0
        %v3691 = vmax.f32 %v3659, 0.0
        %v3692 = vmax.f32 %v3660, 0.0
        %v3693 = vmax.f32 %v3661, 0.0
        %v3694 = vmax.f32 %v3662, 0.0
        %v3695 = vmax.f32 %v3663, 0.0
        %v3696 = vmax.f32 %v3664, 0.0
        %v3697 = vmax.f32 %v3665, 0.0
        %v3698 = vmax.f32 %v3666, 0.0
        %v3699 = vmax.f32 %v3667, 0.0
        %v3700 = vmax.f32 %v3668, 0.0
        %v3701 = vmax.f32 %v3669, 0.0
        %v3702 = vmax.f32 %v3670, 0.0
        %v3703 = vmax.f32 %v3671, 0.0
        %v3704 = vmax.f32 %v3672, 0.0
        %v3705 = vmax.f32 %v3673, 0.0
        %v3706 = vmax.f32 %v3674, 0.0
        %v3707 = vmax.f32 %v3675, 0.0
        %v3708 = vmax.f32 %v3676, 0.0
        %v3709 = vmax.f32 %v3677, 0.0
        %v3710 = vmax.f32 %v3678, 0.0
        %v3711 = vmax.f32 %v3679, 0.0
        %v3712 = vmax.f32 %v3680, 0.0
        %v3713 = vmax.f32 %v3681, 0.0
        %v3714 = vmax.f32 %v3682, 0.0
        %v3715 = vmax.f32 %v3683, 0.0
        %v3716 = vmax.f32 %v3684, 0.0
        %v3717 = vmax.f32 %v3685, 0.0
        %v3718 = vmax.f32 %v3686, 0.0
        %v3719 = vmax.f32 %v3687, 0.0
        %3720 = vst [vmem:[%s272] sm:$0xff] %v3688
        %3721 = vst [vmem:[%s272 + $0x8] sm:$0xff] %v3689
        %3722 = vst [vmem:[%s272 + $0x10] sm:$0xff] %v3690
        %3723 = vst [vmem:[%s272 + $0x18] sm:$0xff] %v3691
        %3724 = vst [vmem:[%s272 + $0x20] sm:$0xff] %v3692
        %3725 = vst [vmem:[%s272 + $0x28] sm:$0xff] %v3693
        %3726 = vst [vmem:[%s272 + $0x30] sm:$0xff] %v3694
        %3727 = vst [vmem:[%s272 + $0x38] sm:$0xff] %v3695
        %3728 = vst [vmem:[%s272 + $0x40] sm:$0xff] %v3696
        %3729 = vst [vmem:[%s272 + $0x48] sm:$0xff] %v3697
        %3730 = vst [vmem:[%s272 + $0x50] sm:$0xff] %v3698
        %3731 = vst [vmem:[%s272 + $0x58] sm:$0xff] %v3699
        %3732 = vst [vmem:[%s272 + $0x60] sm:$0xff] %v3700
        %3733 = vst [vmem:[%s272 + $0x68] sm:$0xff] %v3701
        %3734 = vst [vmem:[%s272 + $0x70] sm:$0xff] %v3702
        %3735 = vst [vmem:[%s272 + $0x78] sm:$0xff] %v3703
        %3736 = vst [vmem:[%s272 + $0x80] sm:$0xff] %v3704
        %3737 = vst [vmem:[%s272 + $0x88] sm:$0xff] %v3705
        %3738 = vst [vmem:[%s272 + $0x90] sm:$0xff] %v3706
        %3739 = vst [vmem:[%s272 + $0x98] sm:$0xff] %v3707
        %3740 = vst [vmem:[%s272 + $0xa0] sm:$0xff] %v3708
        %3741 = vst [vmem:[%s272 + $0xa8] sm:$0xff] %v3709
        %3742 = vst [vmem:[%s272 + $0xb0] sm:$0xff] %v3710
        %3743 = vst [vmem:[%s272 + $0xb8] sm:$0xff] %v3711
        %3744 = vst [vmem:[%s272 + $0xc0] sm:$0xff] %v3712
        %3745 = vst [vmem:[%s272 + $0xc8] sm:$0xff] %v3713
        %3746 = vst [vmem:[%s272 + $0xd0] sm:$0xff] %v3714
        %3747 = vst [vmem:[%s272 + $0xd8] sm:$0xff] %v3715
        %3748 = vst [vmem:[%s272 + $0xe0] sm:$0xff] %v3716
        %3749 = vst [vmem:[%s272 + $0xe8] sm:$0xff] %v3717
        %3750 = vst [vmem:[%s272 + $0xf0] sm:$0xff] %v3718
        %3751 = vst [vmem:[%s272 + $0xf8] sm:$0xff] %v3719
        %s3752 = sand.u32 %s181, 1
        %s3753 = scalar_lea.sflag [#allocation3], %s3752
        %s3754 = sand.u32 %s181, 1
        %s3755 = smul.addr %s3754, 256
        %s3756 = scalar_lea.vmem [#allocation2], %s3755
        // Predicated region
        $region49: #{block_forward_nhwc.1} parent=47 // pred_check
          %p3757 = pneg %p191
        $region50: #{block_forward_nhwc.1} parent=47 // pred_check_branch
          %3759 = sbr.rel (%p3757) target = $region52
        $region51: #{block_forward_nhwc.1} parent=47 // pred_region
          %s3760 = smul.u32 32, %s21
          %s3762 = ssub.s32 4096, 4096
          %3763 = vsyncadd %s3753, %s3762
          %s3764 = smul.addr %s3760, 128
          %s3765 = scalar_lea.hbm %s7, %s3764
          %s3766 = sshll.u32 %s3756, 4
          %s3767 = int_to_ptr.vmem [resolvable:$true] %s3766
          %3772 = dma.vmem_to_hbm [thread:$0]  %s3767, 4096, %s3765, %s3753, 128, 128, 8
        $region52: #{block_forward_nhwc.1} parent=47 // pred_fallthru
          _
      $region48: #{block_forward_nhwc.1} parent=5 // pred_fallthru
        _
      %p3773 = scmp.le.s32.totalorder 2, %s16
      // Predicated region
      $region53: #{block_forward_nhwc.1} parent=5 // pred_check
        %p3774 = pneg %p3773
      $region54: #{block_forward_nhwc.1} parent=5 // pred_check_branch
        %3776 = sbr.rel (%p3774) target = $region56
      $region55: #{block_forward_nhwc.1} parent=5 // pred_region
        %s3777 = ssub.s32 %s16, 2
        // Predicated region
        $region57: #{block_forward_nhwc.1} parent=55 // pred_check
          %p3778 = pneg %p197
        $region58: #{block_forward_nhwc.1} parent=55 // pred_check_branch
          %3780 = sbr.rel (%p3778) target = $region60
        $region59: #{block_forward_nhwc.1} parent=55 // pred_region
          %s3781 = sand.u32 %s182, 1
          %s3782 = scalar_lea.sflag [#allocation3], %s3781
          %s3783 = sand.u32 %s182, 1
          %s3784 = smul.addr %s3783, 256
          %s3785 = scalar_lea.vmem [#allocation2], %s3784
          %3786 = dma.done %s3782, 4096
        $region60: #{block_forward_nhwc.1} parent=55 // pred_fallthru
          _
      $region56: #{block_forward_nhwc.1} parent=5 // pred_fallthru
        _
    $region6: #{block_forward_nhwc.1} parent=1 // loop_footer
      %s20 = sadd.s32 1, %s16
    $region7: #{block_forward_nhwc.1} parent=1 // loop_footer_branch
      %15 = sbr.rel target = $region3
    $region8: #{block_forward_nhwc.1} parent=1 // loop_exit
      _
    %3787 = vsyncpa [#allocation3], 1
    %s3788 = scalar_lea.sflag [#allocation3], 1
    %3789 = vsyncpa %s3788, 1

</llo_original>
